<compile_context>
chip_gen: v6e
topology: v6e:2x2x1
jax: 0.10.0
libtpu: 0.0.40
codegen_flags: <defaults>
</compile_context>

<pallas_src>
import numpy as np
import jax
import jax.numpy as jnp
from jax.experimental import pallas as pl
from jax.experimental.pallas import tpu as pltpu

OUT_PAD = 128  # lane-dense output width (final logits padded to 128 lanes)


# ---------------- fused Pallas kernel ---------------------------------------

def dqn_fused_kernel(x_ref,
                     w1_ref, b1_ref, w2_ref, b2_ref,
                     w3_ref, b3_ref, w4_ref, b4_ref,
                     wf1_ref, bf1_ref, wf4_ref, bf4_ref,
                     wf6_ref, bf6_ref, wf5_ref, bf5_ref,
                     o_ref):
    # x_ref: (H, tb, P) -- h-major so x_ref[h] is a clean (tb, P) tile.
    H = x_ref.shape[0]
    tb = x_ref.shape[1]
    f1 = wf1_ref.shape[2]

    w1 = w1_ref[...]; b1 = b1_ref[...]
    w2 = w2_ref[...]; b2 = b2_ref[...]
    w3 = w3_ref[...]; b3 = b3_ref[...]
    w4 = w4_ref[...]; b4 = b4_ref[...]

    acc = jnp.zeros((tb, f1), jnp.float32)
    for h in range(H):  # static unroll; H is small and known at trace time
        xh = x_ref[h]                                                          # (tb, P)
        t = jnp.maximum(jnp.dot(xh, w1, preferred_element_type=jnp.float32) + b1, 0.0)  # cn1+relu
        t = jnp.maximum(jnp.dot(t, w2, preferred_element_type=jnp.float32) + b2, 0.0)   # cn2+relu
        t = jnp.maximum(jnp.dot(t, w3, preferred_element_type=jnp.float32) + b3, 0.0)   # cn3+relu
        t = jnp.dot(t, w4, preferred_element_type=jnp.float32) + b4                      # cn4 (no relu)
        # fcn1 partial contraction for this h (channel-major flatten folded into wf1_stack)
        acc = acc + jnp.dot(t, wf1_ref[h], preferred_element_type=jnp.float32)

    z = jnp.maximum(acc + bf1_ref[...], 0.0)                                              # fcn1+relu
    z = jnp.maximum(jnp.dot(z, wf4_ref[...], preferred_element_type=jnp.float32)
                    + bf4_ref[...], 0.0)                                                  # fcn4+relu
    z = jnp.maximum(jnp.dot(z, wf6_ref[...], preferred_element_type=jnp.float32)
                    + bf6_ref[...], 0.0)                                                  # fcn6+relu
    o_ref[...] = (jnp.dot(z, wf5_ref[...], preferred_element_type=jnp.float32)
                  + bf5_ref[...])                                                         # fcn5 (padded cols)


# ---------------- wrapper ---------------------------------------------------

def _const_block_spec(arr):
    zeros = (0,) * arr.ndim
    return pl.BlockSpec(arr.shape, lambda i, z=zeros: z)


def dqn_forward(x, kparams, outputs, *, block_b=256):
    """x: (B, 1, n_inputs, n_parameters) float32, NCHW like PyTorch."""
    B, C, H, P = x.shape
    assert C == 1
    assert block_b % 8 == 0
    # h-major layout so the kernel indexes x_ref[h] -> (tb, P) without relayout.
    x_hbp = jnp.transpose(x.reshape(B, H, P), (1, 0, 2))  # (H, B, P)

    tb = B if B <= block_b else block_b
    grid = (pl.cdiv(B, tb),)

    weight_args = (
        kparams["w1t"], kparams["b1"], kparams["w2t"], kparams["b2"],
        kparams["w3t"], kparams["b3"], kparams["w4t"], kparams["b4"],
        kparams["wf1_stack"], kparams["bf1"], kparams["wf4t"], kparams["bf4"],
        kparams["wf6t"], kparams["bf6"], kparams["wf5t_pad"], kparams["bf5_pad"],
    )

    in_specs = [pl.BlockSpec((H, tb, P), lambda i: (0, i, 0))]
    in_specs += [_const_block_spec(a) for a in weight_args]
    out_spec = pl.BlockSpec((tb, OUT_PAD), lambda i: (i, 0))

    # Advisory cost estimate for XLA's scheduler.
    f1 = kparams["wf1_stack"].shape[2]
    flops_row = 2 * (P * 32 + 32 * 32 + 32 * 16 + 16 * 8 + 8 * f1)
    flops = B * H * flops_row + 2 * B * (f1 * 128 + 128 * 64 + 64 * OUT_PAD)
    bytes_accessed = 4 * (int(x_hbp.size)
                          + sum(int(np.prod(a.shape)) for a in weight_args)
                          + B * OUT_PAD)
    cost = pl.CostEstimate(flops=flops, transcendentals=0,
                           bytes_accessed=bytes_accessed)

    out_full = pl.pallas_call(
        dqn_fused_kernel,
        grid=grid,
        in_specs=in_specs,
        out_specs=out_spec,
        out_shape=jax.ShapeDtypeStruct((B, OUT_PAD), jnp.float32),
        compiler_params=pltpu.CompilerParams(dimension_semantics=("parallel",)),
        cost_estimate=cost,
    )(x_hbp, *weight_args)
    return out_full[:, :outputs]


# ---------------- deterministic parameter init (PyTorch-default-style) ------

def _uniform(key, shape, fan_in):
    bound = 1.0 / np.sqrt(fan_in)
    return jax.random.uniform(key, shape, jnp.float32, -bound, bound)


def init_params(key, n_inputs, n_parameters, outputs):
    ks = jax.random.split(key, 16)
    p = {}
    # cn1: Conv2d(1, 32, (1, P))  -> weight (32, P), stored transposed (P, 32)
    p["w1t"] = _uniform(ks[0], (n_parameters, 32), n_parameters)
    p["b1"] = _uniform(ks[1], (1, 32), n_parameters)
    # cn2: Conv2d(32, 32, 1x1)
    p["w2t"] = _uniform(ks[2], (32, 32), 32)
    p["b2"] = _uniform(ks[3], (1, 32), 32)
    # cn3: Conv2d(32, 16, 1x1)
    p["w3t"] = _uniform(ks[4], (32, 16), 32)
    p["b3"] = _uniform(ks[5], (1, 16), 32)
    # cn4: Conv2d(16, 8, 1x1)
    p["w4t"] = _uniform(ks[6], (16, 8), 16)
    p["b4"] = _uniform(ks[7], (1, 8), 16)
    # fcn1: Linear(8*n_inputs, 256)  (rows indexed c*H + h, PyTorch flatten order)
    p["wf1t"] = _uniform(ks[8], (8 * n_inputs, 256), 8 * n_inputs)
    p["bf1"] = _uniform(ks[9], (1, 256), 8 * n_inputs)
    # fcn4: Linear(256, 128)
    p["wf4t"] = _uniform(ks[10], (256, 128), 256)
    p["bf4"] = _uniform(ks[11], (1, 128), 256)
    # fcn6: Linear(128, 64)
    p["wf6t"] = _uniform(ks[12], (128, 64), 128)
    p["bf6"] = _uniform(ks[13], (1, 64), 128)
    # fcn5: Linear(64, outputs)
    p["wf5t"] = _uniform(ks[14], (64, outputs), 64)
    p["bf5"] = _uniform(ks[15], (1, outputs), 64)
    return p


def prepare_params(params, n_inputs, outputs):
    """One-time, kernel-ready layout: fold the channel-major flatten into fcn1
    and zero-pad the final layer to a lane-dense 128-wide output."""
    H = n_inputs
    kp = dict(params)
    # wf1_stack[h, c, :] = wf1t[c*H + h, :]
    kp["wf1_stack"] = params["wf1t"].reshape(8, H, -1).transpose(1, 0, 2)   # (H, 8, 256)
    kp["wf5t_pad"] = jnp.zeros((params["wf5t"].shape[0], OUT_PAD),
                               jnp.float32).at[:, :outputs].set(params["wf5t"])
    kp["bf5_pad"] = jnp.zeros((1, OUT_PAD), jnp.float32).at[:, :outputs].set(params["bf5"])
    return kp


# ---------------- pure-JAX reference (same semantics as the PyTorch module) -

def dqn_forward_ref(x, params):
    B, _, H, P = x.shape
    h = x.reshape(B * H, P)
    h = jnp.maximum(h @ params["w1t"] + params["b1"], 0.0)
    h = jnp.maximum(h @ params["w2t"] + params["b2"], 0.0)
    h = jnp.maximum(h @ params["w3t"] + params["b3"], 0.0)
    h = h @ params["w4t"] + params["b4"]
    flat = h.reshape(B, H, 8).transpose(0, 2, 1).reshape(B, 8 * H)   # PyTorch view(-1, 8*H)
    z = jnp.maximum(flat @ params["wf1t"] + params["bf1"], 0.0)
    z = jnp.maximum(z @ params["wf4t"] + params["bf4"], 0.0)
    z = jnp.maximum(z @ params["wf6t"] + params["bf6"], 0.0)
    return z @ params["wf5t"] + params["bf5"]


if __name__ == "__main__":
    B, n_inputs, n_parameters, outputs = 2, 10, 17, 4

    key = jax.random.PRNGKey(0)
    key, pkey, xkey = jax.random.split(key, 3)
    params = init_params(pkey, n_inputs, n_parameters, outputs)
    kparams = prepare_params(params, n_inputs, outputs)
    x = jax.random.normal(xkey, (B, 1, n_inputs, n_parameters), dtype=jnp.float32)

    fwd = jax.jit(dqn_forward, static_argnums=(2,))
    out = jax.block_until_ready(fwd(x, kparams, outputs))
    ref = jax.block_until_ready(dqn_forward_ref(x, params))

    assert out.shape == (B, outputs)
    assert np.allclose(np.asarray(out), np.asarray(ref), rtol=1e-4, atol=1e-4)
    print("KERNEL_OK")
</pallas_src>

<mosaic_0001>
module attributes {stable_mosaic.version = 11 : i64} {
  func.func @dqn_fused_kernel(%arg0: i32, %arg1: memref<10x2x17xf32, #tpu.memory_space<vmem>>, %arg2: memref<17x32xf32, #tpu.memory_space<vmem>>, %arg3: memref<1x32xf32, #tpu.memory_space<vmem>>, %arg4: memref<32x32xf32, #tpu.memory_space<vmem>>, %arg5: memref<1x32xf32, #tpu.memory_space<vmem>>, %arg6: memref<32x16xf32, #tpu.memory_space<vmem>>, %arg7: memref<1x16xf32, #tpu.memory_space<vmem>>, %arg8: memref<16x8xf32, #tpu.memory_space<vmem>>, %arg9: memref<1x8xf32, #tpu.memory_space<vmem>>, %arg10: memref<10x8x256xf32, #tpu.memory_space<vmem>>, %arg11: memref<1x256xf32, #tpu.memory_space<vmem>>, %arg12: memref<256x128xf32, #tpu.memory_space<vmem>>, %arg13: memref<1x128xf32, #tpu.memory_space<vmem>>, %arg14: memref<128x64xf32, #tpu.memory_space<vmem>>, %arg15: memref<1x64xf32, #tpu.memory_space<vmem>>, %arg16: memref<64x128xf32, #tpu.memory_space<vmem>>, %arg17: memref<1x128xf32, #tpu.memory_space<vmem>>, %arg18: memref<2x128xf32, #tpu.memory_space<vmem>>) attributes {dimension_semantics = [#tpu.dimension_semantics<parallel>], iteration_bounds = array<i64: 1>, scalar_prefetch = 0 : i64, scratch_operands = 0 : i64, tpu.core_type = #tpu.core_type<tc>, window_params = [{transform_indices = @transform_0, window_bounds = array<i64: 10, 2, 17>}, {pipeline_mode = #tpu.pipeline_mode<synchronous>, transform_indices = @transform_1, window_bounds = array<i64: 17, 32>}, {pipeline_mode = #tpu.pipeline_mode<synchronous>, transform_indices = @transform_2, window_bounds = array<i64: 1, 32>}, {pipeline_mode = #tpu.pipeline_mode<synchronous>, transform_indices = @transform_3, window_bounds = array<i64: 32, 32>}, {pipeline_mode = #tpu.pipeline_mode<synchronous>, transform_indices = @transform_4, window_bounds = array<i64: 1, 32>}, {pipeline_mode = #tpu.pipeline_mode<synchronous>, transform_indices = @transform_5, window_bounds = array<i64: 32, 16>}, {pipeline_mode = #tpu.pipeline_mode<synchronous>, transform_indices = @transform_6, window_bounds = array<i64: 1, 16>}, {pipeline_mode = #tpu.pipeline_mode<synchronous>, transform_indices = @transform_7, window_bounds = array<i64: 16, 8>}, {pipeline_mode = #tpu.pipeline_mode<synchronous>, transform_indices = @transform_8, window_bounds = array<i64: 1, 8>}, {pipeline_mode = #tpu.pipeline_mode<synchronous>, transform_indices = @transform_9, window_bounds = array<i64: 10, 8, 256>}, {pipeline_mode = #tpu.pipeline_mode<synchronous>, transform_indices = @transform_10, window_bounds = array<i64: 1, 256>}, {pipeline_mode = #tpu.pipeline_mode<synchronous>, transform_indices = @transform_11, window_bounds = array<i64: 256, 128>}, {pipeline_mode = #tpu.pipeline_mode<synchronous>, transform_indices = @transform_12, window_bounds = array<i64: 1, 128>}, {pipeline_mode = #tpu.pipeline_mode<synchronous>, transform_indices = @transform_13, window_bounds = array<i64: 128, 64>}, {pipeline_mode = #tpu.pipeline_mode<synchronous>, transform_indices = @transform_14, window_bounds = array<i64: 1, 64>}, {pipeline_mode = #tpu.pipeline_mode<synchronous>, transform_indices = @transform_15, window_bounds = array<i64: 64, 128>}, {pipeline_mode = #tpu.pipeline_mode<synchronous>, transform_indices = @transform_16, window_bounds = array<i64: 1, 128>}, {transform_indices = @transform_17, window_bounds = array<i64: 2, 128>}]} {
    %c0 = arith.constant 0 : index
    %c0_0 = arith.constant 0 : index
    %0 = vector.load %arg2[%c0, %c0_0] : memref<17x32xf32, #tpu.memory_space<vmem>>, vector<17x32xf32>
    %c0_1 = arith.constant 0 : index
    %c0_2 = arith.constant 0 : index
    %1 = vector.load %arg3[%c0_1, %c0_2] : memref<1x32xf32, #tpu.memory_space<vmem>>, vector<1x32xf32>
    %c0_3 = arith.constant 0 : index
    %c0_4 = arith.constant 0 : index
    %2 = vector.load %arg4[%c0_3, %c0_4] : memref<32x32xf32, #tpu.memory_space<vmem>>, vector<32x32xf32>
    %c0_5 = arith.constant 0 : index
    %c0_6 = arith.constant 0 : index
    %3 = vector.load %arg5[%c0_5, %c0_6] : memref<1x32xf32, #tpu.memory_space<vmem>>, vector<1x32xf32>
    %c0_7 = arith.constant 0 : index
    %c0_8 = arith.constant 0 : index
    %4 = vector.load %arg6[%c0_7, %c0_8] : memref<32x16xf32, #tpu.memory_space<vmem>>, vector<32x16xf32>
    %c0_9 = arith.constant 0 : index
    %c0_10 = arith.constant 0 : index
    %5 = vector.load %arg7[%c0_9, %c0_10] : memref<1x16xf32, #tpu.memory_space<vmem>>, vector<1x16xf32>
    %c0_11 = arith.constant 0 : index
    %c0_12 = arith.constant 0 : index
    %6 = vector.load %arg8[%c0_11, %c0_12] : memref<16x8xf32, #tpu.memory_space<vmem>>, vector<16x8xf32>
    %c0_13 = arith.constant 0 : index
    %c0_14 = arith.constant 0 : index
    %7 = vector.load %arg9[%c0_13, %c0_14] : memref<1x8xf32, #tpu.memory_space<vmem>>, vector<1x8xf32>
    %cst = arith.constant 0.000000e+00 : f32
    %8 = vector.broadcast %cst : f32 to vector<2x256xf32>
    %c0_15 = arith.constant 0 : index
    %c0_16 = arith.constant 0 : index
    %c0_17 = arith.constant 0 : index
    %9 = vector.load %arg1[%c0_15, %c0_16, %c0_17] : memref<10x2x17xf32, #tpu.memory_space<vmem>>, vector<1x2x17xf32>
    %10 = vector.shape_cast %9 : vector<1x2x17xf32> to vector<2x17xf32>
    %cst_18 = arith.constant dense<0.000000e+00> : vector<2x32xf32>
    %11 = tpu.matmul %10, %0, %cst_18 {dimension_numbers = #tpu.dot_dimension_numbers<[1], [0], [0], [1], [0, 0, 1, 1], [], []>} : vector<2x17xf32>, vector<17x32xf32>, vector<2x32xf32> -> vector<2x32xf32>
    %12 = vector.broadcast %1 : vector<1x32xf32> to vector<2x32xf32>
    %13 = arith.addf %11, %12 : vector<2x32xf32>
    %cst_19 = arith.constant 0.000000e+00 : f32
    %14 = vector.broadcast %cst_19 : f32 to vector<2x32xf32>
    %15 = arith.maximumf %13, %14 : vector<2x32xf32>
    %cst_20 = arith.constant dense<0.000000e+00> : vector<2x32xf32>
    %16 = tpu.matmul %15, %2, %cst_20 {dimension_numbers = #tpu.dot_dimension_numbers<[1], [0], [0], [1], [0, 0, 1, 1], [], []>} : vector<2x32xf32>, vector<32x32xf32>, vector<2x32xf32> -> vector<2x32xf32>
    %17 = vector.broadcast %3 : vector<1x32xf32> to vector<2x32xf32>
    %18 = arith.addf %16, %17 : vector<2x32xf32>
    %cst_21 = arith.constant 0.000000e+00 : f32
    %19 = vector.broadcast %cst_21 : f32 to vector<2x32xf32>
    %20 = arith.maximumf %18, %19 : vector<2x32xf32>
    %cst_22 = arith.constant dense<0.000000e+00> : vector<2x16xf32>
    %21 = tpu.matmul %20, %4, %cst_22 {dimension_numbers = #tpu.dot_dimension_numbers<[1], [0], [0], [1], [0, 0, 1, 1], [], []>} : vector<2x32xf32>, vector<32x16xf32>, vector<2x16xf32> -> vector<2x16xf32>
    %22 = vector.broadcast %5 : vector<1x16xf32> to vector<2x16xf32>
    %23 = arith.addf %21, %22 : vector<2x16xf32>
    %cst_23 = arith.constant 0.000000e+00 : f32
    %24 = vector.broadcast %cst_23 : f32 to vector<2x16xf32>
    %25 = arith.maximumf %23, %24 : vector<2x16xf32>
    %cst_24 = arith.constant dense<0.000000e+00> : vector<2x8xf32>
    %26 = tpu.matmul %25, %6, %cst_24 {dimension_numbers = #tpu.dot_dimension_numbers<[1], [0], [0], [1], [0, 0, 1, 1], [], []>} : vector<2x16xf32>, vector<16x8xf32>, vector<2x8xf32> -> vector<2x8xf32>
    %27 = vector.broadcast %7 : vector<1x8xf32> to vector<2x8xf32>
    %28 = arith.addf %26, %27 : vector<2x8xf32>
    %c0_25 = arith.constant 0 : index
    %c0_26 = arith.constant 0 : index
    %c0_27 = arith.constant 0 : index
    %29 = vector.load %arg10[%c0_25, %c0_26, %c0_27] : memref<10x8x256xf32, #tpu.memory_space<vmem>>, vector<1x8x256xf32>
    %30 = vector.shape_cast %29 : vector<1x8x256xf32> to vector<8x256xf32>
    %cst_28 = arith.constant dense<0.000000e+00> : vector<2x256xf32>
    %31 = tpu.matmul %28, %30, %cst_28 {dimension_numbers = #tpu.dot_dimension_numbers<[1], [0], [0], [1], [0, 0, 1, 1], [], []>} : vector<2x8xf32>, vector<8x256xf32>, vector<2x256xf32> -> vector<2x256xf32>
    %32 = arith.addf %8, %31 : vector<2x256xf32>
    %c1 = arith.constant 1 : index
    %c0_29 = arith.constant 0 : index
    %c0_30 = arith.constant 0 : index
    %33 = vector.load %arg1[%c1, %c0_29, %c0_30] : memref<10x2x17xf32, #tpu.memory_space<vmem>>, vector<1x2x17xf32>
    %34 = vector.shape_cast %33 : vector<1x2x17xf32> to vector<2x17xf32>
    %cst_31 = arith.constant dense<0.000000e+00> : vector<2x32xf32>
    %35 = tpu.matmul %34, %0, %cst_31 {dimension_numbers = #tpu.dot_dimension_numbers<[1], [0], [0], [1], [0, 0, 1, 1], [], []>} : vector<2x17xf32>, vector<17x32xf32>, vector<2x32xf32> -> vector<2x32xf32>
    %36 = vector.broadcast %1 : vector<1x32xf32> to vector<2x32xf32>
    %37 = arith.addf %35, %36 : vector<2x32xf32>
    %cst_32 = arith.constant 0.000000e+00 : f32
    %38 = vector.broadcast %cst_32 : f32 to vector<2x32xf32>
    %39 = arith.maximumf %37, %38 : vector<2x32xf32>
    %cst_33 = arith.constant dense<0.000000e+00> : vector<2x32xf32>
    %40 = tpu.matmul %39, %2, %cst_33 {dimension_numbers = #tpu.dot_dimension_numbers<[1], [0], [0], [1], [0, 0, 1, 1], [], []>} : vector<2x32xf32>, vector<32x32xf32>, vector<2x32xf32> -> vector<2x32xf32>
    %41 = vector.broadcast %3 : vector<1x32xf32> to vector<2x32xf32>
    %42 = arith.addf %40, %41 : vector<2x32xf32>
    %cst_34 = arith.constant 0.000000e+00 : f32
    %43 = vector.broadcast %cst_34 : f32 to vector<2x32xf32>
    %44 = arith.maximumf %42, %43 : vector<2x32xf32>
    %cst_35 = arith.constant dense<0.000000e+00> : vector<2x16xf32>
    %45 = tpu.matmul %44, %4, %cst_35 {dimension_numbers = #tpu.dot_dimension_numbers<[1], [0], [0], [1], [0, 0, 1, 1], [], []>} : vector<2x32xf32>, vector<32x16xf32>, vector<2x16xf32> -> vector<2x16xf32>
    %46 = vector.broadcast %5 : vector<1x16xf32> to vector<2x16xf32>
    %47 = arith.addf %45, %46 : vector<2x16xf32>
    %cst_36 = arith.constant 0.000000e+00 : f32
    %48 = vector.broadcast %cst_36 : f32 to vector<2x16xf32>
    %49 = arith.maximumf %47, %48 : vector<2x16xf32>
    %cst_37 = arith.constant dense<0.000000e+00> : vector<2x8xf32>
    %50 = tpu.matmul %49, %6, %cst_37 {dimension_numbers = #tpu.dot_dimension_numbers<[1], [0], [0], [1], [0, 0, 1, 1], [], []>} : vector<2x16xf32>, vector<16x8xf32>, vector<2x8xf32> -> vector<2x8xf32>
    %51 = vector.broadcast %7 : vector<1x8xf32> to vector<2x8xf32>
    %52 = arith.addf %50, %51 : vector<2x8xf32>
    %c1_38 = arith.constant 1 : index
    %c0_39 = arith.constant 0 : index
    %c0_40 = arith.constant 0 : index
    %53 = vector.load %arg10[%c1_38, %c0_39, %c0_40] : memref<10x8x256xf32, #tpu.memory_space<vmem>>, vector<1x8x256xf32>
    %54 = vector.shape_cast %53 : vector<1x8x256xf32> to vector<8x256xf32>
    %cst_41 = arith.constant dense<0.000000e+00> : vector<2x256xf32>
    %55 = tpu.matmul %52, %54, %cst_41 {dimension_numbers = #tpu.dot_dimension_numbers<[1], [0], [0], [1], [0, 0, 1, 1], [], []>} : vector<2x8xf32>, vector<8x256xf32>, vector<2x256xf32> -> vector<2x256xf32>
    %56 = arith.addf %32, %55 : vector<2x256xf32>
    %c2 = arith.constant 2 : index
    %c0_42 = arith.constant 0 : index
    %c0_43 = arith.constant 0 : index
    %57 = vector.load %arg1[%c2, %c0_42, %c0_43] : memref<10x2x17xf32, #tpu.memory_space<vmem>>, vector<1x2x17xf32>
    %58 = vector.shape_cast %57 : vector<1x2x17xf32> to vector<2x17xf32>
    %cst_44 = arith.constant dense<0.000000e+00> : vector<2x32xf32>
    %59 = tpu.matmul %58, %0, %cst_44 {dimension_numbers = #tpu.dot_dimension_numbers<[1], [0], [0], [1], [0, 0, 1, 1], [], []>} : vector<2x17xf32>, vector<17x32xf32>, vector<2x32xf32> -> vector<2x32xf32>
    %60 = vector.broadcast %1 : vector<1x32xf32> to vector<2x32xf32>
    %61 = arith.addf %59, %60 : vector<2x32xf32>
    %cst_45 = arith.constant 0.000000e+00 : f32
    %62 = vector.broadcast %cst_45 : f32 to vector<2x32xf32>
    %63 = arith.maximumf %61, %62 : vector<2x32xf32>
    %cst_46 = arith.constant dense<0.000000e+00> : vector<2x32xf32>
    %64 = tpu.matmul %63, %2, %cst_46 {dimension_numbers = #tpu.dot_dimension_numbers<[1], [0], [0], [1], [0, 0, 1, 1], [], []>} : vector<2x32xf32>, vector<32x32xf32>, vector<2x32xf32> -> vector<2x32xf32>
    %65 = vector.broadcast %3 : vector<1x32xf32> to vector<2x32xf32>
    %66 = arith.addf %64, %65 : vector<2x32xf32>
    %cst_47 = arith.constant 0.000000e+00 : f32
    %67 = vector.broadcast %cst_47 : f32 to vector<2x32xf32>
    %68 = arith.maximumf %66, %67 : vector<2x32xf32>
    %cst_48 = arith.constant dense<0.000000e+00> : vector<2x16xf32>
    %69 = tpu.matmul %68, %4, %cst_48 {dimension_numbers = #tpu.dot_dimension_numbers<[1], [0], [0], [1], [0, 0, 1, 1], [], []>} : vector<2x32xf32>, vector<32x16xf32>, vector<2x16xf32> -> vector<2x16xf32>
    %70 = vector.broadcast %5 : vector<1x16xf32> to vector<2x16xf32>
    %71 = arith.addf %69, %70 : vector<2x16xf32>
    %cst_49 = arith.constant 0.000000e+00 : f32
    %72 = vector.broadcast %cst_49 : f32 to vector<2x16xf32>
    %73 = arith.maximumf %71, %72 : vector<2x16xf32>
    %cst_50 = arith.constant dense<0.000000e+00> : vector<2x8xf32>
    %74 = tpu.matmul %73, %6, %cst_50 {dimension_numbers = #tpu.dot_dimension_numbers<[1], [0], [0], [1], [0, 0, 1, 1], [], []>} : vector<2x16xf32>, vector<16x8xf32>, vector<2x8xf32> -> vector<2x8xf32>
    %75 = vector.broadcast %7 : vector<1x8xf32> to vector<2x8xf32>
    %76 = arith.addf %74, %75 : vector<2x8xf32>
    %c2_51 = arith.constant 2 : index
    %c0_52 = arith.constant 0 : index
    %c0_53 = arith.constant 0 : index
    %77 = vector.load %arg10[%c2_51, %c0_52, %c0_53] : memref<10x8x256xf32, #tpu.memory_space<vmem>>, vector<1x8x256xf32>
    %78 = vector.shape_cast %77 : vector<1x8x256xf32> to vector<8x256xf32>
    %cst_54 = arith.constant dense<0.000000e+00> : vector<2x256xf32>
    %79 = tpu.matmul %76, %78, %cst_54 {dimension_numbers = #tpu.dot_dimension_numbers<[1], [0], [0], [1], [0, 0, 1, 1], [], []>} : vector<2x8xf32>, vector<8x256xf32>, vector<2x256xf32> -> vector<2x256xf32>
    %80 = arith.addf %56, %79 : vector<2x256xf32>
    %c3 = arith.constant 3 : index
    %c0_55 = arith.constant 0 : index
    %c0_56 = arith.constant 0 : index
    %81 = vector.load %arg1[%c3, %c0_55, %c0_56] : memref<10x2x17xf32, #tpu.memory_space<vmem>>, vector<1x2x17xf32>
    %82 = vector.shape_cast %81 : vector<1x2x17xf32> to vector<2x17xf32>
    %cst_57 = arith.constant dense<0.000000e+00> : vector<2x32xf32>
    %83 = tpu.matmul %82, %0, %cst_57 {dimension_numbers = #tpu.dot_dimension_numbers<[1], [0], [0], [1], [0, 0, 1, 1], [], []>} : vector<2x17xf32>, vector<17x32xf32>, vector<2x32xf32> -> vector<2x32xf32>
    %84 = vector.broadcast %1 : vector<1x32xf32> to vector<2x32xf32>
    %85 = arith.addf %83, %84 : vector<2x32xf32>
    %cst_58 = arith.constant 0.000000e+00 : f32
    %86 = vector.broadcast %cst_58 : f32 to vector<2x32xf32>
    %87 = arith.maximumf %85, %86 : vector<2x32xf32>
    %cst_59 = arith.constant dense<0.000000e+00> : vector<2x32xf32>
    %88 = tpu.matmul %87, %2, %cst_59 {dimension_numbers = #tpu.dot_dimension_numbers<[1], [0], [0], [1], [0, 0, 1, 1], [], []>} : vector<2x32xf32>, vector<32x32xf32>, vector<2x32xf32> -> vector<2x32xf32>
    %89 = vector.broadcast %3 : vector<1x32xf32> to vector<2x32xf32>
    %90 = arith.addf %88, %89 : vector<2x32xf32>
    %cst_60 = arith.constant 0.000000e+00 : f32
    %91 = vector.broadcast %cst_60 : f32 to vector<2x32xf32>
    %92 = arith.maximumf %90, %91 : vector<2x32xf32>
    %cst_61 = arith.constant dense<0.000000e+00> : vector<2x16xf32>
    %93 = tpu.matmul %92, %4, %cst_61 {dimension_numbers = #tpu.dot_dimension_numbers<[1], [0], [0], [1], [0, 0, 1, 1], [], []>} : vector<2x32xf32>, vector<32x16xf32>, vector<2x16xf32> -> vector<2x16xf32>
    %94 = vector.broadcast %5 : vector<1x16xf32> to vector<2x16xf32>
    %95 = arith.addf %93, %94 : vector<2x16xf32>
    %cst_62 = arith.constant 0.000000e+00 : f32
    %96 = vector.broadcast %cst_62 : f32 to vector<2x16xf32>
    %97 = arith.maximumf %95, %96 : vector<2x16xf32>
    %cst_63 = arith.constant dense<0.000000e+00> : vector<2x8xf32>
    %98 = tpu.matmul %97, %6, %cst_63 {dimension_numbers = #tpu.dot_dimension_numbers<[1], [0], [0], [1], [0, 0, 1, 1], [], []>} : vector<2x16xf32>, vector<16x8xf32>, vector<2x8xf32> -> vector<2x8xf32>
    %99 = vector.broadcast %7 : vector<1x8xf32> to vector<2x8xf32>
    %100 = arith.addf %98, %99 : vector<2x8xf32>
    %c3_64 = arith.constant 3 : index
    %c0_65 = arith.constant 0 : index
    %c0_66 = arith.constant 0 : index
    %101 = vector.load %arg10[%c3_64, %c0_65, %c0_66] : memref<10x8x256xf32, #tpu.memory_space<vmem>>, vector<1x8x256xf32>
    %102 = vector.shape_cast %101 : vector<1x8x256xf32> to vector<8x256xf32>
    %cst_67 = arith.constant dense<0.000000e+00> : vector<2x256xf32>
    %103 = tpu.matmul %100, %102, %cst_67 {dimension_numbers = #tpu.dot_dimension_numbers<[1], [0], [0], [1], [0, 0, 1, 1], [], []>} : vector<2x8xf32>, vector<8x256xf32>, vector<2x256xf32> -> vector<2x256xf32>
    %104 = arith.addf %80, %103 : vector<2x256xf32>
    %c4 = arith.constant 4 : index
    %c0_68 = arith.constant 0 : index
    %c0_69 = arith.constant 0 : index
    %105 = vector.load %arg1[%c4, %c0_68, %c0_69] : memref<10x2x17xf32, #tpu.memory_space<vmem>>, vector<1x2x17xf32>
    %106 = vector.shape_cast %105 : vector<1x2x17xf32> to vector<2x17xf32>
    %cst_70 = arith.constant dense<0.000000e+00> : vector<2x32xf32>
    %107 = tpu.matmul %106, %0, %cst_70 {dimension_numbers = #tpu.dot_dimension_numbers<[1], [0], [0], [1], [0, 0, 1, 1], [], []>} : vector<2x17xf32>, vector<17x32xf32>, vector<2x32xf32> -> vector<2x32xf32>
    %108 = vector.broadcast %1 : vector<1x32xf32> to vector<2x32xf32>
    %109 = arith.addf %107, %108 : vector<2x32xf32>
    %cst_71 = arith.constant 0.000000e+00 : f32
    %110 = vector.broadcast %cst_71 : f32 to vector<2x32xf32>
    %111 = arith.maximumf %109, %110 : vector<2x32xf32>
    %cst_72 = arith.constant dense<0.000000e+00> : vector<2x32xf32>
    %112 = tpu.matmul %111, %2, %cst_72 {dimension_numbers = #tpu.dot_dimension_numbers<[1], [0], [0], [1], [0, 0, 1, 1], [], []>} : vector<2x32xf32>, vector<32x32xf32>, vector<2x32xf32> -> vector<2x32xf32>
    %113 = vector.broadcast %3 : vector<1x32xf32> to vector<2x32xf32>
    %114 = arith.addf %112, %113 : vector<2x32xf32>
    %cst_73 = arith.constant 0.000000e+00 : f32
    %115 = vector.broadcast %cst_73 : f32 to vector<2x32xf32>
    %116 = arith.maximumf %114, %115 : vector<2x32xf32>
    %cst_74 = arith.constant dense<0.000000e+00> : vector<2x16xf32>
    %117 = tpu.matmul %116, %4, %cst_74 {dimension_numbers = #tpu.dot_dimension_numbers<[1], [0], [0], [1], [0, 0, 1, 1], [], []>} : vector<2x32xf32>, vector<32x16xf32>, vector<2x16xf32> -> vector<2x16xf32>
    %118 = vector.broadcast %5 : vector<1x16xf32> to vector<2x16xf32>
    %119 = arith.addf %117, %118 : vector<2x16xf32>
    %cst_75 = arith.constant 0.000000e+00 : f32
    %120 = vector.broadcast %cst_75 : f32 to vector<2x16xf32>
    %121 = arith.maximumf %119, %120 : vector<2x16xf32>
    %cst_76 = arith.constant dense<0.000000e+00> : vector<2x8xf32>
    %122 = tpu.matmul %121, %6, %cst_76 {dimension_numbers = #tpu.dot_dimension_numbers<[1], [0], [0], [1], [0, 0, 1, 1], [], []>} : vector<2x16xf32>, vector<16x8xf32>, vector<2x8xf32> -> vector<2x8xf32>
    %123 = vector.broadcast %7 : vector<1x8xf32> to vector<2x8xf32>
    %124 = arith.addf %122, %123 : vector<2x8xf32>
    %c4_77 = arith.constant 4 : index
    %c0_78 = arith.constant 0 : index
    %c0_79 = arith.constant 0 : index
    %125 = vector.load %arg10[%c4_77, %c0_78, %c0_79] : memref<10x8x256xf32, #tpu.memory_space<vmem>>, vector<1x8x256xf32>
    %126 = vector.shape_cast %125 : vector<1x8x256xf32> to vector<8x256xf32>
    %cst_80 = arith.constant dense<0.000000e+00> : vector<2x256xf32>
    %127 = tpu.matmul %124, %126, %cst_80 {dimension_numbers = #tpu.dot_dimension_numbers<[1], [0], [0], [1], [0, 0, 1, 1], [], []>} : vector<2x8xf32>, vector<8x256xf32>, vector<2x256xf32> -> vector<2x256xf32>
    %128 = arith.addf %104, %127 : vector<2x256xf32>
    %c5 = arith.constant 5 : index
    %c0_81 = arith.constant 0 : index
    %c0_82 = arith.constant 0 : index
    %129 = vector.load %arg1[%c5, %c0_81, %c0_82] : memref<10x2x17xf32, #tpu.memory_space<vmem>>, vector<1x2x17xf32>
    %130 = vector.shape_cast %129 : vector<1x2x17xf32> to vector<2x17xf32>
    %cst_83 = arith.constant dense<0.000000e+00> : vector<2x32xf32>
    %131 = tpu.matmul %130, %0, %cst_83 {dimension_numbers = #tpu.dot_dimension_numbers<[1], [0], [0], [1], [0, 0, 1, 1], [], []>} : vector<2x17xf32>, vector<17x32xf32>, vector<2x32xf32> -> vector<2x32xf32>
    %132 = vector.broadcast %1 : vector<1x32xf32> to vector<2x32xf32>
    %133 = arith.addf %131, %132 : vector<2x32xf32>
    %cst_84 = arith.constant 0.000000e+00 : f32
    %134 = vector.broadcast %cst_84 : f32 to vector<2x32xf32>
    %135 = arith.maximumf %133, %134 : vector<2x32xf32>
    %cst_85 = arith.constant dense<0.000000e+00> : vector<2x32xf32>
    %136 = tpu.matmul %135, %2, %cst_85 {dimension_numbers = #tpu.dot_dimension_numbers<[1], [0], [0], [1], [0, 0, 1, 1], [], []>} : vector<2x32xf32>, vector<32x32xf32>, vector<2x32xf32> -> vector<2x32xf32>
    %137 = vector.broadcast %3 : vector<1x32xf32> to vector<2x32xf32>
    %138 = arith.addf %136, %137 : vector<2x32xf32>
    %cst_86 = arith.constant 0.000000e+00 : f32
    %139 = vector.broadcast %cst_86 : f32 to vector<2x32xf32>
    %140 = arith.maximumf %138, %139 : vector<2x32xf32>
    %cst_87 = arith.constant dense<0.000000e+00> : vector<2x16xf32>
    %141 = tpu.matmul %140, %4, %cst_87 {dimension_numbers = #tpu.dot_dimension_numbers<[1], [0], [0], [1], [0, 0, 1, 1], [], []>} : vector<2x32xf32>, vector<32x16xf32>, vector<2x16xf32> -> vector<2x16xf32>
    %142 = vector.broadcast %5 : vector<1x16xf32> to vector<2x16xf32>
    %143 = arith.addf %141, %142 : vector<2x16xf32>
    %cst_88 = arith.constant 0.000000e+00 : f32
    %144 = vector.broadcast %cst_88 : f32 to vector<2x16xf32>
    %145 = arith.maximumf %143, %144 : vector<2x16xf32>
    %cst_89 = arith.constant dense<0.000000e+00> : vector<2x8xf32>
    %146 = tpu.matmul %145, %6, %cst_89 {dimension_numbers = #tpu.dot_dimension_numbers<[1], [0], [0], [1], [0, 0, 1, 1], [], []>} : vector<2x16xf32>, vector<16x8xf32>, vector<2x8xf32> -> vector<2x8xf32>
    %147 = vector.broadcast %7 : vector<1x8xf32> to vector<2x8xf32>
    %148 = arith.addf %146, %147 : vector<2x8xf32>
    %c5_90 = arith.constant 5 : index
    %c0_91 = arith.constant 0 : index
    %c0_92 = arith.constant 0 : index
    %149 = vector.load %arg10[%c5_90, %c0_91, %c0_92] : memref<10x8x256xf32, #tpu.memory_space<vmem>>, vector<1x8x256xf32>
    %150 = vector.shape_cast %149 : vector<1x8x256xf32> to vector<8x256xf32>
    %cst_93 = arith.constant dense<0.000000e+00> : vector<2x256xf32>
    %151 = tpu.matmul %148, %150, %cst_93 {dimension_numbers = #tpu.dot_dimension_numbers<[1], [0], [0], [1], [0, 0, 1, 1], [], []>} : vector<2x8xf32>, vector<8x256xf32>, vector<2x256xf32> -> vector<2x256xf32>
    %152 = arith.addf %128, %151 : vector<2x256xf32>
    %c6 = arith.constant 6 : index
    %c0_94 = arith.constant 0 : index
    %c0_95 = arith.constant 0 : index
    %153 = vector.load %arg1[%c6, %c0_94, %c0_95] : memref<10x2x17xf32, #tpu.memory_space<vmem>>, vector<1x2x17xf32>
    %154 = vector.shape_cast %153 : vector<1x2x17xf32> to vector<2x17xf32>
    %cst_96 = arith.constant dense<0.000000e+00> : vector<2x32xf32>
    %155 = tpu.matmul %154, %0, %cst_96 {dimension_numbers = #tpu.dot_dimension_numbers<[1], [0], [0], [1], [0, 0, 1, 1], [], []>} : vector<2x17xf32>, vector<17x32xf32>, vector<2x32xf32> -> vector<2x32xf32>
    %156 = vector.broadcast %1 : vector<1x32xf32> to vector<2x32xf32>
    %157 = arith.addf %155, %156 : vector<2x32xf32>
    %cst_97 = arith.constant 0.000000e+00 : f32
    %158 = vector.broadcast %cst_97 : f32 to vector<2x32xf32>
    %159 = arith.maximumf %157, %158 : vector<2x32xf32>
    %cst_98 = arith.constant dense<0.000000e+00> : vector<2x32xf32>
    %160 = tpu.matmul %159, %2, %cst_98 {dimension_numbers = #tpu.dot_dimension_numbers<[1], [0], [0], [1], [0, 0, 1, 1], [], []>} : vector<2x32xf32>, vector<32x32xf32>, vector<2x32xf32> -> vector<2x32xf32>
    %161 = vector.broadcast %3 : vector<1x32xf32> to vector<2x32xf32>
    %162 = arith.addf %160, %161 : vector<2x32xf32>
    %cst_99 = arith.constant 0.000000e+00 : f32
    %163 = vector.broadcast %cst_99 : f32 to vector<2x32xf32>
    %164 = arith.maximumf %162, %163 : vector<2x32xf32>
    %cst_100 = arith.constant dense<0.000000e+00> : vector<2x16xf32>
    %165 = tpu.matmul %164, %4, %cst_100 {dimension_numbers = #tpu.dot_dimension_numbers<[1], [0], [0], [1], [0, 0, 1, 1], [], []>} : vector<2x32xf32>, vector<32x16xf32>, vector<2x16xf32> -> vector<2x16xf32>
    %166 = vector.broadcast %5 : vector<1x16xf32> to vector<2x16xf32>
    %167 = arith.addf %165, %166 : vector<2x16xf32>
    %cst_101 = arith.constant 0.000000e+00 : f32
    %168 = vector.broadcast %cst_101 : f32 to vector<2x16xf32>
    %169 = arith.maximumf %167, %168 : vector<2x16xf32>
    %cst_102 = arith.constant dense<0.000000e+00> : vector<2x8xf32>
    %170 = tpu.matmul %169, %6, %cst_102 {dimension_numbers = #tpu.dot_dimension_numbers<[1], [0], [0], [1], [0, 0, 1, 1], [], []>} : vector<2x16xf32>, vector<16x8xf32>, vector<2x8xf32> -> vector<2x8xf32>
    %171 = vector.broadcast %7 : vector<1x8xf32> to vector<2x8xf32>
    %172 = arith.addf %170, %171 : vector<2x8xf32>
    %c6_103 = arith.constant 6 : index
    %c0_104 = arith.constant 0 : index
    %c0_105 = arith.constant 0 : index
    %173 = vector.load %arg10[%c6_103, %c0_104, %c0_105] : memref<10x8x256xf32, #tpu.memory_space<vmem>>, vector<1x8x256xf32>
    %174 = vector.shape_cast %173 : vector<1x8x256xf32> to vector<8x256xf32>
    %cst_106 = arith.constant dense<0.000000e+00> : vector<2x256xf32>
    %175 = tpu.matmul %172, %174, %cst_106 {dimension_numbers = #tpu.dot_dimension_numbers<[1], [0], [0], [1], [0, 0, 1, 1], [], []>} : vector<2x8xf32>, vector<8x256xf32>, vector<2x256xf32> -> vector<2x256xf32>
    %176 = arith.addf %152, %175 : vector<2x256xf32>
    %c7 = arith.constant 7 : index
    %c0_107 = arith.constant 0 : index
    %c0_108 = arith.constant 0 : index
    %177 = vector.load %arg1[%c7, %c0_107, %c0_108] : memref<10x2x17xf32, #tpu.memory_space<vmem>>, vector<1x2x17xf32>
    %178 = vector.shape_cast %177 : vector<1x2x17xf32> to vector<2x17xf32>
    %cst_109 = arith.constant dense<0.000000e+00> : vector<2x32xf32>
    %179 = tpu.matmul %178, %0, %cst_109 {dimension_numbers = #tpu.dot_dimension_numbers<[1], [0], [0], [1], [0, 0, 1, 1], [], []>} : vector<2x17xf32>, vector<17x32xf32>, vector<2x32xf32> -> vector<2x32xf32>
    %180 = vector.broadcast %1 : vector<1x32xf32> to vector<2x32xf32>
    %181 = arith.addf %179, %180 : vector<2x32xf32>
    %cst_110 = arith.constant 0.000000e+00 : f32
    %182 = vector.broadcast %cst_110 : f32 to vector<2x32xf32>
    %183 = arith.maximumf %181, %182 : vector<2x32xf32>
    %cst_111 = arith.constant dense<0.000000e+00> : vector<2x32xf32>
    %184 = tpu.matmul %183, %2, %cst_111 {dimension_numbers = #tpu.dot_dimension_numbers<[1], [0], [0], [1], [0, 0, 1, 1], [], []>} : vector<2x32xf32>, vector<32x32xf32>, vector<2x32xf32> -> vector<2x32xf32>
    %185 = vector.broadcast %3 : vector<1x32xf32> to vector<2x32xf32>
    %186 = arith.addf %184, %185 : vector<2x32xf32>
    %cst_112 = arith.constant 0.000000e+00 : f32
    %187 = vector.broadcast %cst_112 : f32 to vector<2x32xf32>
    %188 = arith.maximumf %186, %187 : vector<2x32xf32>
    %cst_113 = arith.constant dense<0.000000e+00> : vector<2x16xf32>
    %189 = tpu.matmul %188, %4, %cst_113 {dimension_numbers = #tpu.dot_dimension_numbers<[1], [0], [0], [1], [0, 0, 1, 1], [], []>} : vector<2x32xf32>, vector<32x16xf32>, vector<2x16xf32> -> vector<2x16xf32>
    %190 = vector.broadcast %5 : vector<1x16xf32> to vector<2x16xf32>
    %191 = arith.addf %189, %190 : vector<2x16xf32>
    %cst_114 = arith.constant 0.000000e+00 : f32
    %192 = vector.broadcast %cst_114 : f32 to vector<2x16xf32>
    %193 = arith.maximumf %191, %192 : vector<2x16xf32>
    %cst_115 = arith.constant dense<0.000000e+00> : vector<2x8xf32>
    %194 = tpu.matmul %193, %6, %cst_115 {dimension_numbers = #tpu.dot_dimension_numbers<[1], [0], [0], [1], [0, 0, 1, 1], [], []>} : vector<2x16xf32>, vector<16x8xf32>, vector<2x8xf32> -> vector<2x8xf32>
    %195 = vector.broadcast %7 : vector<1x8xf32> to vector<2x8xf32>
    %196 = arith.addf %194, %195 : vector<2x8xf32>
    %c7_116 = arith.constant 7 : index
    %c0_117 = arith.constant 0 : index
    %c0_118 = arith.constant 0 : index
    %197 = vector.load %arg10[%c7_116, %c0_117, %c0_118] : memref<10x8x256xf32, #tpu.memory_space<vmem>>, vector<1x8x256xf32>
    %198 = vector.shape_cast %197 : vector<1x8x256xf32> to vector<8x256xf32>
    %cst_119 = arith.constant dense<0.000000e+00> : vector<2x256xf32>
    %199 = tpu.matmul %196, %198, %cst_119 {dimension_numbers = #tpu.dot_dimension_numbers<[1], [0], [0], [1], [0, 0, 1, 1], [], []>} : vector<2x8xf32>, vector<8x256xf32>, vector<2x256xf32> -> vector<2x256xf32>
    %200 = arith.addf %176, %199 : vector<2x256xf32>
    %c8 = arith.constant 8 : index
    %c0_120 = arith.constant 0 : index
    %c0_121 = arith.constant 0 : index
    %201 = vector.load %arg1[%c8, %c0_120, %c0_121] : memref<10x2x17xf32, #tpu.memory_space<vmem>>, vector<1x2x17xf32>
    %202 = vector.shape_cast %201 : vector<1x2x17xf32> to vector<2x17xf32>
    %cst_122 = arith.constant dense<0.000000e+00> : vector<2x32xf32>
    %203 = tpu.matmul %202, %0, %cst_122 {dimension_numbers = #tpu.dot_dimension_numbers<[1], [0], [0], [1], [0, 0, 1, 1], [], []>} : vector<2x17xf32>, vector<17x32xf32>, vector<2x32xf32> -> vector<2x32xf32>
    %204 = vector.broadcast %1 : vector<1x32xf32> to vector<2x32xf32>
    %205 = arith.addf %203, %204 : vector<2x32xf32>
    %cst_123 = arith.constant 0.000000e+00 : f32
    %206 = vector.broadcast %cst_123 : f32 to vector<2x32xf32>
    %207 = arith.maximumf %205, %206 : vector<2x32xf32>
    %cst_124 = arith.constant dense<0.000000e+00> : vector<2x32xf32>
    %208 = tpu.matmul %207, %2, %cst_124 {dimension_numbers = #tpu.dot_dimension_numbers<[1], [0], [0], [1], [0, 0, 1, 1], [], []>} : vector<2x32xf32>, vector<32x32xf32>, vector<2x32xf32> -> vector<2x32xf32>
    %209 = vector.broadcast %3 : vector<1x32xf32> to vector<2x32xf32>
    %210 = arith.addf %208, %209 : vector<2x32xf32>
    %cst_125 = arith.constant 0.000000e+00 : f32
    %211 = vector.broadcast %cst_125 : f32 to vector<2x32xf32>
    %212 = arith.maximumf %210, %211 : vector<2x32xf32>
    %cst_126 = arith.constant dense<0.000000e+00> : vector<2x16xf32>
    %213 = tpu.matmul %212, %4, %cst_126 {dimension_numbers = #tpu.dot_dimension_numbers<[1], [0], [0], [1], [0, 0, 1, 1], [], []>} : vector<2x32xf32>, vector<32x16xf32>, vector<2x16xf32> -> vector<2x16xf32>
    %214 = vector.broadcast %5 : vector<1x16xf32> to vector<2x16xf32>
    %215 = arith.addf %213, %214 : vector<2x16xf32>
    %cst_127 = arith.constant 0.000000e+00 : f32
    %216 = vector.broadcast %cst_127 : f32 to vector<2x16xf32>
    %217 = arith.maximumf %215, %216 : vector<2x16xf32>
    %cst_128 = arith.constant dense<0.000000e+00> : vector<2x8xf32>
    %218 = tpu.matmul %217, %6, %cst_128 {dimension_numbers = #tpu.dot_dimension_numbers<[1], [0], [0], [1], [0, 0, 1, 1], [], []>} : vector<2x16xf32>, vector<16x8xf32>, vector<2x8xf32> -> vector<2x8xf32>
    %219 = vector.broadcast %7 : vector<1x8xf32> to vector<2x8xf32>
    %220 = arith.addf %218, %219 : vector<2x8xf32>
    %c8_129 = arith.constant 8 : index
    %c0_130 = arith.constant 0 : index
    %c0_131 = arith.constant 0 : index
    %221 = vector.load %arg10[%c8_129, %c0_130, %c0_131] : memref<10x8x256xf32, #tpu.memory_space<vmem>>, vector<1x8x256xf32>
    %222 = vector.shape_cast %221 : vector<1x8x256xf32> to vector<8x256xf32>
    %cst_132 = arith.constant dense<0.000000e+00> : vector<2x256xf32>
    %223 = tpu.matmul %220, %222, %cst_132 {dimension_numbers = #tpu.dot_dimension_numbers<[1], [0], [0], [1], [0, 0, 1, 1], [], []>} : vector<2x8xf32>, vector<8x256xf32>, vector<2x256xf32> -> vector<2x256xf32>
    %224 = arith.addf %200, %223 : vector<2x256xf32>
    %c9 = arith.constant 9 : index
    %c0_133 = arith.constant 0 : index
    %c0_134 = arith.constant 0 : index
    %225 = vector.load %arg1[%c9, %c0_133, %c0_134] : memref<10x2x17xf32, #tpu.memory_space<vmem>>, vector<1x2x17xf32>
    %226 = vector.shape_cast %225 : vector<1x2x17xf32> to vector<2x17xf32>
    %cst_135 = arith.constant dense<0.000000e+00> : vector<2x32xf32>
    %227 = tpu.matmul %226, %0, %cst_135 {dimension_numbers = #tpu.dot_dimension_numbers<[1], [0], [0], [1], [0, 0, 1, 1], [], []>} : vector<2x17xf32>, vector<17x32xf32>, vector<2x32xf32> -> vector<2x32xf32>
    %228 = vector.broadcast %1 : vector<1x32xf32> to vector<2x32xf32>
    %229 = arith.addf %227, %228 : vector<2x32xf32>
    %cst_136 = arith.constant 0.000000e+00 : f32
    %230 = vector.broadcast %cst_136 : f32 to vector<2x32xf32>
    %231 = arith.maximumf %229, %230 : vector<2x32xf32>
    %cst_137 = arith.constant dense<0.000000e+00> : vector<2x32xf32>
    %232 = tpu.matmul %231, %2, %cst_137 {dimension_numbers = #tpu.dot_dimension_numbers<[1], [0], [0], [1], [0, 0, 1, 1], [], []>} : vector<2x32xf32>, vector<32x32xf32>, vector<2x32xf32> -> vector<2x32xf32>
    %233 = vector.broadcast %3 : vector<1x32xf32> to vector<2x32xf32>
    %234 = arith.addf %232, %233 : vector<2x32xf32>
    %cst_138 = arith.constant 0.000000e+00 : f32
    %235 = vector.broadcast %cst_138 : f32 to vector<2x32xf32>
    %236 = arith.maximumf %234, %235 : vector<2x32xf32>
    %cst_139 = arith.constant dense<0.000000e+00> : vector<2x16xf32>
    %237 = tpu.matmul %236, %4, %cst_139 {dimension_numbers = #tpu.dot_dimension_numbers<[1], [0], [0], [1], [0, 0, 1, 1], [], []>} : vector<2x32xf32>, vector<32x16xf32>, vector<2x16xf32> -> vector<2x16xf32>
    %238 = vector.broadcast %5 : vector<1x16xf32> to vector<2x16xf32>
    %239 = arith.addf %237, %238 : vector<2x16xf32>
    %cst_140 = arith.constant 0.000000e+00 : f32
    %240 = vector.broadcast %cst_140 : f32 to vector<2x16xf32>
    %241 = arith.maximumf %239, %240 : vector<2x16xf32>
    %cst_141 = arith.constant dense<0.000000e+00> : vector<2x8xf32>
    %242 = tpu.matmul %241, %6, %cst_141 {dimension_numbers = #tpu.dot_dimension_numbers<[1], [0], [0], [1], [0, 0, 1, 1], [], []>} : vector<2x16xf32>, vector<16x8xf32>, vector<2x8xf32> -> vector<2x8xf32>
    %243 = vector.broadcast %7 : vector<1x8xf32> to vector<2x8xf32>
    %244 = arith.addf %242, %243 : vector<2x8xf32>
    %c9_142 = arith.constant 9 : index
    %c0_143 = arith.constant 0 : index
    %c0_144 = arith.constant 0 : index
    %245 = vector.load %arg10[%c9_142, %c0_143, %c0_144] : memref<10x8x256xf32, #tpu.memory_space<vmem>>, vector<1x8x256xf32>
    %246 = vector.shape_cast %245 : vector<1x8x256xf32> to vector<8x256xf32>
    %cst_145 = arith.constant dense<0.000000e+00> : vector<2x256xf32>
    %247 = tpu.matmul %244, %246, %cst_145 {dimension_numbers = #tpu.dot_dimension_numbers<[1], [0], [0], [1], [0, 0, 1, 1], [], []>} : vector<2x8xf32>, vector<8x256xf32>, vector<2x256xf32> -> vector<2x256xf32>
    %248 = arith.addf %224, %247 : vector<2x256xf32>
    %c0_146 = arith.constant 0 : index
    %c0_147 = arith.constant 0 : index
    %249 = vector.load %arg11[%c0_146, %c0_147] : memref<1x256xf32, #tpu.memory_space<vmem>>, vector<1x256xf32>
    %250 = vector.broadcast %249 : vector<1x256xf32> to vector<2x256xf32>
    %251 = arith.addf %248, %250 : vector<2x256xf32>
    %cst_148 = arith.constant 0.000000e+00 : f32
    %252 = vector.broadcast %cst_148 : f32 to vector<2x256xf32>
    %253 = arith.maximumf %251, %252 : vector<2x256xf32>
    %c0_149 = arith.constant 0 : index
    %c0_150 = arith.constant 0 : index
    %254 = vector.load %arg12[%c0_149, %c0_150] : memref<256x128xf32, #tpu.memory_space<vmem>>, vector<256x128xf32>
    %cst_151 = arith.constant dense<0.000000e+00> : vector<2x128xf32>
    %255 = tpu.matmul %253, %254, %cst_151 {dimension_numbers = #tpu.dot_dimension_numbers<[1], [0], [0], [1], [0, 0, 1, 1], [], []>} : vector<2x256xf32>, vector<256x128xf32>, vector<2x128xf32> -> vector<2x128xf32>
    %c0_152 = arith.constant 0 : index
    %c0_153 = arith.constant 0 : index
    %256 = vector.load %arg13[%c0_152, %c0_153] : memref<1x128xf32, #tpu.memory_space<vmem>>, vector<1x128xf32>
    %257 = vector.broadcast %256 : vector<1x128xf32> to vector<2x128xf32>
    %258 = arith.addf %255, %257 : vector<2x128xf32>
    %cst_154 = arith.constant 0.000000e+00 : f32
    %259 = vector.broadcast %cst_154 : f32 to vector<2x128xf32>
    %260 = arith.maximumf %258, %259 : vector<2x128xf32>
    %c0_155 = arith.constant 0 : index
    %c0_156 = arith.constant 0 : index
    %261 = vector.load %arg14[%c0_155, %c0_156] : memref<128x64xf32, #tpu.memory_space<vmem>>, vector<128x64xf32>
    %cst_157 = arith.constant dense<0.000000e+00> : vector<2x64xf32>
    %262 = tpu.matmul %260, %261, %cst_157 {dimension_numbers = #tpu.dot_dimension_numbers<[1], [0], [0], [1], [0, 0, 1, 1], [], []>} : vector<2x128xf32>, vector<128x64xf32>, vector<2x64xf32> -> vector<2x64xf32>
    %c0_158 = arith.constant 0 : index
    %c0_159 = arith.constant 0 : index
    %263 = vector.load %arg15[%c0_158, %c0_159] : memref<1x64xf32, #tpu.memory_space<vmem>>, vector<1x64xf32>
    %264 = vector.broadcast %263 : vector<1x64xf32> to vector<2x64xf32>
    %265 = arith.addf %262, %264 : vector<2x64xf32>
    %cst_160 = arith.constant 0.000000e+00 : f32
    %266 = vector.broadcast %cst_160 : f32 to vector<2x64xf32>
    %267 = arith.maximumf %265, %266 : vector<2x64xf32>
    %c0_161 = arith.constant 0 : index
    %c0_162 = arith.constant 0 : index
    %268 = vector.load %arg16[%c0_161, %c0_162] : memref<64x128xf32, #tpu.memory_space<vmem>>, vector<64x128xf32>
    %cst_163 = arith.constant dense<0.000000e+00> : vector<2x128xf32>
    %269 = tpu.matmul %267, %268, %cst_163 {dimension_numbers = #tpu.dot_dimension_numbers<[1], [0], [0], [1], [0, 0, 1, 1], [], []>} : vector<2x64xf32>, vector<64x128xf32>, vector<2x128xf32> -> vector<2x128xf32>
    %c0_164 = arith.constant 0 : index
    %c0_165 = arith.constant 0 : index
    %270 = vector.load %arg17[%c0_164, %c0_165] : memref<1x128xf32, #tpu.memory_space<vmem>>, vector<1x128xf32>
    %271 = vector.broadcast %270 : vector<1x128xf32> to vector<2x128xf32>
    %272 = arith.addf %269, %271 : vector<2x128xf32>
    %c0_166 = arith.constant 0 : index
    %c0_167 = arith.constant 0 : index
    %273 = vector.load %arg18[%c0_166, %c0_167] : memref<2x128xf32, #tpu.memory_space<vmem>>, vector<2x128xf32>
    tpu.vector_store %arg18[%c0_166, %c0_167], %272 {strides = array<i32>} : memref<2x128xf32, #tpu.memory_space<vmem>>, vector<2x128xf32>,
    return
  }
  func.func @transform_0(%arg0: i32) -> (i32, i32, i32) {
    %c0_i32 = arith.constant 0 : i32
    %c0_i32_0 = arith.constant 0 : i32
    %c0_i32_1 = arith.constant 0 : i32
    return %c0_i32, %arg0, %c0_i32_0 : i32, i32, i32
  }
  func.func @transform_1(%arg0: i32) -> (i32, i32) {
    %c0_i32 = arith.constant 0 : i32
    %c0_i32_0 = arith.constant 0 : i32
    %c0_i32_1 = arith.constant 0 : i32
    return %c0_i32, %c0_i32_0 : i32, i32
  }
  func.func @transform_2(%arg0: i32) -> (i32, i32) {
    %c0_i32 = arith.constant 0 : i32
    %c0_i32_0 = arith.constant 0 : i32
    %c0_i32_1 = arith.constant 0 : i32
    return %c0_i32, %c0_i32_0 : i32, i32
  }
  func.func @transform_3(%arg0: i32) -> (i32, i32) {
    %c0_i32 = arith.constant 0 : i32
    %c0_i32_0 = arith.constant 0 : i32
    %c0_i32_1 = arith.constant 0 : i32
    return %c0_i32, %c0_i32_0 : i32, i32
  }
  func.func @transform_4(%arg0: i32) -> (i32, i32) {
    %c0_i32 = arith.constant 0 : i32
    %c0_i32_0 = arith.constant 0 : i32
    %c0_i32_1 = arith.constant 0 : i32
    return %c0_i32, %c0_i32_0 : i32, i32
  }
  func.func @transform_5(%arg0: i32) -> (i32, i32) {
    %c0_i32 = arith.constant 0 : i32
    %c0_i32_0 = arith.constant 0 : i32
    %c0_i32_1 = arith.constant 0 : i32
    return %c0_i32, %c0_i32_0 : i32, i32
  }
  func.func @transform_6(%arg0: i32) -> (i32, i32) {
    %c0_i32 = arith.constant 0 : i32
    %c0_i32_0 = arith.constant 0 : i32
    %c0_i32_1 = arith.constant 0 : i32
    return %c0_i32, %c0_i32_0 : i32, i32
  }
  func.func @transform_7(%arg0: i32) -> (i32, i32) {
    %c0_i32 = arith.constant 0 : i32
    %c0_i32_0 = arith.constant 0 : i32
    %c0_i32_1 = arith.constant 0 : i32
    return %c0_i32, %c0_i32_0 : i32, i32
  }
  func.func @transform_8(%arg0: i32) -> (i32, i32) {
    %c0_i32 = arith.constant 0 : i32
    %c0_i32_0 = arith.constant 0 : i32
    %c0_i32_1 = arith.constant 0 : i32
    return %c0_i32, %c0_i32_0 : i32, i32
  }
  func.func @transform_9(%arg0: i32) -> (i32, i32, i32) {
    %c0_i32 = arith.constant 0 : i32
    %c0_i32_0 = arith.constant 0 : i32
    %c0_i32_1 = arith.constant 0 : i32
    %c0_i32_2 = arith.constant 0 : i32
    return %c0_i32, %c0_i32_0, %c0_i32_1 : i32, i32, i32
  }
  func.func @transform_10(%arg0: i32) -> (i32, i32) {
    %c0_i32 = arith.constant 0 : i32
    %c0_i32_0 = arith.constant 0 : i32
    %c0_i32_1 = arith.constant 0 : i32
    return %c0_i32, %c0_i32_0 : i32, i32
  }
  func.func @transform_11(%arg0: i32) -> (i32, i32) {
    %c0_i32 = arith.constant 0 : i32
    %c0_i32_0 = arith.constant 0 : i32
    %c0_i32_1 = arith.constant 0 : i32
    return %c0_i32, %c0_i32_0 : i32, i32
  }
  func.func @transform_12(%arg0: i32) -> (i32, i32) {
    %c0_i32 = arith.constant 0 : i32
    %c0_i32_0 = arith.constant 0 : i32
    %c0_i32_1 = arith.constant 0 : i32
    return %c0_i32, %c0_i32_0 : i32, i32
  }
  func.func @transform_13(%arg0: i32) -> (i32, i32) {
    %c0_i32 = arith.constant 0 : i32
    %c0_i32_0 = arith.constant 0 : i32
    %c0_i32_1 = arith.constant 0 : i32
    return %c0_i32, %c0_i32_0 : i32, i32
  }
  func.func @transform_14(%arg0: i32) -> (i32, i32) {
    %c0_i32 = arith.constant 0 : i32
    %c0_i32_0 = arith.constant 0 : i32
    %c0_i32_1 = arith.constant 0 : i32
    return %c0_i32, %c0_i32_0 : i32, i32
  }
  func.func @transform_15(%arg0: i32) -> (i32, i32) {
    %c0_i32 = arith.constant 0 : i32
    %c0_i32_0 = arith.constant 0 : i32
    %c0_i32_1 = arith.constant 0 : i32
    return %c0_i32, %c0_i32_0 : i32, i32
  }
  func.func @transform_16(%arg0: i32) -> (i32, i32) {
    %c0_i32 = arith.constant 0 : i32
    %c0_i32_0 = arith.constant 0 : i32
    %c0_i32_1 = arith.constant 0 : i32
    return %c0_i32, %c0_i32_0 : i32, i32
  }
  func.func @transform_17(%arg0: i32) -> (i32, i32) {
    %c0_i32 = arith.constant 0 : i32
    %c0_i32_0 = arith.constant 0 : i32
    return %arg0, %c0_i32 : i32, i32
  }
}

</mosaic_0001>

<llo_original>
// kernel: dqn_forward.1
$region0: #{dqn_forward.1}
  #allocation0 [shape = 'u32[]', space=smem, size = 0x4, offset = 0x4, fixed_abs, tag = 'smem constant byte address 0x4 - core index']
  #allocation1 [shape = 'u32[144,128]{1,0:T(1,128)}', space=vmem, size = 0x12000, scoped, tag = 'internal scratch']
  %s0 = inlined_call_operand.vmem [shape: f32[10,2,17], index: 0, kind: input, shape index: {}]
  %s1 = inlined_call_operand.hbm [shape: f32[17,32], index: 1, kind: input, shape index: {}]
  %s2 = inlined_call_operand.vmem [shape: f32[1,32], index: 2, kind: input, shape index: {}]
  %s3 = inlined_call_operand.hbm [shape: f32[32,32], index: 3, kind: input, shape index: {}]
  %s4 = inlined_call_operand.vmem [shape: f32[1,32], index: 4, kind: input, shape index: {}]
  %s5 = inlined_call_operand.vmem [shape: f32[32,16], index: 5, kind: input, shape index: {}]
  %s6 = inlined_call_operand.vmem [shape: f32[1,16], index: 6, kind: input, shape index: {}]
  %s7 = inlined_call_operand.vmem [shape: f32[16,8], index: 7, kind: input, shape index: {}]
  %s8 = inlined_call_operand.vmem [shape: f32[1,8], index: 8, kind: input, shape index: {}]
  %s9 = inlined_call_operand.hbm [shape: f32[10,8,256], index: 9, kind: input, shape index: {}]
  %s10 = inlined_call_operand.vmem [shape: f32[1,256], index: 10, kind: input, shape index: {}]
  %s11 = inlined_call_operand.vmem [shape: f32[256,128], index: 11, kind: input, shape index: {}]
  %s12 = inlined_call_operand.vmem [shape: f32[1,128], index: 12, kind: input, shape index: {}]
  %s13 = inlined_call_operand.vmem [shape: f32[128,64], index: 13, kind: input, shape index: {}]
  %s14 = inlined_call_operand.vmem [shape: f32[1,64], index: 14, kind: input, shape index: {}]
  %s15 = inlined_call_operand.vmem [shape: f32[64,128], index: 15, kind: input, shape index: {}]
  %s16 = inlined_call_operand.vmem [shape: f32[1,128], index: 16, kind: input, shape index: {}]
  %s17 = inlined_call_operand.hbm [shape: f32[2,128], index: 17, kind: output, shape index: {}]
  %s18 = sld [smem:[#allocation0]]
  $region90: #{dqn_forward.1} parent=0
    _
  %s20 = ssub.s32 1, %s18
  %s21 = scalar_select 0, %s20, %s18
  $region1: #{dqn_forward.1} parent=0
    #allocation2 [shape = 'u8[12288]{0}', space=vmem, size = 0x3000, scoped, tag = 'input window, operand 1, single buffered']
    #allocation3 [shape = 's32[1]{0}', space=sflag, size = 0x4, scoped, tag = 'scoped memory for dqn_forward.1']
    #allocation4 [shape = 's32[1]{0}', space=sflag, size = 0x4, scoped, tag = 'scoped memory for dqn_forward.1']
    #allocation5 [shape = 'u8[16384]{0}', space=vmem, size = 0x4000, scoped, tag = 'input window, operand 3, single buffered']
    #allocation6 [shape = 's32[1]{0}', space=sflag, size = 0x4, scoped, tag = 'scoped memory for dqn_forward.1']
    #allocation7 [shape = 'u8[81920]{0}', space=vmem, size = 0x14000, scoped, tag = 'input window, operand 9, single buffered']
    #allocation8 [shape = 'u8[1024]{0}', space=vmem, size = 0x400, scoped, tag = 'output window, operand 0, single buffered']
    %22 = vsyncpa [#allocation3], 0
    %23 = vsyncpa [#allocation6], 0
    %24 = vsyncpa [#allocation4], 0
    // Predicated region
    $region2: #{dqn_forward.1} parent=1 // pred_check
      _
    $region3: #{dqn_forward.1} parent=1 // pred_check_branch
      %26 = sbr.rel (0) target = $region5
    $region4: #{dqn_forward.1} parent=1 // pred_region
      _
    $region5: #{dqn_forward.1} parent=1 // pred_fallthru
      _
    // Predicated region
    $region6: #{dqn_forward.1} parent=1 // pred_check
      _
    $region7: #{dqn_forward.1} parent=1 // pred_check_branch
      %28 = sbr.rel (0) target = $region9
    $region8: #{dqn_forward.1} parent=1 // pred_region
      %s30 = ssub.s32 384, 384
      %31 = vsyncadd [#allocation3], %s30
      %s32 = sshll.u32 [#allocation2], 4
      %s33 = int_to_ptr.vmem [resolvable:$true] %s32
      %38 = dma.hbm_to_vmem [thread:$0]  %s1, 384, %s33, [#allocation3], 128, 128, 8
    $region9: #{dqn_forward.1} parent=1 // pred_fallthru
      _
    // Predicated region
    $region10: #{dqn_forward.1} parent=1 // pred_check
      _
    $region11: #{dqn_forward.1} parent=1 // pred_check_branch
      %40 = sbr.rel (0) target = $region13
    $region12: #{dqn_forward.1} parent=1 // pred_region
      _
    $region13: #{dqn_forward.1} parent=1 // pred_fallthru
      _
    // Predicated region
    $region14: #{dqn_forward.1} parent=1 // pred_check
      _
    $region15: #{dqn_forward.1} parent=1 // pred_check_branch
      %42 = sbr.rel (0) target = $region17
    $region16: #{dqn_forward.1} parent=1 // pred_region
      %s44 = ssub.s32 512, 512
      %45 = vsyncadd [#allocation6], %s44
      %s46 = sshll.u32 [#allocation5], 4
      %s47 = int_to_ptr.vmem [resolvable:$true] %s46
      %52 = dma.hbm_to_vmem [thread:$0]  %s3, 512, %s47, [#allocation6], 128, 128, 8
    $region17: #{dqn_forward.1} parent=1 // pred_fallthru
      _
    // Predicated region
    $region18: #{dqn_forward.1} parent=1 // pred_check
      _
    $region19: #{dqn_forward.1} parent=1 // pred_check_branch
      %54 = sbr.rel (0) target = $region21
    $region20: #{dqn_forward.1} parent=1 // pred_region
      _
    $region21: #{dqn_forward.1} parent=1 // pred_fallthru
      _
    // Predicated region
    $region22: #{dqn_forward.1} parent=1 // pred_check
      _
    $region23: #{dqn_forward.1} parent=1 // pred_check_branch
      %56 = sbr.rel (0) target = $region25
    $region24: #{dqn_forward.1} parent=1 // pred_region
      _
    $region25: #{dqn_forward.1} parent=1 // pred_fallthru
      _
    // Predicated region
    $region26: #{dqn_forward.1} parent=1 // pred_check
      _
    $region27: #{dqn_forward.1} parent=1 // pred_check_branch
      %58 = sbr.rel (0) target = $region29
    $region28: #{dqn_forward.1} parent=1 // pred_region
      _
    $region29: #{dqn_forward.1} parent=1 // pred_fallthru
      _
    // Predicated region
    $region30: #{dqn_forward.1} parent=1 // pred_check
      _
    $region31: #{dqn_forward.1} parent=1 // pred_check_branch
      %60 = sbr.rel (0) target = $region33
    $region32: #{dqn_forward.1} parent=1 // pred_region
      _
    $region33: #{dqn_forward.1} parent=1 // pred_fallthru
      _
    // Predicated region
    $region34: #{dqn_forward.1} parent=1 // pred_check
      _
    $region35: #{dqn_forward.1} parent=1 // pred_check_branch
      %62 = sbr.rel (0) target = $region37
    $region36: #{dqn_forward.1} parent=1 // pred_region
      _
    $region37: #{dqn_forward.1} parent=1 // pred_fallthru
      _
    // Predicated region
    $region38: #{dqn_forward.1} parent=1 // pred_check
      _
    $region39: #{dqn_forward.1} parent=1 // pred_check_branch
      %64 = sbr.rel (0) target = $region41
    $region40: #{dqn_forward.1} parent=1 // pred_region
      %s66 = ssub.s32 2560, 2560
      %67 = vsyncadd [#allocation6], %s66
      %s68 = sshll.u32 [#allocation7], 4
      %s69 = int_to_ptr.vmem [resolvable:$true] %s68
      %74 = dma.hbm_to_vmem [thread:$0]  %s9, 2560, %s69, [#allocation6], 256, 256, 16
    $region41: #{dqn_forward.1} parent=1 // pred_fallthru
      _
    // Predicated region
    $region42: #{dqn_forward.1} parent=1 // pred_check
      _
    $region43: #{dqn_forward.1} parent=1 // pred_check_branch
      %76 = sbr.rel (0) target = $region45
    $region44: #{dqn_forward.1} parent=1 // pred_region
      _
    $region45: #{dqn_forward.1} parent=1 // pred_fallthru
      _
    // Predicated region
    $region46: #{dqn_forward.1} parent=1 // pred_check
      _
    $region47: #{dqn_forward.1} parent=1 // pred_check_branch
      %78 = sbr.rel (0) target = $region49
    $region48: #{dqn_forward.1} parent=1 // pred_region
      _
    $region49: #{dqn_forward.1} parent=1 // pred_fallthru
      _
    // Predicated region
    $region50: #{dqn_forward.1} parent=1 // pred_check
      _
    $region51: #{dqn_forward.1} parent=1 // pred_check_branch
      %80 = sbr.rel (0) target = $region53
    $region52: #{dqn_forward.1} parent=1 // pred_region
      _
    $region53: #{dqn_forward.1} parent=1 // pred_fallthru
      _
    // Predicated region
    $region54: #{dqn_forward.1} parent=1 // pred_check
      _
    $region55: #{dqn_forward.1} parent=1 // pred_check_branch
      %82 = sbr.rel (0) target = $region57
    $region56: #{dqn_forward.1} parent=1 // pred_region
      _
    $region57: #{dqn_forward.1} parent=1 // pred_fallthru
      _
    // Predicated region
    $region58: #{dqn_forward.1} parent=1 // pred_check
      _
    $region59: #{dqn_forward.1} parent=1 // pred_check_branch
      %84 = sbr.rel (0) target = $region61
    $region60: #{dqn_forward.1} parent=1 // pred_region
      _
    $region61: #{dqn_forward.1} parent=1 // pred_fallthru
      _
    // Predicated region
    $region62: #{dqn_forward.1} parent=1 // pred_check
      _
    $region63: #{dqn_forward.1} parent=1 // pred_check_branch
      %86 = sbr.rel (0) target = $region65
    $region64: #{dqn_forward.1} parent=1 // pred_region
      _
    $region65: #{dqn_forward.1} parent=1 // pred_fallthru
      _
    // Predicated region
    $region66: #{dqn_forward.1} parent=1 // pred_check
      _
    $region67: #{dqn_forward.1} parent=1 // pred_check_branch
      %88 = sbr.rel (0) target = $region69
    $region68: #{dqn_forward.1} parent=1 // pred_region
      _
    $region69: #{dqn_forward.1} parent=1 // pred_fallthru
      _
    // Predicated region
    $region70: #{dqn_forward.1} parent=1 // pred_check
      _
    $region71: #{dqn_forward.1} parent=1 // pred_check_branch
      %90 = sbr.rel (0) target = $region73
    $region72: #{dqn_forward.1} parent=1 // pred_region
      %91 = dma.done [#allocation3], 384
    $region73: #{dqn_forward.1} parent=1 // pred_fallthru
      _
    // Predicated region
    $region74: #{dqn_forward.1} parent=1 // pred_check
      _
    $region75: #{dqn_forward.1} parent=1 // pred_check_branch
      %93 = sbr.rel (0) target = $region77
    $region76: #{dqn_forward.1} parent=1 // pred_region
      %94 = dma.done [#allocation6], 512
    $region77: #{dqn_forward.1} parent=1 // pred_fallthru
      _
    // Predicated region
    $region78: #{dqn_forward.1} parent=1 // pred_check
      _
    $region79: #{dqn_forward.1} parent=1 // pred_check_branch
      %96 = sbr.rel (0) target = $region81
    $region80: #{dqn_forward.1} parent=1 // pred_region
      %97 = dma.done [#allocation6], 2560
    $region81: #{dqn_forward.1} parent=1 // pred_fallthru
      _
    %v98 = vld [vmem:[#allocation2] sm:$0xff]
    %v99 = vld [vmem:[#allocation2 + $0x8] sm:$0xff]
    %v100 = vld [vmem:[#allocation2 + $0x10] sm:$0x1]
    %v101 = vld [vmem:[%s2] sm:$0x1]
    %v102 = vld [vmem:[#allocation5] sm:$0xff]
    %v103 = vld [vmem:[#allocation5 + $0x8] sm:$0xff]
    %v104 = vld [vmem:[#allocation5 + $0x10] sm:$0xff]
    %v105 = vld [vmem:[#allocation5 + $0x18] sm:$0xff]
    %v106 = vld [vmem:[%s4] sm:$0x1]
    %v107 = vld [vmem:[%s5] sm:$0xff]
    %v108 = vld [vmem:[%s5 + $0x8] sm:$0xff]
    %v109 = vld [vmem:[%s5 + $0x10] sm:$0xff]
    %v110 = vld [vmem:[%s5 + $0x18] sm:$0xff]
    %v111 = vld [vmem:[%s6] sm:$0x1]
    %v112 = vld [vmem:[%s7] sm:$0xff]
    %v113 = vld [vmem:[%s7 + $0x8] sm:$0xff]
    %v114 = vld [vmem:[%s8] sm:$0x1]
    %v115 = vld [vmem:[%s0] sm:$0x3]
    %v117 = vlaneseq
    %v118 = vshrl.u32 %v117, 7
    %v119 = vsub.s32 0, %v118
    %v120 = vrot.slane %v101, %v119
    %vm122 = vcmask 138240
    %v124 = vsel %vm122, %v115, 0
    %vm126 = vcmask 1040384
    %v128 = vsel %vm126, %v100, 0
    %130 = vmatprep.subr.mxu0 0.0
    %131 = vmatpush1.msra.mxu0 0.0
    %132 = vmatprep.subr.mxu0 0.0
    %133 = vmatpush1.msra.mxu0 0.0
    %134 = vmatprep.subr.mxu0 0.0
    %135 = vmatpush1.msra.mxu0 0.0
    %136 = vmatprep.subr.mxu0 0.0
    %137 = vmatpush1.msra.mxu0 0.0
    %138 = vmatprep.subr.mxu0 0.0
    %139 = vmatpush1.msra.mxu0 0.0
    %140 = vmatprep.subr.mxu0 0.0
    %141 = vmatpush1.msra.mxu0 0.0
    %142 = vmatprep.subr.mxu0 0.0
    %143 = vmatpush1.msra.mxu0 0.0
    %144 = vmatprep.subr.mxu0 0.0
    %145 = vmatpush1.msra.mxu0 0.0
    %146 = vmatprep.subr.mxu0 0.0
    %147 = vmatpush1.msra.mxu0 0.0
    %148 = vmatprep.subr.mxu0 0.0
    %149 = vmatpush1.msra.mxu0 0.0
    %150 = vmatprep.subr.mxu0 0.0
    %151 = vmatpush1.msra.mxu0 0.0
    %152 = vmatprep.subr.mxu0 0.0
    %153 = vmatpush1.msra.mxu0 0.0
    %154 = vmatprep.subr.mxu0 0.0
    %155 = vmatpush1.msra.mxu0 0.0
    %156 = vmatprep.subr.mxu0 0.0
    %157 = vmatpush1.msra.mxu0 %v128
    %158 = vmatprep.subr.mxu0 0.0
    %159 = vmatpush1.msra.mxu0 %v99
    %160 = vmatprep.subr.mxu0 0.0
    %161 = vmatpush1.msra.mxu0 %v98
    %162 = vmatprep.subr.mxu0 0.0
    %163 = vmatpush2.msra.mxu0 0.0
    %164 = vmatprep.subr.mxu0 0.0
    %165 = vmatpush2.msra.mxu0 0.0
    %166 = vmatprep.subr.mxu0 0.0
    %167 = vmatpush2.msra.mxu0 0.0
    %168 = vmatprep.subr.mxu0 0.0
    %169 = vmatpush2.msra.mxu0 0.0
    %170 = vmatprep.subr.mxu0 0.0
    %171 = vmatpush2.msra.mxu0 0.0
    %172 = vmatprep.subr.mxu0 0.0
    %173 = vmatpush2.msra.mxu0 0.0
    %174 = vmatprep.subr.mxu0 0.0
    %175 = vmatpush2.msra.mxu0 0.0
    %176 = vmatprep.subr.mxu0 0.0
    %177 = vmatpush2.msra.mxu0 0.0
    %178 = vmatprep.subr.mxu0 0.0
    %179 = vmatpush2.msra.mxu0 0.0
    %180 = vmatprep.subr.mxu0 0.0
    %181 = vmatpush2.msra.mxu0 0.0
    %182 = vmatprep.subr.mxu0 0.0
    %183 = vmatpush2.msra.mxu0 0.0
    %184 = vmatprep.subr.mxu0 0.0
    %185 = vmatpush2.msra.mxu0 0.0
    %186 = vmatprep.subr.mxu0 0.0
    %187 = vmatpush2.msra.mxu0 0.0
    %188 = vmatprep.subr.mxu0 0.0
    %189 = vmatpush2.msra.mxu0 0.0
    %190 = vmatprep.subr.mxu0 0.0
    %191 = vmatpush2.msra.mxu0 0.0
    %192 = vmatprep.subr.mxu0 0.0
    %193 = vmatpush2.msra.mxu0 0.0
    %194 = vmatprep.mubr.f32.mxu0 0.0
    %195 = vmatmul.mubr.f32.gmra.mxu0 %v124
    %v196 = vpop.f32.mrf.mxu0
    %v197 = vadd.f32 %v120, %v196
    %v198 = vpop.f32.mrf.mxu0
    %199 = vdwg.mxu0
    %v200 = vmax.f32 %v197, 0.0
    %v202 = vlaneseq
    %v203 = vshrl.u32 %v202, 7
    %v204 = vsub.s32 0, %v203
    %v205 = vrot.slane %v106, %v204
    %vm207 = vcmask 261120
    %v209 = vsel %vm207, %v200, 0
    %211 = vmatprep.subr.mxu0 0.0
    %212 = vmatpush1.msra.mxu0 0.0
    %213 = vmatprep.subr.mxu0 0.0
    %214 = vmatpush1.msra.mxu0 0.0
    %215 = vmatprep.subr.mxu0 0.0
    %216 = vmatpush1.msra.mxu0 0.0
    %217 = vmatprep.subr.mxu0 0.0
    %218 = vmatpush1.msra.mxu0 0.0
    %219 = vmatprep.subr.mxu0 0.0
    %220 = vmatpush1.msra.mxu0 0.0
    %221 = vmatprep.subr.mxu0 0.0
    %222 = vmatpush1.msra.mxu0 0.0
    %223 = vmatprep.subr.mxu0 0.0
    %224 = vmatpush1.msra.mxu0 0.0
    %225 = vmatprep.subr.mxu0 0.0
    %226 = vmatpush1.msra.mxu0 0.0
    %227 = vmatprep.subr.mxu0 0.0
    %228 = vmatpush1.msra.mxu0 0.0
    %229 = vmatprep.subr.mxu0 0.0
    %230 = vmatpush1.msra.mxu0 0.0
    %231 = vmatprep.subr.mxu0 0.0
    %232 = vmatpush1.msra.mxu0 0.0
    %233 = vmatprep.subr.mxu0 0.0
    %234 = vmatpush1.msra.mxu0 0.0
    %235 = vmatprep.subr.mxu0 0.0
    %236 = vmatpush1.msra.mxu0 %v105
    %237 = vmatprep.subr.mxu0 0.0
    %238 = vmatpush1.msra.mxu0 %v104
    %239 = vmatprep.subr.mxu0 0.0
    %240 = vmatpush1.msra.mxu0 %v103
    %241 = vmatprep.subr.mxu0 0.0
    %242 = vmatpush1.msra.mxu0 %v102
    %243 = vmatprep.subr.mxu0 0.0
    %244 = vmatpush2.msra.mxu0 0.0
    %245 = vmatprep.subr.mxu0 0.0
    %246 = vmatpush2.msra.mxu0 0.0
    %247 = vmatprep.subr.mxu0 0.0
    %248 = vmatpush2.msra.mxu0 0.0
    %249 = vmatprep.subr.mxu0 0.0
    %250 = vmatpush2.msra.mxu0 0.0
    %251 = vmatprep.subr.mxu0 0.0
    %252 = vmatpush2.msra.mxu0 0.0
    %253 = vmatprep.subr.mxu0 0.0
    %254 = vmatpush2.msra.mxu0 0.0
    %255 = vmatprep.subr.mxu0 0.0
    %256 = vmatpush2.msra.mxu0 0.0
    %257 = vmatprep.subr.mxu0 0.0
    %258 = vmatpush2.msra.mxu0 0.0
    %259 = vmatprep.subr.mxu0 0.0
    %260 = vmatpush2.msra.mxu0 0.0
    %261 = vmatprep.subr.mxu0 0.0
    %262 = vmatpush2.msra.mxu0 0.0
    %263 = vmatprep.subr.mxu0 0.0
    %264 = vmatpush2.msra.mxu0 0.0
    %265 = vmatprep.subr.mxu0 0.0
    %266 = vmatpush2.msra.mxu0 0.0
    %267 = vmatprep.subr.mxu0 0.0
    %268 = vmatpush2.msra.mxu0 0.0
    %269 = vmatprep.subr.mxu0 0.0
    %270 = vmatpush2.msra.mxu0 0.0
    %271 = vmatprep.subr.mxu0 0.0
    %272 = vmatpush2.msra.mxu0 0.0
    %273 = vmatprep.subr.mxu0 0.0
    %274 = vmatpush2.msra.mxu0 0.0
    %275 = vmatprep.mubr.f32.mxu0 0.0
    %276 = vmatmul.mubr.f32.gmra.mxu0 %v209
    %v277 = vpop.f32.mrf.mxu0
    %v278 = vadd.f32 %v205, %v277
    %v279 = vpop.f32.mrf.mxu0
    %280 = vdwg.mxu0
    %v281 = vmax.f32 %v278, 0.0
    %v283 = vlaneseq
    %v284 = vshrl.u32 %v283, 7
    %v285 = vsub.s32 0, %v284
    %v286 = vrot.slane %v111, %v285
    %v289 = vsel %vm207, %v281, 0
    %291 = vmatprep.subr.mxu0 0.0
    %292 = vmatpush1.msra.mxu0 0.0
    %293 = vmatprep.subr.mxu0 0.0
    %294 = vmatpush1.msra.mxu0 0.0
    %295 = vmatprep.subr.mxu0 0.0
    %296 = vmatpush1.msra.mxu0 0.0
    %297 = vmatprep.subr.mxu0 0.0
    %298 = vmatpush1.msra.mxu0 0.0
    %299 = vmatprep.subr.mxu0 0.0
    %300 = vmatpush1.msra.mxu0 0.0
    %301 = vmatprep.subr.mxu0 0.0
    %302 = vmatpush1.msra.mxu0 0.0
    %303 = vmatprep.subr.mxu0 0.0
    %304 = vmatpush1.msra.mxu0 0.0
    %305 = vmatprep.subr.mxu0 0.0
    %306 = vmatpush1.msra.mxu0 0.0
    %307 = vmatprep.subr.mxu0 0.0
    %308 = vmatpush1.msra.mxu0 0.0
    %309 = vmatprep.subr.mxu0 0.0
    %310 = vmatpush1.msra.mxu0 0.0
    %311 = vmatprep.subr.mxu0 0.0
    %312 = vmatpush1.msra.mxu0 0.0
    %313 = vmatprep.subr.mxu0 0.0
    %314 = vmatpush1.msra.mxu0 0.0
    %315 = vmatprep.subr.mxu0 0.0
    %316 = vmatpush1.msra.mxu0 %v110
    %317 = vmatprep.subr.mxu0 0.0
    %318 = vmatpush1.msra.mxu0 %v109
    %319 = vmatprep.subr.mxu0 0.0
    %320 = vmatpush1.msra.mxu0 %v108
    %321 = vmatprep.subr.mxu0 0.0
    %322 = vmatpush1.msra.mxu0 %v107
    %323 = vmatprep.subr.mxu0 0.0
    %324 = vmatpush2.msra.mxu0 0.0
    %325 = vmatprep.subr.mxu0 0.0
    %326 = vmatpush2.msra.mxu0 0.0
    %327 = vmatprep.subr.mxu0 0.0
    %328 = vmatpush2.msra.mxu0 0.0
    %329 = vmatprep.subr.mxu0 0.0
    %330 = vmatpush2.msra.mxu0 0.0
    %331 = vmatprep.subr.mxu0 0.0
    %332 = vmatpush2.msra.mxu0 0.0
    %333 = vmatprep.subr.mxu0 0.0
    %334 = vmatpush2.msra.mxu0 0.0
    %335 = vmatprep.subr.mxu0 0.0
    %336 = vmatpush2.msra.mxu0 0.0
    %337 = vmatprep.subr.mxu0 0.0
    %338 = vmatpush2.msra.mxu0 0.0
    %339 = vmatprep.subr.mxu0 0.0
    %340 = vmatpush2.msra.mxu0 0.0
    %341 = vmatprep.subr.mxu0 0.0
    %342 = vmatpush2.msra.mxu0 0.0
    %343 = vmatprep.subr.mxu0 0.0
    %344 = vmatpush2.msra.mxu0 0.0
    %345 = vmatprep.subr.mxu0 0.0
    %346 = vmatpush2.msra.mxu0 0.0
    %347 = vmatprep.subr.mxu0 0.0
    %348 = vmatpush2.msra.mxu0 0.0
    %349 = vmatprep.subr.mxu0 0.0
    %350 = vmatpush2.msra.mxu0 0.0
    %351 = vmatprep.subr.mxu0 0.0
    %352 = vmatpush2.msra.mxu0 0.0
    %353 = vmatprep.subr.mxu0 0.0
    %354 = vmatpush2.msra.mxu0 0.0
    %355 = vmatprep.mubr.f32.mxu0 0.0
    %356 = vmatmul.mubr.f32.gmra.mxu0 %v289
    %v357 = vpop.f32.mrf.mxu0
    %v358 = vadd.f32 %v286, %v357
    %v359 = vpop.f32.mrf.mxu0
    %360 = vdwg.mxu0
    %v361 = vmax.f32 %v358, 0.0
    %v363 = vlaneseq
    %v364 = vshrl.u32 %v363, 7
    %v365 = vsub.s32 0, %v364
    %v366 = vrot.slane %v114, %v365
    %vm368 = vcmask 130048
    %v370 = vsel %vm368, %v361, 0
    %372 = vmatprep.subr.mxu0 0.0
    %373 = vmatpush1.msra.mxu0 0.0
    %374 = vmatprep.subr.mxu0 0.0
    %375 = vmatpush1.msra.mxu0 0.0
    %376 = vmatprep.subr.mxu0 0.0
    %377 = vmatpush1.msra.mxu0 0.0
    %378 = vmatprep.subr.mxu0 0.0
    %379 = vmatpush1.msra.mxu0 0.0
    %380 = vmatprep.subr.mxu0 0.0
    %381 = vmatpush1.msra.mxu0 0.0
    %382 = vmatprep.subr.mxu0 0.0
    %383 = vmatpush1.msra.mxu0 0.0
    %384 = vmatprep.subr.mxu0 0.0
    %385 = vmatpush1.msra.mxu0 0.0
    %386 = vmatprep.subr.mxu0 0.0
    %387 = vmatpush1.msra.mxu0 0.0
    %388 = vmatprep.subr.mxu0 0.0
    %389 = vmatpush1.msra.mxu0 0.0
    %390 = vmatprep.subr.mxu0 0.0
    %391 = vmatpush1.msra.mxu0 0.0
    %392 = vmatprep.subr.mxu0 0.0
    %393 = vmatpush1.msra.mxu0 0.0
    %394 = vmatprep.subr.mxu0 0.0
    %395 = vmatpush1.msra.mxu0 0.0
    %396 = vmatprep.subr.mxu0 0.0
    %397 = vmatpush1.msra.mxu0 0.0
    %398 = vmatprep.subr.mxu0 0.0
    %399 = vmatpush1.msra.mxu0 0.0
    %400 = vmatprep.subr.mxu0 0.0
    %401 = vmatpush1.msra.mxu0 %v113
    %402 = vmatprep.subr.mxu0 0.0
    %403 = vmatpush1.msra.mxu0 %v112
    %404 = vmatprep.subr.mxu0 0.0
    %405 = vmatpush2.msra.mxu0 0.0
    %406 = vmatprep.subr.mxu0 0.0
    %407 = vmatpush2.msra.mxu0 0.0
    %408 = vmatprep.subr.mxu0 0.0
    %409 = vmatpush2.msra.mxu0 0.0
    %410 = vmatprep.subr.mxu0 0.0
    %411 = vmatpush2.msra.mxu0 0.0
    %412 = vmatprep.subr.mxu0 0.0
    %413 = vmatpush2.msra.mxu0 0.0
    %414 = vmatprep.subr.mxu0 0.0
    %415 = vmatpush2.msra.mxu0 0.0
    %416 = vmatprep.subr.mxu0 0.0
    %417 = vmatpush2.msra.mxu0 0.0
    %418 = vmatprep.subr.mxu0 0.0
    %419 = vmatpush2.msra.mxu0 0.0
    %420 = vmatprep.subr.mxu0 0.0
    %421 = vmatpush2.msra.mxu0 0.0
    %422 = vmatprep.subr.mxu0 0.0
    %423 = vmatpush2.msra.mxu0 0.0
    %424 = vmatprep.subr.mxu0 0.0
    %425 = vmatpush2.msra.mxu0 0.0
    %426 = vmatprep.subr.mxu0 0.0
    %427 = vmatpush2.msra.mxu0 0.0
    %428 = vmatprep.subr.mxu0 0.0
    %429 = vmatpush2.msra.mxu0 0.0
    %430 = vmatprep.subr.mxu0 0.0
    %431 = vmatpush2.msra.mxu0 0.0
    %432 = vmatprep.subr.mxu0 0.0
    %433 = vmatpush2.msra.mxu0 0.0
    %434 = vmatprep.subr.mxu0 0.0
    %435 = vmatpush2.msra.mxu0 0.0
    %436 = vmatprep.mubr.f32.mxu0 0.0
    %437 = vmatmul.mubr.f32.gmra.mxu0 %v370
    %v438 = vpop.f32.mrf.mxu0
    %v439 = vadd.f32 %v366, %v438
    %v440 = vpop.f32.mrf.mxu0
    %441 = vdwg.mxu0
    %v442 = vld [vmem:[#allocation7] sm:$0xff]
    %v443 = vld [vmem:[#allocation7 + $0x8] sm:$0xff]
    %s444 = scalar_lea.vmem %s0, 2
    %v445 = vld [vmem:[%s444] sm:$0x3]
    %v447 = vsel %vm122, %v445, 0
    %449 = vmatprep.subr.mxu0 0.0
    %450 = vmatpush1.msra.mxu0 0.0
    %451 = vmatprep.subr.mxu0 0.0
    %452 = vmatpush1.msra.mxu0 0.0
    %453 = vmatprep.subr.mxu0 0.0
    %454 = vmatpush1.msra.mxu0 0.0
    %455 = vmatprep.subr.mxu0 0.0
    %456 = vmatpush1.msra.mxu0 0.0
    %457 = vmatprep.subr.mxu0 0.0
    %458 = vmatpush1.msra.mxu0 0.0
    %459 = vmatprep.subr.mxu0 0.0
    %460 = vmatpush1.msra.mxu0 0.0
    %461 = vmatprep.subr.mxu0 0.0
    %462 = vmatpush1.msra.mxu0 0.0
    %463 = vmatprep.subr.mxu0 0.0
    %464 = vmatpush1.msra.mxu0 0.0
    %465 = vmatprep.subr.mxu0 0.0
    %466 = vmatpush1.msra.mxu0 0.0
    %467 = vmatprep.subr.mxu0 0.0
    %468 = vmatpush1.msra.mxu0 0.0
    %469 = vmatprep.subr.mxu0 0.0
    %470 = vmatpush1.msra.mxu0 0.0
    %471 = vmatprep.subr.mxu0 0.0
    %472 = vmatpush1.msra.mxu0 0.0
    %473 = vmatprep.subr.mxu0 0.0
    %474 = vmatpush1.msra.mxu0 0.0
    %475 = vmatprep.subr.mxu0 0.0
    %476 = vmatpush1.msra.mxu0 %v128
    %477 = vmatprep.subr.mxu0 0.0
    %478 = vmatpush1.msra.mxu0 %v99
    %479 = vmatprep.subr.mxu0 0.0
    %480 = vmatpush1.msra.mxu0 %v98
    %481 = vmatprep.subr.mxu0 0.0
    %482 = vmatpush2.msra.mxu0 0.0
    %483 = vmatprep.subr.mxu0 0.0
    %484 = vmatpush2.msra.mxu0 0.0
    %485 = vmatprep.subr.mxu0 0.0
    %486 = vmatpush2.msra.mxu0 0.0
    %487 = vmatprep.subr.mxu0 0.0
    %488 = vmatpush2.msra.mxu0 0.0
    %489 = vmatprep.subr.mxu0 0.0
    %490 = vmatpush2.msra.mxu0 0.0
    %491 = vmatprep.subr.mxu0 0.0
    %492 = vmatpush2.msra.mxu0 0.0
    %493 = vmatprep.subr.mxu0 0.0
    %494 = vmatpush2.msra.mxu0 0.0
    %495 = vmatprep.subr.mxu0 0.0
    %496 = vmatpush2.msra.mxu0 0.0
    %497 = vmatprep.subr.mxu0 0.0
    %498 = vmatpush2.msra.mxu0 0.0
    %499 = vmatprep.subr.mxu0 0.0
    %500 = vmatpush2.msra.mxu0 0.0
    %501 = vmatprep.subr.mxu0 0.0
    %502 = vmatpush2.msra.mxu0 0.0
    %503 = vmatprep.subr.mxu0 0.0
    %504 = vmatpush2.msra.mxu0 0.0
    %505 = vmatprep.subr.mxu0 0.0
    %506 = vmatpush2.msra.mxu0 0.0
    %507 = vmatprep.subr.mxu0 0.0
    %508 = vmatpush2.msra.mxu0 0.0
    %509 = vmatprep.subr.mxu0 0.0
    %510 = vmatpush2.msra.mxu0 0.0
    %511 = vmatprep.subr.mxu0 0.0
    %512 = vmatpush2.msra.mxu0 0.0
    %513 = vmatprep.mubr.f32.mxu0 0.0
    %514 = vmatmul.mubr.f32.gmra.mxu0 %v447
    %v515 = vpop.f32.mrf.mxu0
    %v516 = vadd.f32 %v120, %v515
    %v517 = vpop.f32.mrf.mxu0
    %518 = vdwg.mxu0
    %v519 = vmax.f32 %v516, 0.0
    %v521 = vsel %vm207, %v519, 0
    %523 = vmatprep.subr.mxu0 0.0
    %524 = vmatpush1.msra.mxu0 0.0
    %525 = vmatprep.subr.mxu0 0.0
    %526 = vmatpush1.msra.mxu0 0.0
    %527 = vmatprep.subr.mxu0 0.0
    %528 = vmatpush1.msra.mxu0 0.0
    %529 = vmatprep.subr.mxu0 0.0
    %530 = vmatpush1.msra.mxu0 0.0
    %531 = vmatprep.subr.mxu0 0.0
    %532 = vmatpush1.msra.mxu0 0.0
    %533 = vmatprep.subr.mxu0 0.0
    %534 = vmatpush1.msra.mxu0 0.0
    %535 = vmatprep.subr.mxu0 0.0
    %536 = vmatpush1.msra.mxu0 0.0
    %537 = vmatprep.subr.mxu0 0.0
    %538 = vmatpush1.msra.mxu0 0.0
    %539 = vmatprep.subr.mxu0 0.0
    %540 = vmatpush1.msra.mxu0 0.0
    %541 = vmatprep.subr.mxu0 0.0
    %542 = vmatpush1.msra.mxu0 0.0
    %543 = vmatprep.subr.mxu0 0.0
    %544 = vmatpush1.msra.mxu0 0.0
    %545 = vmatprep.subr.mxu0 0.0
    %546 = vmatpush1.msra.mxu0 0.0
    %547 = vmatprep.subr.mxu0 0.0
    %548 = vmatpush1.msra.mxu0 %v105
    %549 = vmatprep.subr.mxu0 0.0
    %550 = vmatpush1.msra.mxu0 %v104
    %551 = vmatprep.subr.mxu0 0.0
    %552 = vmatpush1.msra.mxu0 %v103
    %553 = vmatprep.subr.mxu0 0.0
    %554 = vmatpush1.msra.mxu0 %v102
    %555 = vmatprep.subr.mxu0 0.0
    %556 = vmatpush2.msra.mxu0 0.0
    %557 = vmatprep.subr.mxu0 0.0
    %558 = vmatpush2.msra.mxu0 0.0
    %559 = vmatprep.subr.mxu0 0.0
    %560 = vmatpush2.msra.mxu0 0.0
    %561 = vmatprep.subr.mxu0 0.0
    %562 = vmatpush2.msra.mxu0 0.0
    %563 = vmatprep.subr.mxu0 0.0
    %564 = vmatpush2.msra.mxu0 0.0
    %565 = vmatprep.subr.mxu0 0.0
    %566 = vmatpush2.msra.mxu0 0.0
    %567 = vmatprep.subr.mxu0 0.0
    %568 = vmatpush2.msra.mxu0 0.0
    %569 = vmatprep.subr.mxu0 0.0
    %570 = vmatpush2.msra.mxu0 0.0
    %571 = vmatprep.subr.mxu0 0.0
    %572 = vmatpush2.msra.mxu0 0.0
    %573 = vmatprep.subr.mxu0 0.0
    %574 = vmatpush2.msra.mxu0 0.0
    %575 = vmatprep.subr.mxu0 0.0
    %576 = vmatpush2.msra.mxu0 0.0
    %577 = vmatprep.subr.mxu0 0.0
    %578 = vmatpush2.msra.mxu0 0.0
    %579 = vmatprep.subr.mxu0 0.0
    %580 = vmatpush2.msra.mxu0 0.0
    %581 = vmatprep.subr.mxu0 0.0
    %582 = vmatpush2.msra.mxu0 0.0
    %583 = vmatprep.subr.mxu0 0.0
    %584 = vmatpush2.msra.mxu0 0.0
    %585 = vmatprep.subr.mxu0 0.0
    %586 = vmatpush2.msra.mxu0 0.0
    %587 = vmatprep.mubr.f32.mxu0 0.0
    %588 = vmatmul.mubr.f32.gmra.mxu0 %v521
    %v589 = vpop.f32.mrf.mxu0
    %v590 = vadd.f32 %v205, %v589
    %v591 = vpop.f32.mrf.mxu0
    %592 = vdwg.mxu0
    %v593 = vmax.f32 %v590, 0.0
    %v595 = vsel %vm207, %v593, 0
    %597 = vmatprep.subr.mxu0 0.0
    %598 = vmatpush1.msra.mxu0 0.0
    %599 = vmatprep.subr.mxu0 0.0
    %600 = vmatpush1.msra.mxu0 0.0
    %601 = vmatprep.subr.mxu0 0.0
    %602 = vmatpush1.msra.mxu0 0.0
    %603 = vmatprep.subr.mxu0 0.0
    %604 = vmatpush1.msra.mxu0 0.0
    %605 = vmatprep.subr.mxu0 0.0
    %606 = vmatpush1.msra.mxu0 0.0
    %607 = vmatprep.subr.mxu0 0.0
    %608 = vmatpush1.msra.mxu0 0.0
    %609 = vmatprep.subr.mxu0 0.0
    %610 = vmatpush1.msra.mxu0 0.0
    %611 = vmatprep.subr.mxu0 0.0
    %612 = vmatpush1.msra.mxu0 0.0
    %613 = vmatprep.subr.mxu0 0.0
    %614 = vmatpush1.msra.mxu0 0.0
    %615 = vmatprep.subr.mxu0 0.0
    %616 = vmatpush1.msra.mxu0 0.0
    %617 = vmatprep.subr.mxu0 0.0
    %618 = vmatpush1.msra.mxu0 0.0
    %619 = vmatprep.subr.mxu0 0.0
    %620 = vmatpush1.msra.mxu0 0.0
    %621 = vmatprep.subr.mxu0 0.0
    %622 = vmatpush1.msra.mxu0 %v110
    %623 = vmatprep.subr.mxu0 0.0
    %624 = vmatpush1.msra.mxu0 %v109
    %625 = vmatprep.subr.mxu0 0.0
    %626 = vmatpush1.msra.mxu0 %v108
    %627 = vmatprep.subr.mxu0 0.0
    %628 = vmatpush1.msra.mxu0 %v107
    %629 = vmatprep.subr.mxu0 0.0
    %630 = vmatpush2.msra.mxu0 0.0
    %631 = vmatprep.subr.mxu0 0.0
    %632 = vmatpush2.msra.mxu0 0.0
    %633 = vmatprep.subr.mxu0 0.0
    %634 = vmatpush2.msra.mxu0 0.0
    %635 = vmatprep.subr.mxu0 0.0
    %636 = vmatpush2.msra.mxu0 0.0
    %637 = vmatprep.subr.mxu0 0.0
    %638 = vmatpush2.msra.mxu0 0.0
    %639 = vmatprep.subr.mxu0 0.0
    %640 = vmatpush2.msra.mxu0 0.0
    %641 = vmatprep.subr.mxu0 0.0
    %642 = vmatpush2.msra.mxu0 0.0
    %643 = vmatprep.subr.mxu0 0.0
    %644 = vmatpush2.msra.mxu0 0.0
    %645 = vmatprep.subr.mxu0 0.0
    %646 = vmatpush2.msra.mxu0 0.0
    %647 = vmatprep.subr.mxu0 0.0
    %648 = vmatpush2.msra.mxu0 0.0
    %649 = vmatprep.subr.mxu0 0.0
    %650 = vmatpush2.msra.mxu0 0.0
    %651 = vmatprep.subr.mxu0 0.0
    %652 = vmatpush2.msra.mxu0 0.0
    %653 = vmatprep.subr.mxu0 0.0
    %654 = vmatpush2.msra.mxu0 0.0
    %655 = vmatprep.subr.mxu0 0.0
    %656 = vmatpush2.msra.mxu0 0.0
    %657 = vmatprep.subr.mxu0 0.0
    %658 = vmatpush2.msra.mxu0 0.0
    %659 = vmatprep.subr.mxu0 0.0
    %660 = vmatpush2.msra.mxu0 0.0
    %661 = vmatprep.mubr.f32.mxu0 0.0
    %662 = vmatmul.mubr.f32.gmra.mxu0 %v595
    %v663 = vpop.f32.mrf.mxu0
    %v664 = vadd.f32 %v286, %v663
    %v665 = vpop.f32.mrf.mxu0
    %666 = vdwg.mxu0
    %v667 = vmax.f32 %v664, 0.0
    %v669 = vsel %vm368, %v667, 0
    %671 = vmatprep.subr.mxu0 0.0
    %672 = vmatpush1.msra.mxu0 0.0
    %673 = vmatprep.subr.mxu0 0.0
    %674 = vmatpush1.msra.mxu0 0.0
    %675 = vmatprep.subr.mxu0 0.0
    %676 = vmatpush1.msra.mxu0 0.0
    %677 = vmatprep.subr.mxu0 0.0
    %678 = vmatpush1.msra.mxu0 0.0
    %679 = vmatprep.subr.mxu0 0.0
    %680 = vmatpush1.msra.mxu0 0.0
    %681 = vmatprep.subr.mxu0 0.0
    %682 = vmatpush1.msra.mxu0 0.0
    %683 = vmatprep.subr.mxu0 0.0
    %684 = vmatpush1.msra.mxu0 0.0
    %685 = vmatprep.subr.mxu0 0.0
    %686 = vmatpush1.msra.mxu0 0.0
    %687 = vmatprep.subr.mxu0 0.0
    %688 = vmatpush1.msra.mxu0 0.0
    %689 = vmatprep.subr.mxu0 0.0
    %690 = vmatpush1.msra.mxu0 0.0
    %691 = vmatprep.subr.mxu0 0.0
    %692 = vmatpush1.msra.mxu0 0.0
    %693 = vmatprep.subr.mxu0 0.0
    %694 = vmatpush1.msra.mxu0 0.0
    %695 = vmatprep.subr.mxu0 0.0
    %696 = vmatpush1.msra.mxu0 0.0
    %697 = vmatprep.subr.mxu0 0.0
    %698 = vmatpush1.msra.mxu0 0.0
    %699 = vmatprep.subr.mxu0 0.0
    %700 = vmatpush1.msra.mxu0 %v113
    %701 = vmatprep.subr.mxu0 0.0
    %702 = vmatpush1.msra.mxu0 %v112
    %703 = vmatprep.subr.mxu0 0.0
    %704 = vmatpush2.msra.mxu0 0.0
    %705 = vmatprep.subr.mxu0 0.0
    %706 = vmatpush2.msra.mxu0 0.0
    %707 = vmatprep.subr.mxu0 0.0
    %708 = vmatpush2.msra.mxu0 0.0
    %709 = vmatprep.subr.mxu0 0.0
    %710 = vmatpush2.msra.mxu0 0.0
    %711 = vmatprep.subr.mxu0 0.0
    %712 = vmatpush2.msra.mxu0 0.0
    %713 = vmatprep.subr.mxu0 0.0
    %714 = vmatpush2.msra.mxu0 0.0
    %715 = vmatprep.subr.mxu0 0.0
    %716 = vmatpush2.msra.mxu0 0.0
    %717 = vmatprep.subr.mxu0 0.0
    %718 = vmatpush2.msra.mxu0 0.0
    %719 = vmatprep.subr.mxu0 0.0
    %720 = vmatpush2.msra.mxu0 0.0
    %721 = vmatprep.subr.mxu0 0.0
    %722 = vmatpush2.msra.mxu0 0.0
    %723 = vmatprep.subr.mxu0 0.0
    %724 = vmatpush2.msra.mxu0 0.0
    %725 = vmatprep.subr.mxu0 0.0
    %726 = vmatpush2.msra.mxu0 0.0
    %727 = vmatprep.subr.mxu0 0.0
    %728 = vmatpush2.msra.mxu0 0.0
    %729 = vmatprep.subr.mxu0 0.0
    %730 = vmatpush2.msra.mxu0 0.0
    %731 = vmatprep.subr.mxu0 0.0
    %732 = vmatpush2.msra.mxu0 0.0
    %733 = vmatprep.subr.mxu0 0.0
    %734 = vmatpush2.msra.mxu0 0.0
    %735 = vmatprep.mubr.f32.mxu0 0.0
    %736 = vmatmul.mubr.f32.gmra.mxu0 %v669
    %v737 = vpop.f32.mrf.mxu0
    %v738 = vadd.f32 %v366, %v737
    %v739 = vpop.f32.mrf.mxu0
    %740 = vdwg.mxu0
    %s741 = scalar_lea.vmem [#allocation7], 16
    %v742 = vld [vmem:[%s741] sm:$0xff]
    %v743 = vld [vmem:[%s741 + $0x8] sm:$0xff]
    %vm744 = vcmask 64512
    %v746 = vsel %vm744, %v738, 0
    %748 = vmatprep.subr.mxu0 0.0
    %749 = vmatpush1.msra.mxu0 0.0
    %750 = vmatprep.subr.mxu0 0.0
    %751 = vmatpush1.msra.mxu0 0.0
    %752 = vmatprep.subr.mxu0 0.0
    %753 = vmatpush1.msra.mxu0 0.0
    %754 = vmatprep.subr.mxu0 0.0
    %755 = vmatpush1.msra.mxu0 0.0
    %756 = vmatprep.subr.mxu0 0.0
    %757 = vmatpush1.msra.mxu0 0.0
    %758 = vmatprep.subr.mxu0 0.0
    %759 = vmatpush1.msra.mxu0 0.0
    %760 = vmatprep.subr.mxu0 0.0
    %761 = vmatpush1.msra.mxu0 0.0
    %762 = vmatprep.subr.mxu0 0.0
    %763 = vmatpush1.msra.mxu0 0.0
    %764 = vmatprep.subr.mxu0 0.0
    %765 = vmatpush1.msra.mxu0 0.0
    %766 = vmatprep.subr.mxu0 0.0
    %767 = vmatpush1.msra.mxu0 0.0
    %768 = vmatprep.subr.mxu0 0.0
    %769 = vmatpush1.msra.mxu0 0.0
    %770 = vmatprep.subr.mxu0 0.0
    %771 = vmatpush1.msra.mxu0 0.0
    %772 = vmatprep.subr.mxu0 0.0
    %773 = vmatpush1.msra.mxu0 0.0
    %774 = vmatprep.subr.mxu0 0.0
    %775 = vmatpush1.msra.mxu0 0.0
    %776 = vmatprep.subr.mxu0 0.0
    %777 = vmatpush1.msra.mxu0 0.0
    %778 = vmatprep.subr.mxu0 %v743
    %779 = vmatpush1.msra.mxu0 %v742
    %780 = vmatprep.subr.mxu0 0.0
    %781 = vmatpush2.msra.mxu0 0.0
    %782 = vmatprep.subr.mxu0 0.0
    %783 = vmatpush2.msra.mxu0 0.0
    %784 = vmatprep.subr.mxu0 0.0
    %785 = vmatpush2.msra.mxu0 0.0
    %786 = vmatprep.subr.mxu0 0.0
    %787 = vmatpush2.msra.mxu0 0.0
    %788 = vmatprep.subr.mxu0 0.0
    %789 = vmatpush2.msra.mxu0 0.0
    %790 = vmatprep.subr.mxu0 0.0
    %791 = vmatpush2.msra.mxu0 0.0
    %792 = vmatprep.subr.mxu0 0.0
    %793 = vmatpush2.msra.mxu0 0.0
    %794 = vmatprep.subr.mxu0 0.0
    %795 = vmatpush2.msra.mxu0 0.0
    %796 = vmatprep.subr.mxu0 0.0
    %797 = vmatpush2.msra.mxu0 0.0
    %798 = vmatprep.subr.mxu0 0.0
    %799 = vmatpush2.msra.mxu0 0.0
    %800 = vmatprep.subr.mxu0 0.0
    %801 = vmatpush2.msra.mxu0 0.0
    %802 = vmatprep.subr.mxu0 0.0
    %803 = vmatpush2.msra.mxu0 0.0
    %804 = vmatprep.subr.mxu0 0.0
    %805 = vmatpush2.msra.mxu0 0.0
    %806 = vmatprep.subr.mxu0 0.0
    %807 = vmatpush2.msra.mxu0 0.0
    %808 = vmatprep.subr.mxu0 0.0
    %809 = vmatpush2.msra.mxu0 0.0
    %810 = vmatprep.subr.mxu0 0.0
    %811 = vmatpush2.msra.mxu0 0.0
    %812 = vmatprep.mubr.f32.mxu0 0.0
    %813 = vmatmul.mubr.f32.gmra.mxu0 %v746
    %v814 = vpop.f32.mrf.mxu0
    %v815 = vadd.f32 0.0, %v814
    %v816 = vpop.f32.mrf.mxu0
    %v817 = vadd.f32 0.0, %v816
    %818 = vdwg.mxu0
    %v820 = vsel %vm744, %v439, 0
    %822 = vmatprep.subr.mxu0 0.0
    %823 = vmatpush1.msra.mxu0 0.0
    %824 = vmatprep.subr.mxu0 0.0
    %825 = vmatpush1.msra.mxu0 0.0
    %826 = vmatprep.subr.mxu0 0.0
    %827 = vmatpush1.msra.mxu0 0.0
    %828 = vmatprep.subr.mxu0 0.0
    %829 = vmatpush1.msra.mxu0 0.0
    %830 = vmatprep.subr.mxu0 0.0
    %831 = vmatpush1.msra.mxu0 0.0
    %832 = vmatprep.subr.mxu0 0.0
    %833 = vmatpush1.msra.mxu0 0.0
    %834 = vmatprep.subr.mxu0 0.0
    %835 = vmatpush1.msra.mxu0 0.0
    %836 = vmatprep.subr.mxu0 0.0
    %837 = vmatpush1.msra.mxu0 0.0
    %838 = vmatprep.subr.mxu0 0.0
    %839 = vmatpush1.msra.mxu0 0.0
    %840 = vmatprep.subr.mxu0 0.0
    %841 = vmatpush1.msra.mxu0 0.0
    %842 = vmatprep.subr.mxu0 0.0
    %843 = vmatpush1.msra.mxu0 0.0
    %844 = vmatprep.subr.mxu0 0.0
    %845 = vmatpush1.msra.mxu0 0.0
    %846 = vmatprep.subr.mxu0 0.0
    %847 = vmatpush1.msra.mxu0 0.0
    %848 = vmatprep.subr.mxu0 0.0
    %849 = vmatpush1.msra.mxu0 0.0
    %850 = vmatprep.subr.mxu0 0.0
    %851 = vmatpush1.msra.mxu0 0.0
    %852 = vmatprep.subr.mxu0 %v443
    %853 = vmatpush1.msra.mxu0 %v442
    %854 = vmatprep.subr.mxu0 0.0
    %855 = vmatpush2.msra.mxu0 0.0
    %856 = vmatprep.subr.mxu0 0.0
    %857 = vmatpush2.msra.mxu0 0.0
    %858 = vmatprep.subr.mxu0 0.0
    %859 = vmatpush2.msra.mxu0 0.0
    %860 = vmatprep.subr.mxu0 0.0
    %861 = vmatpush2.msra.mxu0 0.0
    %862 = vmatprep.subr.mxu0 0.0
    %863 = vmatpush2.msra.mxu0 0.0
    %864 = vmatprep.subr.mxu0 0.0
    %865 = vmatpush2.msra.mxu0 0.0
    %866 = vmatprep.subr.mxu0 0.0
    %867 = vmatpush2.msra.mxu0 0.0
    %868 = vmatprep.subr.mxu0 0.0
    %869 = vmatpush2.msra.mxu0 0.0
    %870 = vmatprep.subr.mxu0 0.0
    %871 = vmatpush2.msra.mxu0 0.0
    %872 = vmatprep.subr.mxu0 0.0
    %873 = vmatpush2.msra.mxu0 0.0
    %874 = vmatprep.subr.mxu0 0.0
    %875 = vmatpush2.msra.mxu0 0.0
    %876 = vmatprep.subr.mxu0 0.0
    %877 = vmatpush2.msra.mxu0 0.0
    %878 = vmatprep.subr.mxu0 0.0
    %879 = vmatpush2.msra.mxu0 0.0
    %880 = vmatprep.subr.mxu0 0.0
    %881 = vmatpush2.msra.mxu0 0.0
    %882 = vmatprep.subr.mxu0 0.0
    %883 = vmatpush2.msra.mxu0 0.0
    %884 = vmatprep.subr.mxu0 0.0
    %885 = vmatpush2.msra.mxu0 0.0
    %886 = vmatprep.mubr.f32.mxu0 0.0
    %887 = vmatmul.mubr.f32.gmra.mxu0 %v820
    %v888 = vpop.f32.mrf.mxu0
    %v889 = vadd.f32 %v815, %v888
    %v890 = vpop.f32.mrf.mxu0
    %v891 = vadd.f32 %v817, %v890
    %892 = vdwg.mxu0
    %s893 = scalar_lea.vmem %s0, 4
    %v894 = vld [vmem:[%s893] sm:$0x3]
    %v896 = vsel %vm122, %v894, 0
    %898 = vmatprep.subr.mxu0 0.0
    %899 = vmatpush1.msra.mxu0 0.0
    %900 = vmatprep.subr.mxu0 0.0
    %901 = vmatpush1.msra.mxu0 0.0
    %902 = vmatprep.subr.mxu0 0.0
    %903 = vmatpush1.msra.mxu0 0.0
    %904 = vmatprep.subr.mxu0 0.0
    %905 = vmatpush1.msra.mxu0 0.0
    %906 = vmatprep.subr.mxu0 0.0
    %907 = vmatpush1.msra.mxu0 0.0
    %908 = vmatprep.subr.mxu0 0.0
    %909 = vmatpush1.msra.mxu0 0.0
    %910 = vmatprep.subr.mxu0 0.0
    %911 = vmatpush1.msra.mxu0 0.0
    %912 = vmatprep.subr.mxu0 0.0
    %913 = vmatpush1.msra.mxu0 0.0
    %914 = vmatprep.subr.mxu0 0.0
    %915 = vmatpush1.msra.mxu0 0.0
    %916 = vmatprep.subr.mxu0 0.0
    %917 = vmatpush1.msra.mxu0 0.0
    %918 = vmatprep.subr.mxu0 0.0
    %919 = vmatpush1.msra.mxu0 0.0
    %920 = vmatprep.subr.mxu0 0.0
    %921 = vmatpush1.msra.mxu0 0.0
    %922 = vmatprep.subr.mxu0 0.0
    %923 = vmatpush1.msra.mxu0 0.0
    %924 = vmatprep.subr.mxu0 0.0
    %925 = vmatpush1.msra.mxu0 %v128
    %926 = vmatprep.subr.mxu0 0.0
    %927 = vmatpush1.msra.mxu0 %v99
    %928 = vmatprep.subr.mxu0 0.0
    %929 = vmatpush1.msra.mxu0 %v98
    %930 = vmatprep.subr.mxu0 0.0
    %931 = vmatpush2.msra.mxu0 0.0
    %932 = vmatprep.subr.mxu0 0.0
    %933 = vmatpush2.msra.mxu0 0.0
    %934 = vmatprep.subr.mxu0 0.0
    %935 = vmatpush2.msra.mxu0 0.0
    %936 = vmatprep.subr.mxu0 0.0
    %937 = vmatpush2.msra.mxu0 0.0
    %938 = vmatprep.subr.mxu0 0.0
    %939 = vmatpush2.msra.mxu0 0.0
    %940 = vmatprep.subr.mxu0 0.0
    %941 = vmatpush2.msra.mxu0 0.0
    %942 = vmatprep.subr.mxu0 0.0
    %943 = vmatpush2.msra.mxu0 0.0
    %944 = vmatprep.subr.mxu0 0.0
    %945 = vmatpush2.msra.mxu0 0.0
    %946 = vmatprep.subr.mxu0 0.0
    %947 = vmatpush2.msra.mxu0 0.0
    %948 = vmatprep.subr.mxu0 0.0
    %949 = vmatpush2.msra.mxu0 0.0
    %950 = vmatprep.subr.mxu0 0.0
    %951 = vmatpush2.msra.mxu0 0.0
    %952 = vmatprep.subr.mxu0 0.0
    %953 = vmatpush2.msra.mxu0 0.0
    %954 = vmatprep.subr.mxu0 0.0
    %955 = vmatpush2.msra.mxu0 0.0
    %956 = vmatprep.subr.mxu0 0.0
    %957 = vmatpush2.msra.mxu0 0.0
    %958 = vmatprep.subr.mxu0 0.0
    %959 = vmatpush2.msra.mxu0 0.0
    %960 = vmatprep.subr.mxu0 0.0
    %961 = vmatpush2.msra.mxu0 0.0
    %962 = vmatprep.mubr.f32.mxu0 0.0
    %963 = vmatmul.mubr.f32.gmra.mxu0 %v896
    %v964 = vpop.f32.mrf.mxu0
    %v965 = vadd.f32 %v120, %v964
    %v966 = vpop.f32.mrf.mxu0
    %967 = vdwg.mxu0
    %v968 = vmax.f32 %v965, 0.0
    %v970 = vsel %vm207, %v968, 0
    %972 = vmatprep.subr.mxu0 0.0
    %973 = vmatpush1.msra.mxu0 0.0
    %974 = vmatprep.subr.mxu0 0.0
    %975 = vmatpush1.msra.mxu0 0.0
    %976 = vmatprep.subr.mxu0 0.0
    %977 = vmatpush1.msra.mxu0 0.0
    %978 = vmatprep.subr.mxu0 0.0
    %979 = vmatpush1.msra.mxu0 0.0
    %980 = vmatprep.subr.mxu0 0.0
    %981 = vmatpush1.msra.mxu0 0.0
    %982 = vmatprep.subr.mxu0 0.0
    %983 = vmatpush1.msra.mxu0 0.0
    %984 = vmatprep.subr.mxu0 0.0
    %985 = vmatpush1.msra.mxu0 0.0
    %986 = vmatprep.subr.mxu0 0.0
    %987 = vmatpush1.msra.mxu0 0.0
    %988 = vmatprep.subr.mxu0 0.0
    %989 = vmatpush1.msra.mxu0 0.0
    %990 = vmatprep.subr.mxu0 0.0
    %991 = vmatpush1.msra.mxu0 0.0
    %992 = vmatprep.subr.mxu0 0.0
    %993 = vmatpush1.msra.mxu0 0.0
    %994 = vmatprep.subr.mxu0 0.0
    %995 = vmatpush1.msra.mxu0 0.0
    %996 = vmatprep.subr.mxu0 0.0
    %997 = vmatpush1.msra.mxu0 %v105
    %998 = vmatprep.subr.mxu0 0.0
    %999 = vmatpush1.msra.mxu0 %v104
    %1000 = vmatprep.subr.mxu0 0.0
    %1001 = vmatpush1.msra.mxu0 %v103
    %1002 = vmatprep.subr.mxu0 0.0
    %1003 = vmatpush1.msra.mxu0 %v102
    %1004 = vmatprep.subr.mxu0 0.0
    %1005 = vmatpush2.msra.mxu0 0.0
    %1006 = vmatprep.subr.mxu0 0.0
    %1007 = vmatpush2.msra.mxu0 0.0
    %1008 = vmatprep.subr.mxu0 0.0
    %1009 = vmatpush2.msra.mxu0 0.0
    %1010 = vmatprep.subr.mxu0 0.0
    %1011 = vmatpush2.msra.mxu0 0.0
    %1012 = vmatprep.subr.mxu0 0.0
    %1013 = vmatpush2.msra.mxu0 0.0
    %1014 = vmatprep.subr.mxu0 0.0
    %1015 = vmatpush2.msra.mxu0 0.0
    %1016 = vmatprep.subr.mxu0 0.0
    %1017 = vmatpush2.msra.mxu0 0.0
    %1018 = vmatprep.subr.mxu0 0.0
    %1019 = vmatpush2.msra.mxu0 0.0
    %1020 = vmatprep.subr.mxu0 0.0
    %1021 = vmatpush2.msra.mxu0 0.0
    %1022 = vmatprep.subr.mxu0 0.0
    %1023 = vmatpush2.msra.mxu0 0.0
    %1024 = vmatprep.subr.mxu0 0.0
    %1025 = vmatpush2.msra.mxu0 0.0
    %1026 = vmatprep.subr.mxu0 0.0
    %1027 = vmatpush2.msra.mxu0 0.0
    %1028 = vmatprep.subr.mxu0 0.0
    %1029 = vmatpush2.msra.mxu0 0.0
    %1030 = vmatprep.subr.mxu0 0.0
    %1031 = vmatpush2.msra.mxu0 0.0
    %1032 = vmatprep.subr.mxu0 0.0
    %1033 = vmatpush2.msra.mxu0 0.0
    %1034 = vmatprep.subr.mxu0 0.0
    %1035 = vmatpush2.msra.mxu0 0.0
    %1036 = vmatprep.mubr.f32.mxu0 0.0
    %1037 = vmatmul.mubr.f32.gmra.mxu0 %v970
    %v1038 = vpop.f32.mrf.mxu0
    %v1039 = vadd.f32 %v205, %v1038
    %v1040 = vpop.f32.mrf.mxu0
    %1041 = vdwg.mxu0
    %v1042 = vmax.f32 %v1039, 0.0
    %v1044 = vsel %vm207, %v1042, 0
    %1046 = vmatprep.subr.mxu0 0.0
    %1047 = vmatpush1.msra.mxu0 0.0
    %1048 = vmatprep.subr.mxu0 0.0
    %1049 = vmatpush1.msra.mxu0 0.0
    %1050 = vmatprep.subr.mxu0 0.0
    %1051 = vmatpush1.msra.mxu0 0.0
    %1052 = vmatprep.subr.mxu0 0.0
    %1053 = vmatpush1.msra.mxu0 0.0
    %1054 = vmatprep.subr.mxu0 0.0
    %1055 = vmatpush1.msra.mxu0 0.0
    %1056 = vmatprep.subr.mxu0 0.0
    %1057 = vmatpush1.msra.mxu0 0.0
    %1058 = vmatprep.subr.mxu0 0.0
    %1059 = vmatpush1.msra.mxu0 0.0
    %1060 = vmatprep.subr.mxu0 0.0
    %1061 = vmatpush1.msra.mxu0 0.0
    %1062 = vmatprep.subr.mxu0 0.0
    %1063 = vmatpush1.msra.mxu0 0.0
    %1064 = vmatprep.subr.mxu0 0.0
    %1065 = vmatpush1.msra.mxu0 0.0
    %1066 = vmatprep.subr.mxu0 0.0
    %1067 = vmatpush1.msra.mxu0 0.0
    %1068 = vmatprep.subr.mxu0 0.0
    %1069 = vmatpush1.msra.mxu0 0.0
    %1070 = vmatprep.subr.mxu0 0.0
    %1071 = vmatpush1.msra.mxu0 %v110
    %1072 = vmatprep.subr.mxu0 0.0
    %1073 = vmatpush1.msra.mxu0 %v109
    %1074 = vmatprep.subr.mxu0 0.0
    %1075 = vmatpush1.msra.mxu0 %v108
    %1076 = vmatprep.subr.mxu0 0.0
    %1077 = vmatpush1.msra.mxu0 %v107
    %1078 = vmatprep.subr.mxu0 0.0
    %1079 = vmatpush2.msra.mxu0 0.0
    %1080 = vmatprep.subr.mxu0 0.0
    %1081 = vmatpush2.msra.mxu0 0.0
    %1082 = vmatprep.subr.mxu0 0.0
    %1083 = vmatpush2.msra.mxu0 0.0
    %1084 = vmatprep.subr.mxu0 0.0
    %1085 = vmatpush2.msra.mxu0 0.0
    %1086 = vmatprep.subr.mxu0 0.0
    %1087 = vmatpush2.msra.mxu0 0.0
    %1088 = vmatprep.subr.mxu0 0.0
    %1089 = vmatpush2.msra.mxu0 0.0
    %1090 = vmatprep.subr.mxu0 0.0
    %1091 = vmatpush2.msra.mxu0 0.0
    %1092 = vmatprep.subr.mxu0 0.0
    %1093 = vmatpush2.msra.mxu0 0.0
    %1094 = vmatprep.subr.mxu0 0.0
    %1095 = vmatpush2.msra.mxu0 0.0
    %1096 = vmatprep.subr.mxu0 0.0
    %1097 = vmatpush2.msra.mxu0 0.0
    %1098 = vmatprep.subr.mxu0 0.0
    %1099 = vmatpush2.msra.mxu0 0.0
    %1100 = vmatprep.subr.mxu0 0.0
    %1101 = vmatpush2.msra.mxu0 0.0
    %1102 = vmatprep.subr.mxu0 0.0
    %1103 = vmatpush2.msra.mxu0 0.0
    %1104 = vmatprep.subr.mxu0 0.0
    %1105 = vmatpush2.msra.mxu0 0.0
    %1106 = vmatprep.subr.mxu0 0.0
    %1107 = vmatpush2.msra.mxu0 0.0
    %1108 = vmatprep.subr.mxu0 0.0
    %1109 = vmatpush2.msra.mxu0 0.0
    %1110 = vmatprep.mubr.f32.mxu0 0.0
    %1111 = vmatmul.mubr.f32.gmra.mxu0 %v1044
    %v1112 = vpop.f32.mrf.mxu0
    %v1113 = vadd.f32 %v286, %v1112
    %v1114 = vpop.f32.mrf.mxu0
    %1115 = vdwg.mxu0
    %v1116 = vmax.f32 %v1113, 0.0
    %v1118 = vsel %vm368, %v1116, 0
    %1120 = vmatprep.subr.mxu0 0.0
    %1121 = vmatpush1.msra.mxu0 0.0
    %1122 = vmatprep.subr.mxu0 0.0
    %1123 = vmatpush1.msra.mxu0 0.0
    %1124 = vmatprep.subr.mxu0 0.0
    %1125 = vmatpush1.msra.mxu0 0.0
    %1126 = vmatprep.subr.mxu0 0.0
    %1127 = vmatpush1.msra.mxu0 0.0
    %1128 = vmatprep.subr.mxu0 0.0
    %1129 = vmatpush1.msra.mxu0 0.0
    %1130 = vmatprep.subr.mxu0 0.0
    %1131 = vmatpush1.msra.mxu0 0.0
    %1132 = vmatprep.subr.mxu0 0.0
    %1133 = vmatpush1.msra.mxu0 0.0
    %1134 = vmatprep.subr.mxu0 0.0
    %1135 = vmatpush1.msra.mxu0 0.0
    %1136 = vmatprep.subr.mxu0 0.0
    %1137 = vmatpush1.msra.mxu0 0.0
    %1138 = vmatprep.subr.mxu0 0.0
    %1139 = vmatpush1.msra.mxu0 0.0
    %1140 = vmatprep.subr.mxu0 0.0
    %1141 = vmatpush1.msra.mxu0 0.0
    %1142 = vmatprep.subr.mxu0 0.0
    %1143 = vmatpush1.msra.mxu0 0.0
    %1144 = vmatprep.subr.mxu0 0.0
    %1145 = vmatpush1.msra.mxu0 0.0
    %1146 = vmatprep.subr.mxu0 0.0
    %1147 = vmatpush1.msra.mxu0 0.0
    %1148 = vmatprep.subr.mxu0 0.0
    %1149 = vmatpush1.msra.mxu0 %v113
    %1150 = vmatprep.subr.mxu0 0.0
    %1151 = vmatpush1.msra.mxu0 %v112
    %1152 = vmatprep.subr.mxu0 0.0
    %1153 = vmatpush2.msra.mxu0 0.0
    %1154 = vmatprep.subr.mxu0 0.0
    %1155 = vmatpush2.msra.mxu0 0.0
    %1156 = vmatprep.subr.mxu0 0.0
    %1157 = vmatpush2.msra.mxu0 0.0
    %1158 = vmatprep.subr.mxu0 0.0
    %1159 = vmatpush2.msra.mxu0 0.0
    %1160 = vmatprep.subr.mxu0 0.0
    %1161 = vmatpush2.msra.mxu0 0.0
    %1162 = vmatprep.subr.mxu0 0.0
    %1163 = vmatpush2.msra.mxu0 0.0
    %1164 = vmatprep.subr.mxu0 0.0
    %1165 = vmatpush2.msra.mxu0 0.0
    %1166 = vmatprep.subr.mxu0 0.0
    %1167 = vmatpush2.msra.mxu0 0.0
    %1168 = vmatprep.subr.mxu0 0.0
    %1169 = vmatpush2.msra.mxu0 0.0
    %1170 = vmatprep.subr.mxu0 0.0
    %1171 = vmatpush2.msra.mxu0 0.0
    %1172 = vmatprep.subr.mxu0 0.0
    %1173 = vmatpush2.msra.mxu0 0.0
    %1174 = vmatprep.subr.mxu0 0.0
    %1175 = vmatpush2.msra.mxu0 0.0
    %1176 = vmatprep.subr.mxu0 0.0
    %1177 = vmatpush2.msra.mxu0 0.0
    %1178 = vmatprep.subr.mxu0 0.0
    %1179 = vmatpush2.msra.mxu0 0.0
    %1180 = vmatprep.subr.mxu0 0.0
    %1181 = vmatpush2.msra.mxu0 0.0
    %1182 = vmatprep.subr.mxu0 0.0
    %1183 = vmatpush2.msra.mxu0 0.0
    %1184 = vmatprep.mubr.f32.mxu0 0.0
    %1185 = vmatmul.mubr.f32.gmra.mxu0 %v1118
    %v1186 = vpop.f32.mrf.mxu0
    %v1187 = vadd.f32 %v366, %v1186
    %v1188 = vpop.f32.mrf.mxu0
    %1189 = vdwg.mxu0
    %s1190 = scalar_lea.vmem [#allocation7], 32
    %v1191 = vld [vmem:[%s1190] sm:$0xff]
    %v1192 = vld [vmem:[%s1190 + $0x8] sm:$0xff]
    %v1194 = vsel %vm744, %v1187, 0
    %1196 = vmatprep.subr.mxu0 0.0
    %1197 = vmatpush1.msra.mxu0 0.0
    %1198 = vmatprep.subr.mxu0 0.0
    %1199 = vmatpush1.msra.mxu0 0.0
    %1200 = vmatprep.subr.mxu0 0.0
    %1201 = vmatpush1.msra.mxu0 0.0
    %1202 = vmatprep.subr.mxu0 0.0
    %1203 = vmatpush1.msra.mxu0 0.0
    %1204 = vmatprep.subr.mxu0 0.0
    %1205 = vmatpush1.msra.mxu0 0.0
    %1206 = vmatprep.subr.mxu0 0.0
    %1207 = vmatpush1.msra.mxu0 0.0
    %1208 = vmatprep.subr.mxu0 0.0
    %1209 = vmatpush1.msra.mxu0 0.0
    %1210 = vmatprep.subr.mxu0 0.0
    %1211 = vmatpush1.msra.mxu0 0.0
    %1212 = vmatprep.subr.mxu0 0.0
    %1213 = vmatpush1.msra.mxu0 0.0
    %1214 = vmatprep.subr.mxu0 0.0
    %1215 = vmatpush1.msra.mxu0 0.0
    %1216 = vmatprep.subr.mxu0 0.0
    %1217 = vmatpush1.msra.mxu0 0.0
    %1218 = vmatprep.subr.mxu0 0.0
    %1219 = vmatpush1.msra.mxu0 0.0
    %1220 = vmatprep.subr.mxu0 0.0
    %1221 = vmatpush1.msra.mxu0 0.0
    %1222 = vmatprep.subr.mxu0 0.0
    %1223 = vmatpush1.msra.mxu0 0.0
    %1224 = vmatprep.subr.mxu0 0.0
    %1225 = vmatpush1.msra.mxu0 0.0
    %1226 = vmatprep.subr.mxu0 %v1192
    %1227 = vmatpush1.msra.mxu0 %v1191
    %1228 = vmatprep.subr.mxu0 0.0
    %1229 = vmatpush2.msra.mxu0 0.0
    %1230 = vmatprep.subr.mxu0 0.0
    %1231 = vmatpush2.msra.mxu0 0.0
    %1232 = vmatprep.subr.mxu0 0.0
    %1233 = vmatpush2.msra.mxu0 0.0
    %1234 = vmatprep.subr.mxu0 0.0
    %1235 = vmatpush2.msra.mxu0 0.0
    %1236 = vmatprep.subr.mxu0 0.0
    %1237 = vmatpush2.msra.mxu0 0.0
    %1238 = vmatprep.subr.mxu0 0.0
    %1239 = vmatpush2.msra.mxu0 0.0
    %1240 = vmatprep.subr.mxu0 0.0
    %1241 = vmatpush2.msra.mxu0 0.0
    %1242 = vmatprep.subr.mxu0 0.0
    %1243 = vmatpush2.msra.mxu0 0.0
    %1244 = vmatprep.subr.mxu0 0.0
    %1245 = vmatpush2.msra.mxu0 0.0
    %1246 = vmatprep.subr.mxu0 0.0
    %1247 = vmatpush2.msra.mxu0 0.0
    %1248 = vmatprep.subr.mxu0 0.0
    %1249 = vmatpush2.msra.mxu0 0.0
    %1250 = vmatprep.subr.mxu0 0.0
    %1251 = vmatpush2.msra.mxu0 0.0
    %1252 = vmatprep.subr.mxu0 0.0
    %1253 = vmatpush2.msra.mxu0 0.0
    %1254 = vmatprep.subr.mxu0 0.0
    %1255 = vmatpush2.msra.mxu0 0.0
    %1256 = vmatprep.subr.mxu0 0.0
    %1257 = vmatpush2.msra.mxu0 0.0
    %1258 = vmatprep.subr.mxu0 0.0
    %1259 = vmatpush2.msra.mxu0 0.0
    %1260 = vmatprep.mubr.f32.mxu0 0.0
    %1261 = vmatmul.mubr.f32.gmra.mxu0 %v1194
    %v1262 = vpop.f32.mrf.mxu0
    %v1263 = vadd.f32 0.0, %v1262
    %v1264 = vpop.f32.mrf.mxu0
    %v1265 = vadd.f32 0.0, %v1264
    %1266 = vdwg.mxu0
    %v1267 = vadd.f32 %v889, %v1263
    %v1268 = vadd.f32 %v891, %v1265
    %s1269 = scalar_lea.vmem %s0, 6
    %v1270 = vld [vmem:[%s1269] sm:$0x3]
    %v1272 = vsel %vm122, %v1270, 0
    %1274 = vmatprep.subr.mxu0 0.0
    %1275 = vmatpush1.msra.mxu0 0.0
    %1276 = vmatprep.subr.mxu0 0.0
    %1277 = vmatpush1.msra.mxu0 0.0
    %1278 = vmatprep.subr.mxu0 0.0
    %1279 = vmatpush1.msra.mxu0 0.0
    %1280 = vmatprep.subr.mxu0 0.0
    %1281 = vmatpush1.msra.mxu0 0.0
    %1282 = vmatprep.subr.mxu0 0.0
    %1283 = vmatpush1.msra.mxu0 0.0
    %1284 = vmatprep.subr.mxu0 0.0
    %1285 = vmatpush1.msra.mxu0 0.0
    %1286 = vmatprep.subr.mxu0 0.0
    %1287 = vmatpush1.msra.mxu0 0.0
    %1288 = vmatprep.subr.mxu0 0.0
    %1289 = vmatpush1.msra.mxu0 0.0
    %1290 = vmatprep.subr.mxu0 0.0
    %1291 = vmatpush1.msra.mxu0 0.0
    %1292 = vmatprep.subr.mxu0 0.0
    %1293 = vmatpush1.msra.mxu0 0.0
    %1294 = vmatprep.subr.mxu0 0.0
    %1295 = vmatpush1.msra.mxu0 0.0
    %1296 = vmatprep.subr.mxu0 0.0
    %1297 = vmatpush1.msra.mxu0 0.0
    %1298 = vmatprep.subr.mxu0 0.0
    %1299 = vmatpush1.msra.mxu0 0.0
    %1300 = vmatprep.subr.mxu0 0.0
    %1301 = vmatpush1.msra.mxu0 %v128
    %1302 = vmatprep.subr.mxu0 0.0
    %1303 = vmatpush1.msra.mxu0 %v99
    %1304 = vmatprep.subr.mxu0 0.0
    %1305 = vmatpush1.msra.mxu0 %v98
    %1306 = vmatprep.subr.mxu0 0.0
    %1307 = vmatpush2.msra.mxu0 0.0
    %1308 = vmatprep.subr.mxu0 0.0
    %1309 = vmatpush2.msra.mxu0 0.0
    %1310 = vmatprep.subr.mxu0 0.0
    %1311 = vmatpush2.msra.mxu0 0.0
    %1312 = vmatprep.subr.mxu0 0.0
    %1313 = vmatpush2.msra.mxu0 0.0
    %1314 = vmatprep.subr.mxu0 0.0
    %1315 = vmatpush2.msra.mxu0 0.0
    %1316 = vmatprep.subr.mxu0 0.0
    %1317 = vmatpush2.msra.mxu0 0.0
    %1318 = vmatprep.subr.mxu0 0.0
    %1319 = vmatpush2.msra.mxu0 0.0
    %1320 = vmatprep.subr.mxu0 0.0
    %1321 = vmatpush2.msra.mxu0 0.0
    %1322 = vmatprep.subr.mxu0 0.0
    %1323 = vmatpush2.msra.mxu0 0.0
    %1324 = vmatprep.subr.mxu0 0.0
    %1325 = vmatpush2.msra.mxu0 0.0
    %1326 = vmatprep.subr.mxu0 0.0
    %1327 = vmatpush2.msra.mxu0 0.0
    %1328 = vmatprep.subr.mxu0 0.0
    %1329 = vmatpush2.msra.mxu0 0.0
    %1330 = vmatprep.subr.mxu0 0.0
    %1331 = vmatpush2.msra.mxu0 0.0
    %1332 = vmatprep.subr.mxu0 0.0
    %1333 = vmatpush2.msra.mxu0 0.0
    %1334 = vmatprep.subr.mxu0 0.0
    %1335 = vmatpush2.msra.mxu0 0.0
    %1336 = vmatprep.subr.mxu0 0.0
    %1337 = vmatpush2.msra.mxu0 0.0
    %1338 = vmatprep.mubr.f32.mxu0 0.0
    %1339 = vmatmul.mubr.f32.gmra.mxu0 %v1272
    %v1340 = vpop.f32.mrf.mxu0
    %v1341 = vadd.f32 %v120, %v1340
    %v1342 = vpop.f32.mrf.mxu0
    %1343 = vdwg.mxu0
    %v1344 = vmax.f32 %v1341, 0.0
    %v1346 = vsel %vm207, %v1344, 0
    %1348 = vmatprep.subr.mxu0 0.0
    %1349 = vmatpush1.msra.mxu0 0.0
    %1350 = vmatprep.subr.mxu0 0.0
    %1351 = vmatpush1.msra.mxu0 0.0
    %1352 = vmatprep.subr.mxu0 0.0
    %1353 = vmatpush1.msra.mxu0 0.0
    %1354 = vmatprep.subr.mxu0 0.0
    %1355 = vmatpush1.msra.mxu0 0.0
    %1356 = vmatprep.subr.mxu0 0.0
    %1357 = vmatpush1.msra.mxu0 0.0
    %1358 = vmatprep.subr.mxu0 0.0
    %1359 = vmatpush1.msra.mxu0 0.0
    %1360 = vmatprep.subr.mxu0 0.0
    %1361 = vmatpush1.msra.mxu0 0.0
    %1362 = vmatprep.subr.mxu0 0.0
    %1363 = vmatpush1.msra.mxu0 0.0
    %1364 = vmatprep.subr.mxu0 0.0
    %1365 = vmatpush1.msra.mxu0 0.0
    %1366 = vmatprep.subr.mxu0 0.0
    %1367 = vmatpush1.msra.mxu0 0.0
    %1368 = vmatprep.subr.mxu0 0.0
    %1369 = vmatpush1.msra.mxu0 0.0
    %1370 = vmatprep.subr.mxu0 0.0
    %1371 = vmatpush1.msra.mxu0 0.0
    %1372 = vmatprep.subr.mxu0 0.0
    %1373 = vmatpush1.msra.mxu0 %v105
    %1374 = vmatprep.subr.mxu0 0.0
    %1375 = vmatpush1.msra.mxu0 %v104
    %1376 = vmatprep.subr.mxu0 0.0
    %1377 = vmatpush1.msra.mxu0 %v103
    %1378 = vmatprep.subr.mxu0 0.0
    %1379 = vmatpush1.msra.mxu0 %v102
    %1380 = vmatprep.subr.mxu0 0.0
    %1381 = vmatpush2.msra.mxu0 0.0
    %1382 = vmatprep.subr.mxu0 0.0
    %1383 = vmatpush2.msra.mxu0 0.0
    %1384 = vmatprep.subr.mxu0 0.0
    %1385 = vmatpush2.msra.mxu0 0.0
    %1386 = vmatprep.subr.mxu0 0.0
    %1387 = vmatpush2.msra.mxu0 0.0
    %1388 = vmatprep.subr.mxu0 0.0
    %1389 = vmatpush2.msra.mxu0 0.0
    %1390 = vmatprep.subr.mxu0 0.0
    %1391 = vmatpush2.msra.mxu0 0.0
    %1392 = vmatprep.subr.mxu0 0.0
    %1393 = vmatpush2.msra.mxu0 0.0
    %1394 = vmatprep.subr.mxu0 0.0
    %1395 = vmatpush2.msra.mxu0 0.0
    %1396 = vmatprep.subr.mxu0 0.0
    %1397 = vmatpush2.msra.mxu0 0.0
    %1398 = vmatprep.subr.mxu0 0.0
    %1399 = vmatpush2.msra.mxu0 0.0
    %1400 = vmatprep.subr.mxu0 0.0
    %1401 = vmatpush2.msra.mxu0 0.0
    %1402 = vmatprep.subr.mxu0 0.0
    %1403 = vmatpush2.msra.mxu0 0.0
    %1404 = vmatprep.subr.mxu0 0.0
    %1405 = vmatpush2.msra.mxu0 0.0
    %1406 = vmatprep.subr.mxu0 0.0
    %1407 = vmatpush2.msra.mxu0 0.0
    %1408 = vmatprep.subr.mxu0 0.0
    %1409 = vmatpush2.msra.mxu0 0.0
    %1410 = vmatprep.subr.mxu0 0.0
    %1411 = vmatpush2.msra.mxu0 0.0
    %1412 = vmatprep.mubr.f32.mxu0 0.0
    %1413 = vmatmul.mubr.f32.gmra.mxu0 %v1346
    %v1414 = vpop.f32.mrf.mxu0
    %v1415 = vadd.f32 %v205, %v1414
    %v1416 = vpop.f32.mrf.mxu0
    %1417 = vdwg.mxu0
    %v1418 = vmax.f32 %v1415, 0.0
    %v1420 = vsel %vm207, %v1418, 0
    %1422 = vmatprep.subr.mxu0 0.0
    %1423 = vmatpush1.msra.mxu0 0.0
    %1424 = vmatprep.subr.mxu0 0.0
    %1425 = vmatpush1.msra.mxu0 0.0
    %1426 = vmatprep.subr.mxu0 0.0
    %1427 = vmatpush1.msra.mxu0 0.0
    %1428 = vmatprep.subr.mxu0 0.0
    %1429 = vmatpush1.msra.mxu0 0.0
    %1430 = vmatprep.subr.mxu0 0.0
    %1431 = vmatpush1.msra.mxu0 0.0
    %1432 = vmatprep.subr.mxu0 0.0
    %1433 = vmatpush1.msra.mxu0 0.0
    %1434 = vmatprep.subr.mxu0 0.0
    %1435 = vmatpush1.msra.mxu0 0.0
    %1436 = vmatprep.subr.mxu0 0.0
    %1437 = vmatpush1.msra.mxu0 0.0
    %1438 = vmatprep.subr.mxu0 0.0
    %1439 = vmatpush1.msra.mxu0 0.0
    %1440 = vmatprep.subr.mxu0 0.0
    %1441 = vmatpush1.msra.mxu0 0.0
    %1442 = vmatprep.subr.mxu0 0.0
    %1443 = vmatpush1.msra.mxu0 0.0
    %1444 = vmatprep.subr.mxu0 0.0
    %1445 = vmatpush1.msra.mxu0 0.0
    %1446 = vmatprep.subr.mxu0 0.0
    %1447 = vmatpush1.msra.mxu0 %v110
    %1448 = vmatprep.subr.mxu0 0.0
    %1449 = vmatpush1.msra.mxu0 %v109
    %1450 = vmatprep.subr.mxu0 0.0
    %1451 = vmatpush1.msra.mxu0 %v108
    %1452 = vmatprep.subr.mxu0 0.0
    %1453 = vmatpush1.msra.mxu0 %v107
    %1454 = vmatprep.subr.mxu0 0.0
    %1455 = vmatpush2.msra.mxu0 0.0
    %1456 = vmatprep.subr.mxu0 0.0
    %1457 = vmatpush2.msra.mxu0 0.0
    %1458 = vmatprep.subr.mxu0 0.0
    %1459 = vmatpush2.msra.mxu0 0.0
    %1460 = vmatprep.subr.mxu0 0.0
    %1461 = vmatpush2.msra.mxu0 0.0
    %1462 = vmatprep.subr.mxu0 0.0
    %1463 = vmatpush2.msra.mxu0 0.0
    %1464 = vmatprep.subr.mxu0 0.0
    %1465 = vmatpush2.msra.mxu0 0.0
    %1466 = vmatprep.subr.mxu0 0.0
    %1467 = vmatpush2.msra.mxu0 0.0
    %1468 = vmatprep.subr.mxu0 0.0
    %1469 = vmatpush2.msra.mxu0 0.0
    %1470 = vmatprep.subr.mxu0 0.0
    %1471 = vmatpush2.msra.mxu0 0.0
    %1472 = vmatprep.subr.mxu0 0.0
    %1473 = vmatpush2.msra.mxu0 0.0
    %1474 = vmatprep.subr.mxu0 0.0
    %1475 = vmatpush2.msra.mxu0 0.0
    %1476 = vmatprep.subr.mxu0 0.0
    %1477 = vmatpush2.msra.mxu0 0.0
    %1478 = vmatprep.subr.mxu0 0.0
    %1479 = vmatpush2.msra.mxu0 0.0
    %1480 = vmatprep.subr.mxu0 0.0
    %1481 = vmatpush2.msra.mxu0 0.0
    %1482 = vmatprep.subr.mxu0 0.0
    %1483 = vmatpush2.msra.mxu0 0.0
    %1484 = vmatprep.subr.mxu0 0.0
    %1485 = vmatpush2.msra.mxu0 0.0
    %1486 = vmatprep.mubr.f32.mxu0 0.0
    %1487 = vmatmul.mubr.f32.gmra.mxu0 %v1420
    %v1488 = vpop.f32.mrf.mxu0
    %v1489 = vadd.f32 %v286, %v1488
    %v1490 = vpop.f32.mrf.mxu0
    %1491 = vdwg.mxu0
    %v1492 = vmax.f32 %v1489, 0.0
    %v1494 = vsel %vm368, %v1492, 0
    %1496 = vmatprep.subr.mxu0 0.0
    %1497 = vmatpush1.msra.mxu0 0.0
    %1498 = vmatprep.subr.mxu0 0.0
    %1499 = vmatpush1.msra.mxu0 0.0
    %1500 = vmatprep.subr.mxu0 0.0
    %1501 = vmatpush1.msra.mxu0 0.0
    %1502 = vmatprep.subr.mxu0 0.0
    %1503 = vmatpush1.msra.mxu0 0.0
    %1504 = vmatprep.subr.mxu0 0.0
    %1505 = vmatpush1.msra.mxu0 0.0
    %1506 = vmatprep.subr.mxu0 0.0
    %1507 = vmatpush1.msra.mxu0 0.0
    %1508 = vmatprep.subr.mxu0 0.0
    %1509 = vmatpush1.msra.mxu0 0.0
    %1510 = vmatprep.subr.mxu0 0.0
    %1511 = vmatpush1.msra.mxu0 0.0
    %1512 = vmatprep.subr.mxu0 0.0
    %1513 = vmatpush1.msra.mxu0 0.0
    %1514 = vmatprep.subr.mxu0 0.0
    %1515 = vmatpush1.msra.mxu0 0.0
    %1516 = vmatprep.subr.mxu0 0.0
    %1517 = vmatpush1.msra.mxu0 0.0
    %1518 = vmatprep.subr.mxu0 0.0
    %1519 = vmatpush1.msra.mxu0 0.0
    %1520 = vmatprep.subr.mxu0 0.0
    %1521 = vmatpush1.msra.mxu0 0.0
    %1522 = vmatprep.subr.mxu0 0.0
    %1523 = vmatpush1.msra.mxu0 0.0
    %1524 = vmatprep.subr.mxu0 0.0
    %1525 = vmatpush1.msra.mxu0 %v113
    %1526 = vmatprep.subr.mxu0 0.0
    %1527 = vmatpush1.msra.mxu0 %v112
    %1528 = vmatprep.subr.mxu0 0.0
    %1529 = vmatpush2.msra.mxu0 0.0
    %1530 = vmatprep.subr.mxu0 0.0
    %1531 = vmatpush2.msra.mxu0 0.0
    %1532 = vmatprep.subr.mxu0 0.0
    %1533 = vmatpush2.msra.mxu0 0.0
    %1534 = vmatprep.subr.mxu0 0.0
    %1535 = vmatpush2.msra.mxu0 0.0
    %1536 = vmatprep.subr.mxu0 0.0
    %1537 = vmatpush2.msra.mxu0 0.0
    %1538 = vmatprep.subr.mxu0 0.0
    %1539 = vmatpush2.msra.mxu0 0.0
    %1540 = vmatprep.subr.mxu0 0.0
    %1541 = vmatpush2.msra.mxu0 0.0
    %1542 = vmatprep.subr.mxu0 0.0
    %1543 = vmatpush2.msra.mxu0 0.0
    %1544 = vmatprep.subr.mxu0 0.0
    %1545 = vmatpush2.msra.mxu0 0.0
    %1546 = vmatprep.subr.mxu0 0.0
    %1547 = vmatpush2.msra.mxu0 0.0
    %1548 = vmatprep.subr.mxu0 0.0
    %1549 = vmatpush2.msra.mxu0 0.0
    %1550 = vmatprep.subr.mxu0 0.0
    %1551 = vmatpush2.msra.mxu0 0.0
    %1552 = vmatprep.subr.mxu0 0.0
    %1553 = vmatpush2.msra.mxu0 0.0
    %1554 = vmatprep.subr.mxu0 0.0
    %1555 = vmatpush2.msra.mxu0 0.0
    %1556 = vmatprep.subr.mxu0 0.0
    %1557 = vmatpush2.msra.mxu0 0.0
    %1558 = vmatprep.subr.mxu0 0.0
    %1559 = vmatpush2.msra.mxu0 0.0
    %1560 = vmatprep.mubr.f32.mxu0 0.0
    %1561 = vmatmul.mubr.f32.gmra.mxu0 %v1494
    %v1562 = vpop.f32.mrf.mxu0
    %v1563 = vadd.f32 %v366, %v1562
    %v1564 = vpop.f32.mrf.mxu0
    %1565 = vdwg.mxu0
    %s1566 = scalar_lea.vmem [#allocation7], 48
    %v1567 = vld [vmem:[%s1566] sm:$0xff]
    %v1568 = vld [vmem:[%s1566 + $0x8] sm:$0xff]
    %v1570 = vsel %vm744, %v1563, 0
    %1572 = vmatprep.subr.mxu0 0.0
    %1573 = vmatpush1.msra.mxu0 0.0
    %1574 = vmatprep.subr.mxu0 0.0
    %1575 = vmatpush1.msra.mxu0 0.0
    %1576 = vmatprep.subr.mxu0 0.0
    %1577 = vmatpush1.msra.mxu0 0.0
    %1578 = vmatprep.subr.mxu0 0.0
    %1579 = vmatpush1.msra.mxu0 0.0
    %1580 = vmatprep.subr.mxu0 0.0
    %1581 = vmatpush1.msra.mxu0 0.0
    %1582 = vmatprep.subr.mxu0 0.0
    %1583 = vmatpush1.msra.mxu0 0.0
    %1584 = vmatprep.subr.mxu0 0.0
    %1585 = vmatpush1.msra.mxu0 0.0
    %1586 = vmatprep.subr.mxu0 0.0
    %1587 = vmatpush1.msra.mxu0 0.0
    %1588 = vmatprep.subr.mxu0 0.0
    %1589 = vmatpush1.msra.mxu0 0.0
    %1590 = vmatprep.subr.mxu0 0.0
    %1591 = vmatpush1.msra.mxu0 0.0
    %1592 = vmatprep.subr.mxu0 0.0
    %1593 = vmatpush1.msra.mxu0 0.0
    %1594 = vmatprep.subr.mxu0 0.0
    %1595 = vmatpush1.msra.mxu0 0.0
    %1596 = vmatprep.subr.mxu0 0.0
    %1597 = vmatpush1.msra.mxu0 0.0
    %1598 = vmatprep.subr.mxu0 0.0
    %1599 = vmatpush1.msra.mxu0 0.0
    %1600 = vmatprep.subr.mxu0 0.0
    %1601 = vmatpush1.msra.mxu0 0.0
    %1602 = vmatprep.subr.mxu0 %v1568
    %1603 = vmatpush1.msra.mxu0 %v1567
    %1604 = vmatprep.subr.mxu0 0.0
    %1605 = vmatpush2.msra.mxu0 0.0
    %1606 = vmatprep.subr.mxu0 0.0
    %1607 = vmatpush2.msra.mxu0 0.0
    %1608 = vmatprep.subr.mxu0 0.0
    %1609 = vmatpush2.msra.mxu0 0.0
    %1610 = vmatprep.subr.mxu0 0.0
    %1611 = vmatpush2.msra.mxu0 0.0
    %1612 = vmatprep.subr.mxu0 0.0
    %1613 = vmatpush2.msra.mxu0 0.0
    %1614 = vmatprep.subr.mxu0 0.0
    %1615 = vmatpush2.msra.mxu0 0.0
    %1616 = vmatprep.subr.mxu0 0.0
    %1617 = vmatpush2.msra.mxu0 0.0
    %1618 = vmatprep.subr.mxu0 0.0
    %1619 = vmatpush2.msra.mxu0 0.0
    %1620 = vmatprep.subr.mxu0 0.0
    %1621 = vmatpush2.msra.mxu0 0.0
    %1622 = vmatprep.subr.mxu0 0.0
    %1623 = vmatpush2.msra.mxu0 0.0
    %1624 = vmatprep.subr.mxu0 0.0
    %1625 = vmatpush2.msra.mxu0 0.0
    %1626 = vmatprep.subr.mxu0 0.0
    %1627 = vmatpush2.msra.mxu0 0.0
    %1628 = vmatprep.subr.mxu0 0.0
    %1629 = vmatpush2.msra.mxu0 0.0
    %1630 = vmatprep.subr.mxu0 0.0
    %1631 = vmatpush2.msra.mxu0 0.0
    %1632 = vmatprep.subr.mxu0 0.0
    %1633 = vmatpush2.msra.mxu0 0.0
    %1634 = vmatprep.subr.mxu0 0.0
    %1635 = vmatpush2.msra.mxu0 0.0
    %1636 = vmatprep.mubr.f32.mxu0 0.0
    %1637 = vmatmul.mubr.f32.gmra.mxu0 %v1570
    %v1638 = vpop.f32.mrf.mxu0
    %v1639 = vadd.f32 0.0, %v1638
    %v1640 = vpop.f32.mrf.mxu0
    %v1641 = vadd.f32 0.0, %v1640
    %1642 = vdwg.mxu0
    %v1643 = vadd.f32 %v1267, %v1639
    %v1644 = vadd.f32 %v1268, %v1641
    %s1645 = scalar_lea.vmem %s0, 8
    %v1646 = vld [vmem:[%s1645] sm:$0x3]
    %v1648 = vsel %vm122, %v1646, 0
    %1650 = vmatprep.subr.mxu0 0.0
    %1651 = vmatpush1.msra.mxu0 0.0
    %1652 = vmatprep.subr.mxu0 0.0
    %1653 = vmatpush1.msra.mxu0 0.0
    %1654 = vmatprep.subr.mxu0 0.0
    %1655 = vmatpush1.msra.mxu0 0.0
    %1656 = vmatprep.subr.mxu0 0.0
    %1657 = vmatpush1.msra.mxu0 0.0
    %1658 = vmatprep.subr.mxu0 0.0
    %1659 = vmatpush1.msra.mxu0 0.0
    %1660 = vmatprep.subr.mxu0 0.0
    %1661 = vmatpush1.msra.mxu0 0.0
    %1662 = vmatprep.subr.mxu0 0.0
    %1663 = vmatpush1.msra.mxu0 0.0
    %1664 = vmatprep.subr.mxu0 0.0
    %1665 = vmatpush1.msra.mxu0 0.0
    %1666 = vmatprep.subr.mxu0 0.0
    %1667 = vmatpush1.msra.mxu0 0.0
    %1668 = vmatprep.subr.mxu0 0.0
    %1669 = vmatpush1.msra.mxu0 0.0
    %1670 = vmatprep.subr.mxu0 0.0
    %1671 = vmatpush1.msra.mxu0 0.0
    %1672 = vmatprep.subr.mxu0 0.0
    %1673 = vmatpush1.msra.mxu0 0.0
    %1674 = vmatprep.subr.mxu0 0.0
    %1675 = vmatpush1.msra.mxu0 0.0
    %1676 = vmatprep.subr.mxu0 0.0
    %1677 = vmatpush1.msra.mxu0 %v128
    %1678 = vmatprep.subr.mxu0 0.0
    %1679 = vmatpush1.msra.mxu0 %v99
    %1680 = vmatprep.subr.mxu0 0.0
    %1681 = vmatpush1.msra.mxu0 %v98
    %1682 = vmatprep.subr.mxu0 0.0
    %1683 = vmatpush2.msra.mxu0 0.0
    %1684 = vmatprep.subr.mxu0 0.0
    %1685 = vmatpush2.msra.mxu0 0.0
    %1686 = vmatprep.subr.mxu0 0.0
    %1687 = vmatpush2.msra.mxu0 0.0
    %1688 = vmatprep.subr.mxu0 0.0
    %1689 = vmatpush2.msra.mxu0 0.0
    %1690 = vmatprep.subr.mxu0 0.0
    %1691 = vmatpush2.msra.mxu0 0.0
    %1692 = vmatprep.subr.mxu0 0.0
    %1693 = vmatpush2.msra.mxu0 0.0
    %1694 = vmatprep.subr.mxu0 0.0
    %1695 = vmatpush2.msra.mxu0 0.0
    %1696 = vmatprep.subr.mxu0 0.0
    %1697 = vmatpush2.msra.mxu0 0.0
    %1698 = vmatprep.subr.mxu0 0.0
    %1699 = vmatpush2.msra.mxu0 0.0
    %1700 = vmatprep.subr.mxu0 0.0
    %1701 = vmatpush2.msra.mxu0 0.0
    %1702 = vmatprep.subr.mxu0 0.0
    %1703 = vmatpush2.msra.mxu0 0.0
    %1704 = vmatprep.subr.mxu0 0.0
    %1705 = vmatpush2.msra.mxu0 0.0
    %1706 = vmatprep.subr.mxu0 0.0
    %1707 = vmatpush2.msra.mxu0 0.0
    %1708 = vmatprep.subr.mxu0 0.0
    %1709 = vmatpush2.msra.mxu0 0.0
    %1710 = vmatprep.subr.mxu0 0.0
    %1711 = vmatpush2.msra.mxu0 0.0
    %1712 = vmatprep.subr.mxu0 0.0
    %1713 = vmatpush2.msra.mxu0 0.0
    %1714 = vmatprep.mubr.f32.mxu0 0.0
    %1715 = vmatmul.mubr.f32.gmra.mxu0 %v1648
    %v1716 = vpop.f32.mrf.mxu0
    %v1717 = vadd.f32 %v120, %v1716
    %v1718 = vpop.f32.mrf.mxu0
    %1719 = vdwg.mxu0
    %v1720 = vmax.f32 %v1717, 0.0
    %v1722 = vsel %vm207, %v1720, 0
    %1724 = vmatprep.subr.mxu0 0.0
    %1725 = vmatpush1.msra.mxu0 0.0
    %1726 = vmatprep.subr.mxu0 0.0
    %1727 = vmatpush1.msra.mxu0 0.0
    %1728 = vmatprep.subr.mxu0 0.0
    %1729 = vmatpush1.msra.mxu0 0.0
    %1730 = vmatprep.subr.mxu0 0.0
    %1731 = vmatpush1.msra.mxu0 0.0
    %1732 = vmatprep.subr.mxu0 0.0
    %1733 = vmatpush1.msra.mxu0 0.0
    %1734 = vmatprep.subr.mxu0 0.0
    %1735 = vmatpush1.msra.mxu0 0.0
    %1736 = vmatprep.subr.mxu0 0.0
    %1737 = vmatpush1.msra.mxu0 0.0
    %1738 = vmatprep.subr.mxu0 0.0
    %1739 = vmatpush1.msra.mxu0 0.0
    %1740 = vmatprep.subr.mxu0 0.0
    %1741 = vmatpush1.msra.mxu0 0.0
    %1742 = vmatprep.subr.mxu0 0.0
    %1743 = vmatpush1.msra.mxu0 0.0
    %1744 = vmatprep.subr.mxu0 0.0
    %1745 = vmatpush1.msra.mxu0 0.0
    %1746 = vmatprep.subr.mxu0 0.0
    %1747 = vmatpush1.msra.mxu0 0.0
    %1748 = vmatprep.subr.mxu0 0.0
    %1749 = vmatpush1.msra.mxu0 %v105
    %1750 = vmatprep.subr.mxu0 0.0
    %1751 = vmatpush1.msra.mxu0 %v104
    %1752 = vmatprep.subr.mxu0 0.0
    %1753 = vmatpush1.msra.mxu0 %v103
    %1754 = vmatprep.subr.mxu0 0.0
    %1755 = vmatpush1.msra.mxu0 %v102
    %1756 = vmatprep.subr.mxu0 0.0
    %1757 = vmatpush2.msra.mxu0 0.0
    %1758 = vmatprep.subr.mxu0 0.0
    %1759 = vmatpush2.msra.mxu0 0.0
    %1760 = vmatprep.subr.mxu0 0.0
    %1761 = vmatpush2.msra.mxu0 0.0
    %1762 = vmatprep.subr.mxu0 0.0
    %1763 = vmatpush2.msra.mxu0 0.0
    %1764 = vmatprep.subr.mxu0 0.0
    %1765 = vmatpush2.msra.mxu0 0.0
    %1766 = vmatprep.subr.mxu0 0.0
    %1767 = vmatpush2.msra.mxu0 0.0
    %1768 = vmatprep.subr.mxu0 0.0
    %1769 = vmatpush2.msra.mxu0 0.0
    %1770 = vmatprep.subr.mxu0 0.0
    %1771 = vmatpush2.msra.mxu0 0.0
    %1772 = vmatprep.subr.mxu0 0.0
    %1773 = vmatpush2.msra.mxu0 0.0
    %1774 = vmatprep.subr.mxu0 0.0
    %1775 = vmatpush2.msra.mxu0 0.0
    %1776 = vmatprep.subr.mxu0 0.0
    %1777 = vmatpush2.msra.mxu0 0.0
    %1778 = vmatprep.subr.mxu0 0.0
    %1779 = vmatpush2.msra.mxu0 0.0
    %1780 = vmatprep.subr.mxu0 0.0
    %1781 = vmatpush2.msra.mxu0 0.0
    %1782 = vmatprep.subr.mxu0 0.0
    %1783 = vmatpush2.msra.mxu0 0.0
    %1784 = vmatprep.subr.mxu0 0.0
    %1785 = vmatpush2.msra.mxu0 0.0
    %1786 = vmatprep.subr.mxu0 0.0
    %1787 = vmatpush2.msra.mxu0 0.0
    %1788 = vmatprep.mubr.f32.mxu0 0.0
    %1789 = vmatmul.mubr.f32.gmra.mxu0 %v1722
    %v1790 = vpop.f32.mrf.mxu0
    %v1791 = vadd.f32 %v205, %v1790
    %v1792 = vpop.f32.mrf.mxu0
    %1793 = vdwg.mxu0
    %v1794 = vmax.f32 %v1791, 0.0
    %v1796 = vsel %vm207, %v1794, 0
    %1798 = vmatprep.subr.mxu0 0.0
    %1799 = vmatpush1.msra.mxu0 0.0
    %1800 = vmatprep.subr.mxu0 0.0
    %1801 = vmatpush1.msra.mxu0 0.0
    %1802 = vmatprep.subr.mxu0 0.0
    %1803 = vmatpush1.msra.mxu0 0.0
    %1804 = vmatprep.subr.mxu0 0.0
    %1805 = vmatpush1.msra.mxu0 0.0
    %1806 = vmatprep.subr.mxu0 0.0
    %1807 = vmatpush1.msra.mxu0 0.0
    %1808 = vmatprep.subr.mxu0 0.0
    %1809 = vmatpush1.msra.mxu0 0.0
    %1810 = vmatprep.subr.mxu0 0.0
    %1811 = vmatpush1.msra.mxu0 0.0
    %1812 = vmatprep.subr.mxu0 0.0
    %1813 = vmatpush1.msra.mxu0 0.0
    %1814 = vmatprep.subr.mxu0 0.0
    %1815 = vmatpush1.msra.mxu0 0.0
    %1816 = vmatprep.subr.mxu0 0.0
    %1817 = vmatpush1.msra.mxu0 0.0
    %1818 = vmatprep.subr.mxu0 0.0
    %1819 = vmatpush1.msra.mxu0 0.0
    %1820 = vmatprep.subr.mxu0 0.0
    %1821 = vmatpush1.msra.mxu0 0.0
    %1822 = vmatprep.subr.mxu0 0.0
    %1823 = vmatpush1.msra.mxu0 %v110
    %1824 = vmatprep.subr.mxu0 0.0
    %1825 = vmatpush1.msra.mxu0 %v109
    %1826 = vmatprep.subr.mxu0 0.0
    %1827 = vmatpush1.msra.mxu0 %v108
    %1828 = vmatprep.subr.mxu0 0.0
    %1829 = vmatpush1.msra.mxu0 %v107
    %1830 = vmatprep.subr.mxu0 0.0
    %1831 = vmatpush2.msra.mxu0 0.0
    %1832 = vmatprep.subr.mxu0 0.0
    %1833 = vmatpush2.msra.mxu0 0.0
    %1834 = vmatprep.subr.mxu0 0.0
    %1835 = vmatpush2.msra.mxu0 0.0
    %1836 = vmatprep.subr.mxu0 0.0
    %1837 = vmatpush2.msra.mxu0 0.0
    %1838 = vmatprep.subr.mxu0 0.0
    %1839 = vmatpush2.msra.mxu0 0.0
    %1840 = vmatprep.subr.mxu0 0.0
    %1841 = vmatpush2.msra.mxu0 0.0
    %1842 = vmatprep.subr.mxu0 0.0
    %1843 = vmatpush2.msra.mxu0 0.0
    %1844 = vmatprep.subr.mxu0 0.0
    %1845 = vmatpush2.msra.mxu0 0.0
    %1846 = vmatprep.subr.mxu0 0.0
    %1847 = vmatpush2.msra.mxu0 0.0
    %1848 = vmatprep.subr.mxu0 0.0
    %1849 = vmatpush2.msra.mxu0 0.0
    %1850 = vmatprep.subr.mxu0 0.0
    %1851 = vmatpush2.msra.mxu0 0.0
    %1852 = vmatprep.subr.mxu0 0.0
    %1853 = vmatpush2.msra.mxu0 0.0
    %1854 = vmatprep.subr.mxu0 0.0
    %1855 = vmatpush2.msra.mxu0 0.0
    %1856 = vmatprep.subr.mxu0 0.0
    %1857 = vmatpush2.msra.mxu0 0.0
    %1858 = vmatprep.subr.mxu0 0.0
    %1859 = vmatpush2.msra.mxu0 0.0
    %1860 = vmatprep.subr.mxu0 0.0
    %1861 = vmatpush2.msra.mxu0 0.0
    %1862 = vmatprep.mubr.f32.mxu0 0.0
    %1863 = vmatmul.mubr.f32.gmra.mxu0 %v1796
    %v1864 = vpop.f32.mrf.mxu0
    %v1865 = vadd.f32 %v286, %v1864
    %v1866 = vpop.f32.mrf.mxu0
    %1867 = vdwg.mxu0
    %v1868 = vmax.f32 %v1865, 0.0
    %v1870 = vsel %vm368, %v1868, 0
    %1872 = vmatprep.subr.mxu0 0.0
    %1873 = vmatpush1.msra.mxu0 0.0
    %1874 = vmatprep.subr.mxu0 0.0
    %1875 = vmatpush1.msra.mxu0 0.0
    %1876 = vmatprep.subr.mxu0 0.0
    %1877 = vmatpush1.msra.mxu0 0.0
    %1878 = vmatprep.subr.mxu0 0.0
    %1879 = vmatpush1.msra.mxu0 0.0
    %1880 = vmatprep.subr.mxu0 0.0
    %1881 = vmatpush1.msra.mxu0 0.0
    %1882 = vmatprep.subr.mxu0 0.0
    %1883 = vmatpush1.msra.mxu0 0.0
    %1884 = vmatprep.subr.mxu0 0.0
    %1885 = vmatpush1.msra.mxu0 0.0
    %1886 = vmatprep.subr.mxu0 0.0
    %1887 = vmatpush1.msra.mxu0 0.0
    %1888 = vmatprep.subr.mxu0 0.0
    %1889 = vmatpush1.msra.mxu0 0.0
    %1890 = vmatprep.subr.mxu0 0.0
    %1891 = vmatpush1.msra.mxu0 0.0
    %1892 = vmatprep.subr.mxu0 0.0
    %1893 = vmatpush1.msra.mxu0 0.0
    %1894 = vmatprep.subr.mxu0 0.0
    %1895 = vmatpush1.msra.mxu0 0.0
    %1896 = vmatprep.subr.mxu0 0.0
    %1897 = vmatpush1.msra.mxu0 0.0
    %1898 = vmatprep.subr.mxu0 0.0
    %1899 = vmatpush1.msra.mxu0 0.0
    %1900 = vmatprep.subr.mxu0 0.0
    %1901 = vmatpush1.msra.mxu0 %v113
    %1902 = vmatprep.subr.mxu0 0.0
    %1903 = vmatpush1.msra.mxu0 %v112
    %1904 = vmatprep.subr.mxu0 0.0
    %1905 = vmatpush2.msra.mxu0 0.0
    %1906 = vmatprep.subr.mxu0 0.0
    %1907 = vmatpush2.msra.mxu0 0.0
    %1908 = vmatprep.subr.mxu0 0.0
    %1909 = vmatpush2.msra.mxu0 0.0
    %1910 = vmatprep.subr.mxu0 0.0
    %1911 = vmatpush2.msra.mxu0 0.0
    %1912 = vmatprep.subr.mxu0 0.0
    %1913 = vmatpush2.msra.mxu0 0.0
    %1914 = vmatprep.subr.mxu0 0.0
    %1915 = vmatpush2.msra.mxu0 0.0
    %1916 = vmatprep.subr.mxu0 0.0
    %1917 = vmatpush2.msra.mxu0 0.0
    %1918 = vmatprep.subr.mxu0 0.0
    %1919 = vmatpush2.msra.mxu0 0.0
    %1920 = vmatprep.subr.mxu0 0.0
    %1921 = vmatpush2.msra.mxu0 0.0
    %1922 = vmatprep.subr.mxu0 0.0
    %1923 = vmatpush2.msra.mxu0 0.0
    %1924 = vmatprep.subr.mxu0 0.0
    %1925 = vmatpush2.msra.mxu0 0.0
    %1926 = vmatprep.subr.mxu0 0.0
    %1927 = vmatpush2.msra.mxu0 0.0
    %1928 = vmatprep.subr.mxu0 0.0
    %1929 = vmatpush2.msra.mxu0 0.0
    %1930 = vmatprep.subr.mxu0 0.0
    %1931 = vmatpush2.msra.mxu0 0.0
    %1932 = vmatprep.subr.mxu0 0.0
    %1933 = vmatpush2.msra.mxu0 0.0
    %1934 = vmatprep.subr.mxu0 0.0
    %1935 = vmatpush2.msra.mxu0 0.0
    %1936 = vmatprep.mubr.f32.mxu0 0.0
    %1937 = vmatmul.mubr.f32.gmra.mxu0 %v1870
    %v1938 = vpop.f32.mrf.mxu0
    %v1939 = vadd.f32 %v366, %v1938
    %v1940 = vpop.f32.mrf.mxu0
    %1941 = vdwg.mxu0
    %s1942 = scalar_lea.vmem [#allocation7], 64
    %v1943 = vld [vmem:[%s1942] sm:$0xff]
    %v1944 = vld [vmem:[%s1942 + $0x8] sm:$0xff]
    %v1946 = vsel %vm744, %v1939, 0
    %1948 = vmatprep.subr.mxu0 0.0
    %1949 = vmatpush1.msra.mxu0 0.0
    %1950 = vmatprep.subr.mxu0 0.0
    %1951 = vmatpush1.msra.mxu0 0.0
    %1952 = vmatprep.subr.mxu0 0.0
    %1953 = vmatpush1.msra.mxu0 0.0
    %1954 = vmatprep.subr.mxu0 0.0
    %1955 = vmatpush1.msra.mxu0 0.0
    %1956 = vmatprep.subr.mxu0 0.0
    %1957 = vmatpush1.msra.mxu0 0.0
    %1958 = vmatprep.subr.mxu0 0.0
    %1959 = vmatpush1.msra.mxu0 0.0
    %1960 = vmatprep.subr.mxu0 0.0
    %1961 = vmatpush1.msra.mxu0 0.0
    %1962 = vmatprep.subr.mxu0 0.0
    %1963 = vmatpush1.msra.mxu0 0.0
    %1964 = vmatprep.subr.mxu0 0.0
    %1965 = vmatpush1.msra.mxu0 0.0
    %1966 = vmatprep.subr.mxu0 0.0
    %1967 = vmatpush1.msra.mxu0 0.0
    %1968 = vmatprep.subr.mxu0 0.0
    %1969 = vmatpush1.msra.mxu0 0.0
    %1970 = vmatprep.subr.mxu0 0.0
    %1971 = vmatpush1.msra.mxu0 0.0
    %1972 = vmatprep.subr.mxu0 0.0
    %1973 = vmatpush1.msra.mxu0 0.0
    %1974 = vmatprep.subr.mxu0 0.0
    %1975 = vmatpush1.msra.mxu0 0.0
    %1976 = vmatprep.subr.mxu0 0.0
    %1977 = vmatpush1.msra.mxu0 0.0
    %1978 = vmatprep.subr.mxu0 %v1944
    %1979 = vmatpush1.msra.mxu0 %v1943
    %1980 = vmatprep.subr.mxu0 0.0
    %1981 = vmatpush2.msra.mxu0 0.0
    %1982 = vmatprep.subr.mxu0 0.0
    %1983 = vmatpush2.msra.mxu0 0.0
    %1984 = vmatprep.subr.mxu0 0.0
    %1985 = vmatpush2.msra.mxu0 0.0
    %1986 = vmatprep.subr.mxu0 0.0
    %1987 = vmatpush2.msra.mxu0 0.0
    %1988 = vmatprep.subr.mxu0 0.0
    %1989 = vmatpush2.msra.mxu0 0.0
    %1990 = vmatprep.subr.mxu0 0.0
    %1991 = vmatpush2.msra.mxu0 0.0
    %1992 = vmatprep.subr.mxu0 0.0
    %1993 = vmatpush2.msra.mxu0 0.0
    %1994 = vmatprep.subr.mxu0 0.0
    %1995 = vmatpush2.msra.mxu0 0.0
    %1996 = vmatprep.subr.mxu0 0.0
    %1997 = vmatpush2.msra.mxu0 0.0
    %1998 = vmatprep.subr.mxu0 0.0
    %1999 = vmatpush2.msra.mxu0 0.0
    %2000 = vmatprep.subr.mxu0 0.0
    %2001 = vmatpush2.msra.mxu0 0.0
    %2002 = vmatprep.subr.mxu0 0.0
    %2003 = vmatpush2.msra.mxu0 0.0
    %2004 = vmatprep.subr.mxu0 0.0
    %2005 = vmatpush2.msra.mxu0 0.0
    %2006 = vmatprep.subr.mxu0 0.0
    %2007 = vmatpush2.msra.mxu0 0.0
    %2008 = vmatprep.subr.mxu0 0.0
    %2009 = vmatpush2.msra.mxu0 0.0
    %2010 = vmatprep.subr.mxu0 0.0
    %2011 = vmatpush2.msra.mxu0 0.0
    %2012 = vmatprep.mubr.f32.mxu0 0.0
    %2013 = vmatmul.mubr.f32.gmra.mxu0 %v1946
    %v2014 = vpop.f32.mrf.mxu0
    %v2015 = vadd.f32 0.0, %v2014
    %v2016 = vpop.f32.mrf.mxu0
    %v2017 = vadd.f32 0.0, %v2016
    %2018 = vdwg.mxu0
    %v2019 = vadd.f32 %v1643, %v2015
    %v2020 = vadd.f32 %v1644, %v2017
    %s2021 = scalar_lea.vmem %s0, 10
    %v2022 = vld [vmem:[%s2021] sm:$0x3]
    %v2024 = vsel %vm122, %v2022, 0
    %2026 = vmatprep.subr.mxu0 0.0
    %2027 = vmatpush1.msra.mxu0 0.0
    %2028 = vmatprep.subr.mxu0 0.0
    %2029 = vmatpush1.msra.mxu0 0.0
    %2030 = vmatprep.subr.mxu0 0.0
    %2031 = vmatpush1.msra.mxu0 0.0
    %2032 = vmatprep.subr.mxu0 0.0
    %2033 = vmatpush1.msra.mxu0 0.0
    %2034 = vmatprep.subr.mxu0 0.0
    %2035 = vmatpush1.msra.mxu0 0.0
    %2036 = vmatprep.subr.mxu0 0.0
    %2037 = vmatpush1.msra.mxu0 0.0
    %2038 = vmatprep.subr.mxu0 0.0
    %2039 = vmatpush1.msra.mxu0 0.0
    %2040 = vmatprep.subr.mxu0 0.0
    %2041 = vmatpush1.msra.mxu0 0.0
    %2042 = vmatprep.subr.mxu0 0.0
    %2043 = vmatpush1.msra.mxu0 0.0
    %2044 = vmatprep.subr.mxu0 0.0
    %2045 = vmatpush1.msra.mxu0 0.0
    %2046 = vmatprep.subr.mxu0 0.0
    %2047 = vmatpush1.msra.mxu0 0.0
    %2048 = vmatprep.subr.mxu0 0.0
    %2049 = vmatpush1.msra.mxu0 0.0
    %2050 = vmatprep.subr.mxu0 0.0
    %2051 = vmatpush1.msra.mxu0 0.0
    %2052 = vmatprep.subr.mxu0 0.0
    %2053 = vmatpush1.msra.mxu0 %v128
    %2054 = vmatprep.subr.mxu0 0.0
    %2055 = vmatpush1.msra.mxu0 %v99
    %2056 = vmatprep.subr.mxu0 0.0
    %2057 = vmatpush1.msra.mxu0 %v98
    %2058 = vmatprep.subr.mxu0 0.0
    %2059 = vmatpush2.msra.mxu0 0.0
    %2060 = vmatprep.subr.mxu0 0.0
    %2061 = vmatpush2.msra.mxu0 0.0
    %2062 = vmatprep.subr.mxu0 0.0
    %2063 = vmatpush2.msra.mxu0 0.0
    %2064 = vmatprep.subr.mxu0 0.0
    %2065 = vmatpush2.msra.mxu0 0.0
    %2066 = vmatprep.subr.mxu0 0.0
    %2067 = vmatpush2.msra.mxu0 0.0
    %2068 = vmatprep.subr.mxu0 0.0
    %2069 = vmatpush2.msra.mxu0 0.0
    %2070 = vmatprep.subr.mxu0 0.0
    %2071 = vmatpush2.msra.mxu0 0.0
    %2072 = vmatprep.subr.mxu0 0.0
    %2073 = vmatpush2.msra.mxu0 0.0
    %2074 = vmatprep.subr.mxu0 0.0
    %2075 = vmatpush2.msra.mxu0 0.0
    %2076 = vmatprep.subr.mxu0 0.0
    %2077 = vmatpush2.msra.mxu0 0.0
    %2078 = vmatprep.subr.mxu0 0.0
    %2079 = vmatpush2.msra.mxu0 0.0
    %2080 = vmatprep.subr.mxu0 0.0
    %2081 = vmatpush2.msra.mxu0 0.0
    %2082 = vmatprep.subr.mxu0 0.0
    %2083 = vmatpush2.msra.mxu0 0.0
    %2084 = vmatprep.subr.mxu0 0.0
    %2085 = vmatpush2.msra.mxu0 0.0
    %2086 = vmatprep.subr.mxu0 0.0
    %2087 = vmatpush2.msra.mxu0 0.0
    %2088 = vmatprep.subr.mxu0 0.0
    %2089 = vmatpush2.msra.mxu0 0.0
    %2090 = vmatprep.mubr.f32.mxu0 0.0
    %2091 = vmatmul.mubr.f32.gmra.mxu0 %v2024
    %v2092 = vpop.f32.mrf.mxu0
    %v2093 = vadd.f32 %v120, %v2092
    %v2094 = vpop.f32.mrf.mxu0
    %2095 = vdwg.mxu0
    %v2096 = vmax.f32 %v2093, 0.0
    %v2098 = vsel %vm207, %v2096, 0
    %2100 = vmatprep.subr.mxu0 0.0
    %2101 = vmatpush1.msra.mxu0 0.0
    %2102 = vmatprep.subr.mxu0 0.0
    %2103 = vmatpush1.msra.mxu0 0.0
    %2104 = vmatprep.subr.mxu0 0.0
    %2105 = vmatpush1.msra.mxu0 0.0
    %2106 = vmatprep.subr.mxu0 0.0
    %2107 = vmatpush1.msra.mxu0 0.0
    %2108 = vmatprep.subr.mxu0 0.0
    %2109 = vmatpush1.msra.mxu0 0.0
    %2110 = vmatprep.subr.mxu0 0.0
    %2111 = vmatpush1.msra.mxu0 0.0
    %2112 = vmatprep.subr.mxu0 0.0
    %2113 = vmatpush1.msra.mxu0 0.0
    %2114 = vmatprep.subr.mxu0 0.0
    %2115 = vmatpush1.msra.mxu0 0.0
    %2116 = vmatprep.subr.mxu0 0.0
    %2117 = vmatpush1.msra.mxu0 0.0
    %2118 = vmatprep.subr.mxu0 0.0
    %2119 = vmatpush1.msra.mxu0 0.0
    %2120 = vmatprep.subr.mxu0 0.0
    %2121 = vmatpush1.msra.mxu0 0.0
    %2122 = vmatprep.subr.mxu0 0.0
    %2123 = vmatpush1.msra.mxu0 0.0
    %2124 = vmatprep.subr.mxu0 0.0
    %2125 = vmatpush1.msra.mxu0 %v105
    %2126 = vmatprep.subr.mxu0 0.0
    %2127 = vmatpush1.msra.mxu0 %v104
    %2128 = vmatprep.subr.mxu0 0.0
    %2129 = vmatpush1.msra.mxu0 %v103
    %2130 = vmatprep.subr.mxu0 0.0
    %2131 = vmatpush1.msra.mxu0 %v102
    %2132 = vmatprep.subr.mxu0 0.0
    %2133 = vmatpush2.msra.mxu0 0.0
    %2134 = vmatprep.subr.mxu0 0.0
    %2135 = vmatpush2.msra.mxu0 0.0
    %2136 = vmatprep.subr.mxu0 0.0
    %2137 = vmatpush2.msra.mxu0 0.0
    %2138 = vmatprep.subr.mxu0 0.0
    %2139 = vmatpush2.msra.mxu0 0.0
    %2140 = vmatprep.subr.mxu0 0.0
    %2141 = vmatpush2.msra.mxu0 0.0
    %2142 = vmatprep.subr.mxu0 0.0
    %2143 = vmatpush2.msra.mxu0 0.0
    %2144 = vmatprep.subr.mxu0 0.0
    %2145 = vmatpush2.msra.mxu0 0.0
    %2146 = vmatprep.subr.mxu0 0.0
    %2147 = vmatpush2.msra.mxu0 0.0
    %2148 = vmatprep.subr.mxu0 0.0
    %2149 = vmatpush2.msra.mxu0 0.0
    %2150 = vmatprep.subr.mxu0 0.0
    %2151 = vmatpush2.msra.mxu0 0.0
    %2152 = vmatprep.subr.mxu0 0.0
    %2153 = vmatpush2.msra.mxu0 0.0
    %2154 = vmatprep.subr.mxu0 0.0
    %2155 = vmatpush2.msra.mxu0 0.0
    %2156 = vmatprep.subr.mxu0 0.0
    %2157 = vmatpush2.msra.mxu0 0.0
    %2158 = vmatprep.subr.mxu0 0.0
    %2159 = vmatpush2.msra.mxu0 0.0
    %2160 = vmatprep.subr.mxu0 0.0
    %2161 = vmatpush2.msra.mxu0 0.0
    %2162 = vmatprep.subr.mxu0 0.0
    %2163 = vmatpush2.msra.mxu0 0.0
    %2164 = vmatprep.mubr.f32.mxu0 0.0
    %2165 = vmatmul.mubr.f32.gmra.mxu0 %v2098
    %v2166 = vpop.f32.mrf.mxu0
    %v2167 = vadd.f32 %v205, %v2166
    %v2168 = vpop.f32.mrf.mxu0
    %2169 = vdwg.mxu0
    %v2170 = vmax.f32 %v2167, 0.0
    %v2172 = vsel %vm207, %v2170, 0
    %2174 = vmatprep.subr.mxu0 0.0
    %2175 = vmatpush1.msra.mxu0 0.0
    %2176 = vmatprep.subr.mxu0 0.0
    %2177 = vmatpush1.msra.mxu0 0.0
    %2178 = vmatprep.subr.mxu0 0.0
    %2179 = vmatpush1.msra.mxu0 0.0
    %2180 = vmatprep.subr.mxu0 0.0
    %2181 = vmatpush1.msra.mxu0 0.0
    %2182 = vmatprep.subr.mxu0 0.0
    %2183 = vmatpush1.msra.mxu0 0.0
    %2184 = vmatprep.subr.mxu0 0.0
    %2185 = vmatpush1.msra.mxu0 0.0
    %2186 = vmatprep.subr.mxu0 0.0
    %2187 = vmatpush1.msra.mxu0 0.0
    %2188 = vmatprep.subr.mxu0 0.0
    %2189 = vmatpush1.msra.mxu0 0.0
    %2190 = vmatprep.subr.mxu0 0.0
    %2191 = vmatpush1.msra.mxu0 0.0
    %2192 = vmatprep.subr.mxu0 0.0
    %2193 = vmatpush1.msra.mxu0 0.0
    %2194 = vmatprep.subr.mxu0 0.0
    %2195 = vmatpush1.msra.mxu0 0.0
    %2196 = vmatprep.subr.mxu0 0.0
    %2197 = vmatpush1.msra.mxu0 0.0
    %2198 = vmatprep.subr.mxu0 0.0
    %2199 = vmatpush1.msra.mxu0 %v110
    %2200 = vmatprep.subr.mxu0 0.0
    %2201 = vmatpush1.msra.mxu0 %v109
    %2202 = vmatprep.subr.mxu0 0.0
    %2203 = vmatpush1.msra.mxu0 %v108
    %2204 = vmatprep.subr.mxu0 0.0
    %2205 = vmatpush1.msra.mxu0 %v107
    %2206 = vmatprep.subr.mxu0 0.0
    %2207 = vmatpush2.msra.mxu0 0.0
    %2208 = vmatprep.subr.mxu0 0.0
    %2209 = vmatpush2.msra.mxu0 0.0
    %2210 = vmatprep.subr.mxu0 0.0
    %2211 = vmatpush2.msra.mxu0 0.0
    %2212 = vmatprep.subr.mxu0 0.0
    %2213 = vmatpush2.msra.mxu0 0.0
    %2214 = vmatprep.subr.mxu0 0.0
    %2215 = vmatpush2.msra.mxu0 0.0
    %2216 = vmatprep.subr.mxu0 0.0
    %2217 = vmatpush2.msra.mxu0 0.0
    %2218 = vmatprep.subr.mxu0 0.0
    %2219 = vmatpush2.msra.mxu0 0.0
    %2220 = vmatprep.subr.mxu0 0.0
    %2221 = vmatpush2.msra.mxu0 0.0
    %2222 = vmatprep.subr.mxu0 0.0
    %2223 = vmatpush2.msra.mxu0 0.0
    %2224 = vmatprep.subr.mxu0 0.0
    %2225 = vmatpush2.msra.mxu0 0.0
    %2226 = vmatprep.subr.mxu0 0.0
    %2227 = vmatpush2.msra.mxu0 0.0
    %2228 = vmatprep.subr.mxu0 0.0
    %2229 = vmatpush2.msra.mxu0 0.0
    %2230 = vmatprep.subr.mxu0 0.0
    %2231 = vmatpush2.msra.mxu0 0.0
    %2232 = vmatprep.subr.mxu0 0.0
    %2233 = vmatpush2.msra.mxu0 0.0
    %2234 = vmatprep.subr.mxu0 0.0
    %2235 = vmatpush2.msra.mxu0 0.0
    %2236 = vmatprep.subr.mxu0 0.0
    %2237 = vmatpush2.msra.mxu0 0.0
    %2238 = vmatprep.mubr.f32.mxu0 0.0
    %2239 = vmatmul.mubr.f32.gmra.mxu0 %v2172
    %v2240 = vpop.f32.mrf.mxu0
    %v2241 = vadd.f32 %v286, %v2240
    %v2242 = vpop.f32.mrf.mxu0
    %2243 = vdwg.mxu0
    %v2244 = vmax.f32 %v2241, 0.0
    %v2246 = vsel %vm368, %v2244, 0
    %2248 = vmatprep.subr.mxu0 0.0
    %2249 = vmatpush1.msra.mxu0 0.0
    %2250 = vmatprep.subr.mxu0 0.0
    %2251 = vmatpush1.msra.mxu0 0.0
    %2252 = vmatprep.subr.mxu0 0.0
    %2253 = vmatpush1.msra.mxu0 0.0
    %2254 = vmatprep.subr.mxu0 0.0
    %2255 = vmatpush1.msra.mxu0 0.0
    %2256 = vmatprep.subr.mxu0 0.0
    %2257 = vmatpush1.msra.mxu0 0.0
    %2258 = vmatprep.subr.mxu0 0.0
    %2259 = vmatpush1.msra.mxu0 0.0
    %2260 = vmatprep.subr.mxu0 0.0
    %2261 = vmatpush1.msra.mxu0 0.0
    %2262 = vmatprep.subr.mxu0 0.0
    %2263 = vmatpush1.msra.mxu0 0.0
    %2264 = vmatprep.subr.mxu0 0.0
    %2265 = vmatpush1.msra.mxu0 0.0
    %2266 = vmatprep.subr.mxu0 0.0
    %2267 = vmatpush1.msra.mxu0 0.0
    %2268 = vmatprep.subr.mxu0 0.0
    %2269 = vmatpush1.msra.mxu0 0.0
    %2270 = vmatprep.subr.mxu0 0.0
    %2271 = vmatpush1.msra.mxu0 0.0
    %2272 = vmatprep.subr.mxu0 0.0
    %2273 = vmatpush1.msra.mxu0 0.0
    %2274 = vmatprep.subr.mxu0 0.0
    %2275 = vmatpush1.msra.mxu0 0.0
    %2276 = vmatprep.subr.mxu0 0.0
    %2277 = vmatpush1.msra.mxu0 %v113
    %2278 = vmatprep.subr.mxu0 0.0
    %2279 = vmatpush1.msra.mxu0 %v112
    %2280 = vmatprep.subr.mxu0 0.0
    %2281 = vmatpush2.msra.mxu0 0.0
    %2282 = vmatprep.subr.mxu0 0.0
    %2283 = vmatpush2.msra.mxu0 0.0
    %2284 = vmatprep.subr.mxu0 0.0
    %2285 = vmatpush2.msra.mxu0 0.0
    %2286 = vmatprep.subr.mxu0 0.0
    %2287 = vmatpush2.msra.mxu0 0.0
    %2288 = vmatprep.subr.mxu0 0.0
    %2289 = vmatpush2.msra.mxu0 0.0
    %2290 = vmatprep.subr.mxu0 0.0
    %2291 = vmatpush2.msra.mxu0 0.0
    %2292 = vmatprep.subr.mxu0 0.0
    %2293 = vmatpush2.msra.mxu0 0.0
    %2294 = vmatprep.subr.mxu0 0.0
    %2295 = vmatpush2.msra.mxu0 0.0
    %2296 = vmatprep.subr.mxu0 0.0
    %2297 = vmatpush2.msra.mxu0 0.0
    %2298 = vmatprep.subr.mxu0 0.0
    %2299 = vmatpush2.msra.mxu0 0.0
    %2300 = vmatprep.subr.mxu0 0.0
    %2301 = vmatpush2.msra.mxu0 0.0
    %2302 = vmatprep.subr.mxu0 0.0
    %2303 = vmatpush2.msra.mxu0 0.0
    %2304 = vmatprep.subr.mxu0 0.0
    %2305 = vmatpush2.msra.mxu0 0.0
    %2306 = vmatprep.subr.mxu0 0.0
    %2307 = vmatpush2.msra.mxu0 0.0
    %2308 = vmatprep.subr.mxu0 0.0
    %2309 = vmatpush2.msra.mxu0 0.0
    %2310 = vmatprep.subr.mxu0 0.0
    %2311 = vmatpush2.msra.mxu0 0.0
    %2312 = vmatprep.mubr.f32.mxu0 0.0
    %2313 = vmatmul.mubr.f32.gmra.mxu0 %v2246
    %v2314 = vpop.f32.mrf.mxu0
    %v2315 = vadd.f32 %v366, %v2314
    %v2316 = vpop.f32.mrf.mxu0
    %2317 = vdwg.mxu0
    %s2318 = scalar_lea.vmem [#allocation7], 80
    %v2319 = vld [vmem:[%s2318] sm:$0xff]
    %v2320 = vld [vmem:[%s2318 + $0x8] sm:$0xff]
    %v2322 = vsel %vm744, %v2315, 0
    %2324 = vmatprep.subr.mxu0 0.0
    %2325 = vmatpush1.msra.mxu0 0.0
    %2326 = vmatprep.subr.mxu0 0.0
    %2327 = vmatpush1.msra.mxu0 0.0
    %2328 = vmatprep.subr.mxu0 0.0
    %2329 = vmatpush1.msra.mxu0 0.0
    %2330 = vmatprep.subr.mxu0 0.0
    %2331 = vmatpush1.msra.mxu0 0.0
    %2332 = vmatprep.subr.mxu0 0.0
    %2333 = vmatpush1.msra.mxu0 0.0
    %2334 = vmatprep.subr.mxu0 0.0
    %2335 = vmatpush1.msra.mxu0 0.0
    %2336 = vmatprep.subr.mxu0 0.0
    %2337 = vmatpush1.msra.mxu0 0.0
    %2338 = vmatprep.subr.mxu0 0.0
    %2339 = vmatpush1.msra.mxu0 0.0
    %2340 = vmatprep.subr.mxu0 0.0
    %2341 = vmatpush1.msra.mxu0 0.0
    %2342 = vmatprep.subr.mxu0 0.0
    %2343 = vmatpush1.msra.mxu0 0.0
    %2344 = vmatprep.subr.mxu0 0.0
    %2345 = vmatpush1.msra.mxu0 0.0
    %2346 = vmatprep.subr.mxu0 0.0
    %2347 = vmatpush1.msra.mxu0 0.0
    %2348 = vmatprep.subr.mxu0 0.0
    %2349 = vmatpush1.msra.mxu0 0.0
    %2350 = vmatprep.subr.mxu0 0.0
    %2351 = vmatpush1.msra.mxu0 0.0
    %2352 = vmatprep.subr.mxu0 0.0
    %2353 = vmatpush1.msra.mxu0 0.0
    %2354 = vmatprep.subr.mxu0 %v2320
    %2355 = vmatpush1.msra.mxu0 %v2319
    %2356 = vmatprep.subr.mxu0 0.0
    %2357 = vmatpush2.msra.mxu0 0.0
    %2358 = vmatprep.subr.mxu0 0.0
    %2359 = vmatpush2.msra.mxu0 0.0
    %2360 = vmatprep.subr.mxu0 0.0
    %2361 = vmatpush2.msra.mxu0 0.0
    %2362 = vmatprep.subr.mxu0 0.0
    %2363 = vmatpush2.msra.mxu0 0.0
    %2364 = vmatprep.subr.mxu0 0.0
    %2365 = vmatpush2.msra.mxu0 0.0
    %2366 = vmatprep.subr.mxu0 0.0
    %2367 = vmatpush2.msra.mxu0 0.0
    %2368 = vmatprep.subr.mxu0 0.0
    %2369 = vmatpush2.msra.mxu0 0.0
    %2370 = vmatprep.subr.mxu0 0.0
    %2371 = vmatpush2.msra.mxu0 0.0
    %2372 = vmatprep.subr.mxu0 0.0
    %2373 = vmatpush2.msra.mxu0 0.0
    %2374 = vmatprep.subr.mxu0 0.0
    %2375 = vmatpush2.msra.mxu0 0.0
    %2376 = vmatprep.subr.mxu0 0.0
    %2377 = vmatpush2.msra.mxu0 0.0
    %2378 = vmatprep.subr.mxu0 0.0
    %2379 = vmatpush2.msra.mxu0 0.0
    %2380 = vmatprep.subr.mxu0 0.0
    %2381 = vmatpush2.msra.mxu0 0.0
    %2382 = vmatprep.subr.mxu0 0.0
    %2383 = vmatpush2.msra.mxu0 0.0
    %2384 = vmatprep.subr.mxu0 0.0
    %2385 = vmatpush2.msra.mxu0 0.0
    %2386 = vmatprep.subr.mxu0 0.0
    %2387 = vmatpush2.msra.mxu0 0.0
    %2388 = vmatprep.mubr.f32.mxu0 0.0
    %2389 = vmatmul.mubr.f32.gmra.mxu0 %v2322
    %v2390 = vpop.f32.mrf.mxu0
    %v2391 = vadd.f32 0.0, %v2390
    %v2392 = vpop.f32.mrf.mxu0
    %v2393 = vadd.f32 0.0, %v2392
    %2394 = vdwg.mxu0
    %v2395 = vadd.f32 %v2019, %v2391
    %v2396 = vadd.f32 %v2020, %v2393
    %s2397 = scalar_lea.vmem %s0, 12
    %v2398 = vld [vmem:[%s2397] sm:$0x3]
    %v2400 = vsel %vm122, %v2398, 0
    %2402 = vmatprep.subr.mxu0 0.0
    %2403 = vmatpush1.msra.mxu0 0.0
    %2404 = vmatprep.subr.mxu0 0.0
    %2405 = vmatpush1.msra.mxu0 0.0
    %2406 = vmatprep.subr.mxu0 0.0
    %2407 = vmatpush1.msra.mxu0 0.0
    %2408 = vmatprep.subr.mxu0 0.0
    %2409 = vmatpush1.msra.mxu0 0.0
    %2410 = vmatprep.subr.mxu0 0.0
    %2411 = vmatpush1.msra.mxu0 0.0
    %2412 = vmatprep.subr.mxu0 0.0
    %2413 = vmatpush1.msra.mxu0 0.0
    %2414 = vmatprep.subr.mxu0 0.0
    %2415 = vmatpush1.msra.mxu0 0.0
    %2416 = vmatprep.subr.mxu0 0.0
    %2417 = vmatpush1.msra.mxu0 0.0
    %2418 = vmatprep.subr.mxu0 0.0
    %2419 = vmatpush1.msra.mxu0 0.0
    %2420 = vmatprep.subr.mxu0 0.0
    %2421 = vmatpush1.msra.mxu0 0.0
    %2422 = vmatprep.subr.mxu0 0.0
    %2423 = vmatpush1.msra.mxu0 0.0
    %2424 = vmatprep.subr.mxu0 0.0
    %2425 = vmatpush1.msra.mxu0 0.0
    %2426 = vmatprep.subr.mxu0 0.0
    %2427 = vmatpush1.msra.mxu0 0.0
    %2428 = vmatprep.subr.mxu0 0.0
    %2429 = vmatpush1.msra.mxu0 %v128
    %2430 = vmatprep.subr.mxu0 0.0
    %2431 = vmatpush1.msra.mxu0 %v99
    %2432 = vmatprep.subr.mxu0 0.0
    %2433 = vmatpush1.msra.mxu0 %v98
    %2434 = vmatprep.subr.mxu0 0.0
    %2435 = vmatpush2.msra.mxu0 0.0
    %2436 = vmatprep.subr.mxu0 0.0
    %2437 = vmatpush2.msra.mxu0 0.0
    %2438 = vmatprep.subr.mxu0 0.0
    %2439 = vmatpush2.msra.mxu0 0.0
    %2440 = vmatprep.subr.mxu0 0.0
    %2441 = vmatpush2.msra.mxu0 0.0
    %2442 = vmatprep.subr.mxu0 0.0
    %2443 = vmatpush2.msra.mxu0 0.0
    %2444 = vmatprep.subr.mxu0 0.0
    %2445 = vmatpush2.msra.mxu0 0.0
    %2446 = vmatprep.subr.mxu0 0.0
    %2447 = vmatpush2.msra.mxu0 0.0
    %2448 = vmatprep.subr.mxu0 0.0
    %2449 = vmatpush2.msra.mxu0 0.0
    %2450 = vmatprep.subr.mxu0 0.0
    %2451 = vmatpush2.msra.mxu0 0.0
    %2452 = vmatprep.subr.mxu0 0.0
    %2453 = vmatpush2.msra.mxu0 0.0
    %2454 = vmatprep.subr.mxu0 0.0
    %2455 = vmatpush2.msra.mxu0 0.0
    %2456 = vmatprep.subr.mxu0 0.0
    %2457 = vmatpush2.msra.mxu0 0.0
    %2458 = vmatprep.subr.mxu0 0.0
    %2459 = vmatpush2.msra.mxu0 0.0
    %2460 = vmatprep.subr.mxu0 0.0
    %2461 = vmatpush2.msra.mxu0 0.0
    %2462 = vmatprep.subr.mxu0 0.0
    %2463 = vmatpush2.msra.mxu0 0.0
    %2464 = vmatprep.subr.mxu0 0.0
    %2465 = vmatpush2.msra.mxu0 0.0
    %2466 = vmatprep.mubr.f32.mxu0 0.0
    %2467 = vmatmul.mubr.f32.gmra.mxu0 %v2400
    %v2468 = vpop.f32.mrf.mxu0
    %v2469 = vadd.f32 %v120, %v2468
    %v2470 = vpop.f32.mrf.mxu0
    %2471 = vdwg.mxu0
    %v2472 = vmax.f32 %v2469, 0.0
    %v2474 = vsel %vm207, %v2472, 0
    %2476 = vmatprep.subr.mxu0 0.0
    %2477 = vmatpush1.msra.mxu0 0.0
    %2478 = vmatprep.subr.mxu0 0.0
    %2479 = vmatpush1.msra.mxu0 0.0
    %2480 = vmatprep.subr.mxu0 0.0
    %2481 = vmatpush1.msra.mxu0 0.0
    %2482 = vmatprep.subr.mxu0 0.0
    %2483 = vmatpush1.msra.mxu0 0.0
    %2484 = vmatprep.subr.mxu0 0.0
    %2485 = vmatpush1.msra.mxu0 0.0
    %2486 = vmatprep.subr.mxu0 0.0
    %2487 = vmatpush1.msra.mxu0 0.0
    %2488 = vmatprep.subr.mxu0 0.0
    %2489 = vmatpush1.msra.mxu0 0.0
    %2490 = vmatprep.subr.mxu0 0.0
    %2491 = vmatpush1.msra.mxu0 0.0
    %2492 = vmatprep.subr.mxu0 0.0
    %2493 = vmatpush1.msra.mxu0 0.0
    %2494 = vmatprep.subr.mxu0 0.0
    %2495 = vmatpush1.msra.mxu0 0.0
    %2496 = vmatprep.subr.mxu0 0.0
    %2497 = vmatpush1.msra.mxu0 0.0
    %2498 = vmatprep.subr.mxu0 0.0
    %2499 = vmatpush1.msra.mxu0 0.0
    %2500 = vmatprep.subr.mxu0 0.0
    %2501 = vmatpush1.msra.mxu0 %v105
    %2502 = vmatprep.subr.mxu0 0.0
    %2503 = vmatpush1.msra.mxu0 %v104
    %2504 = vmatprep.subr.mxu0 0.0
    %2505 = vmatpush1.msra.mxu0 %v103
    %2506 = vmatprep.subr.mxu0 0.0
    %2507 = vmatpush1.msra.mxu0 %v102
    %2508 = vmatprep.subr.mxu0 0.0
    %2509 = vmatpush2.msra.mxu0 0.0
    %2510 = vmatprep.subr.mxu0 0.0
    %2511 = vmatpush2.msra.mxu0 0.0
    %2512 = vmatprep.subr.mxu0 0.0
    %2513 = vmatpush2.msra.mxu0 0.0
    %2514 = vmatprep.subr.mxu0 0.0
    %2515 = vmatpush2.msra.mxu0 0.0
    %2516 = vmatprep.subr.mxu0 0.0
    %2517 = vmatpush2.msra.mxu0 0.0
    %2518 = vmatprep.subr.mxu0 0.0
    %2519 = vmatpush2.msra.mxu0 0.0
    %2520 = vmatprep.subr.mxu0 0.0
    %2521 = vmatpush2.msra.mxu0 0.0
    %2522 = vmatprep.subr.mxu0 0.0
    %2523 = vmatpush2.msra.mxu0 0.0
    %2524 = vmatprep.subr.mxu0 0.0
    %2525 = vmatpush2.msra.mxu0 0.0
    %2526 = vmatprep.subr.mxu0 0.0
    %2527 = vmatpush2.msra.mxu0 0.0
    %2528 = vmatprep.subr.mxu0 0.0
    %2529 = vmatpush2.msra.mxu0 0.0
    %2530 = vmatprep.subr.mxu0 0.0
    %2531 = vmatpush2.msra.mxu0 0.0
    %2532 = vmatprep.subr.mxu0 0.0
    %2533 = vmatpush2.msra.mxu0 0.0
    %2534 = vmatprep.subr.mxu0 0.0
    %2535 = vmatpush2.msra.mxu0 0.0
    %2536 = vmatprep.subr.mxu0 0.0
    %2537 = vmatpush2.msra.mxu0 0.0
    %2538 = vmatprep.subr.mxu0 0.0
    %2539 = vmatpush2.msra.mxu0 0.0
    %2540 = vmatprep.mubr.f32.mxu0 0.0
    %2541 = vmatmul.mubr.f32.gmra.mxu0 %v2474
    %v2542 = vpop.f32.mrf.mxu0
    %v2543 = vadd.f32 %v205, %v2542
    %v2544 = vpop.f32.mrf.mxu0
    %2545 = vdwg.mxu0
    %v2546 = vmax.f32 %v2543, 0.0
    %v2548 = vsel %vm207, %v2546, 0
    %2550 = vmatprep.subr.mxu0 0.0
    %2551 = vmatpush1.msra.mxu0 0.0
    %2552 = vmatprep.subr.mxu0 0.0
    %2553 = vmatpush1.msra.mxu0 0.0
    %2554 = vmatprep.subr.mxu0 0.0
    %2555 = vmatpush1.msra.mxu0 0.0
    %2556 = vmatprep.subr.mxu0 0.0
    %2557 = vmatpush1.msra.mxu0 0.0
    %2558 = vmatprep.subr.mxu0 0.0
    %2559 = vmatpush1.msra.mxu0 0.0
    %2560 = vmatprep.subr.mxu0 0.0
    %2561 = vmatpush1.msra.mxu0 0.0
    %2562 = vmatprep.subr.mxu0 0.0
    %2563 = vmatpush1.msra.mxu0 0.0
    %2564 = vmatprep.subr.mxu0 0.0
    %2565 = vmatpush1.msra.mxu0 0.0
    %2566 = vmatprep.subr.mxu0 0.0
    %2567 = vmatpush1.msra.mxu0 0.0
    %2568 = vmatprep.subr.mxu0 0.0
    %2569 = vmatpush1.msra.mxu0 0.0
    %2570 = vmatprep.subr.mxu0 0.0
    %2571 = vmatpush1.msra.mxu0 0.0
    %2572 = vmatprep.subr.mxu0 0.0
    %2573 = vmatpush1.msra.mxu0 0.0
    %2574 = vmatprep.subr.mxu0 0.0
    %2575 = vmatpush1.msra.mxu0 %v110
    %2576 = vmatprep.subr.mxu0 0.0
    %2577 = vmatpush1.msra.mxu0 %v109
    %2578 = vmatprep.subr.mxu0 0.0
    %2579 = vmatpush1.msra.mxu0 %v108
    %2580 = vmatprep.subr.mxu0 0.0
    %2581 = vmatpush1.msra.mxu0 %v107
    %2582 = vmatprep.subr.mxu0 0.0
    %2583 = vmatpush2.msra.mxu0 0.0
    %2584 = vmatprep.subr.mxu0 0.0
    %2585 = vmatpush2.msra.mxu0 0.0
    %2586 = vmatprep.subr.mxu0 0.0
    %2587 = vmatpush2.msra.mxu0 0.0
    %2588 = vmatprep.subr.mxu0 0.0
    %2589 = vmatpush2.msra.mxu0 0.0
    %2590 = vmatprep.subr.mxu0 0.0
    %2591 = vmatpush2.msra.mxu0 0.0
    %2592 = vmatprep.subr.mxu0 0.0
    %2593 = vmatpush2.msra.mxu0 0.0
    %2594 = vmatprep.subr.mxu0 0.0
    %2595 = vmatpush2.msra.mxu0 0.0
    %2596 = vmatprep.subr.mxu0 0.0
    %2597 = vmatpush2.msra.mxu0 0.0
    %2598 = vmatprep.subr.mxu0 0.0
    %2599 = vmatpush2.msra.mxu0 0.0
    %2600 = vmatprep.subr.mxu0 0.0
    %2601 = vmatpush2.msra.mxu0 0.0
    %2602 = vmatprep.subr.mxu0 0.0
    %2603 = vmatpush2.msra.mxu0 0.0
    %2604 = vmatprep.subr.mxu0 0.0
    %2605 = vmatpush2.msra.mxu0 0.0
    %2606 = vmatprep.subr.mxu0 0.0
    %2607 = vmatpush2.msra.mxu0 0.0
    %2608 = vmatprep.subr.mxu0 0.0
    %2609 = vmatpush2.msra.mxu0 0.0
    %2610 = vmatprep.subr.mxu0 0.0
    %2611 = vmatpush2.msra.mxu0 0.0
    %2612 = vmatprep.subr.mxu0 0.0
    %2613 = vmatpush2.msra.mxu0 0.0
    %2614 = vmatprep.mubr.f32.mxu0 0.0
    %2615 = vmatmul.mubr.f32.gmra.mxu0 %v2548
    %v2616 = vpop.f32.mrf.mxu0
    %v2617 = vadd.f32 %v286, %v2616
    %v2618 = vpop.f32.mrf.mxu0
    %2619 = vdwg.mxu0
    %v2620 = vmax.f32 %v2617, 0.0
    %v2622 = vsel %vm368, %v2620, 0
    %2624 = vmatprep.subr.mxu0 0.0
    %2625 = vmatpush1.msra.mxu0 0.0
    %2626 = vmatprep.subr.mxu0 0.0
    %2627 = vmatpush1.msra.mxu0 0.0
    %2628 = vmatprep.subr.mxu0 0.0
    %2629 = vmatpush1.msra.mxu0 0.0
    %2630 = vmatprep.subr.mxu0 0.0
    %2631 = vmatpush1.msra.mxu0 0.0
    %2632 = vmatprep.subr.mxu0 0.0
    %2633 = vmatpush1.msra.mxu0 0.0
    %2634 = vmatprep.subr.mxu0 0.0
    %2635 = vmatpush1.msra.mxu0 0.0
    %2636 = vmatprep.subr.mxu0 0.0
    %2637 = vmatpush1.msra.mxu0 0.0
    %2638 = vmatprep.subr.mxu0 0.0
    %2639 = vmatpush1.msra.mxu0 0.0
    %2640 = vmatprep.subr.mxu0 0.0
    %2641 = vmatpush1.msra.mxu0 0.0
    %2642 = vmatprep.subr.mxu0 0.0
    %2643 = vmatpush1.msra.mxu0 0.0
    %2644 = vmatprep.subr.mxu0 0.0
    %2645 = vmatpush1.msra.mxu0 0.0
    %2646 = vmatprep.subr.mxu0 0.0
    %2647 = vmatpush1.msra.mxu0 0.0
    %2648 = vmatprep.subr.mxu0 0.0
    %2649 = vmatpush1.msra.mxu0 0.0
    %2650 = vmatprep.subr.mxu0 0.0
    %2651 = vmatpush1.msra.mxu0 0.0
    %2652 = vmatprep.subr.mxu0 0.0
    %2653 = vmatpush1.msra.mxu0 %v113
    %2654 = vmatprep.subr.mxu0 0.0
    %2655 = vmatpush1.msra.mxu0 %v112
    %2656 = vmatprep.subr.mxu0 0.0
    %2657 = vmatpush2.msra.mxu0 0.0
    %2658 = vmatprep.subr.mxu0 0.0
    %2659 = vmatpush2.msra.mxu0 0.0
    %2660 = vmatprep.subr.mxu0 0.0
    %2661 = vmatpush2.msra.mxu0 0.0
    %2662 = vmatprep.subr.mxu0 0.0
    %2663 = vmatpush2.msra.mxu0 0.0
    %2664 = vmatprep.subr.mxu0 0.0
    %2665 = vmatpush2.msra.mxu0 0.0
    %2666 = vmatprep.subr.mxu0 0.0
    %2667 = vmatpush2.msra.mxu0 0.0
    %2668 = vmatprep.subr.mxu0 0.0
    %2669 = vmatpush2.msra.mxu0 0.0
    %2670 = vmatprep.subr.mxu0 0.0
    %2671 = vmatpush2.msra.mxu0 0.0
    %2672 = vmatprep.subr.mxu0 0.0
    %2673 = vmatpush2.msra.mxu0 0.0
    %2674 = vmatprep.subr.mxu0 0.0
    %2675 = vmatpush2.msra.mxu0 0.0
    %2676 = vmatprep.subr.mxu0 0.0
    %2677 = vmatpush2.msra.mxu0 0.0
    %2678 = vmatprep.subr.mxu0 0.0
    %2679 = vmatpush2.msra.mxu0 0.0
    %2680 = vmatprep.subr.mxu0 0.0
    %2681 = vmatpush2.msra.mxu0 0.0
    %2682 = vmatprep.subr.mxu0 0.0
    %2683 = vmatpush2.msra.mxu0 0.0
    %2684 = vmatprep.subr.mxu0 0.0
    %2685 = vmatpush2.msra.mxu0 0.0
    %2686 = vmatprep.subr.mxu0 0.0
    %2687 = vmatpush2.msra.mxu0 0.0
    %2688 = vmatprep.mubr.f32.mxu0 0.0
    %2689 = vmatmul.mubr.f32.gmra.mxu0 %v2622
    %v2690 = vpop.f32.mrf.mxu0
    %v2691 = vadd.f32 %v366, %v2690
    %v2692 = vpop.f32.mrf.mxu0
    %2693 = vdwg.mxu0
    %s2694 = scalar_lea.vmem [#allocation7], 96
    %v2695 = vld [vmem:[%s2694] sm:$0xff]
    %v2696 = vld [vmem:[%s2694 + $0x8] sm:$0xff]
    %v2698 = vsel %vm744, %v2691, 0
    %2700 = vmatprep.subr.mxu0 0.0
    %2701 = vmatpush1.msra.mxu0 0.0
    %2702 = vmatprep.subr.mxu0 0.0
    %2703 = vmatpush1.msra.mxu0 0.0
    %2704 = vmatprep.subr.mxu0 0.0
    %2705 = vmatpush1.msra.mxu0 0.0
    %2706 = vmatprep.subr.mxu0 0.0
    %2707 = vmatpush1.msra.mxu0 0.0
    %2708 = vmatprep.subr.mxu0 0.0
    %2709 = vmatpush1.msra.mxu0 0.0
    %2710 = vmatprep.subr.mxu0 0.0
    %2711 = vmatpush1.msra.mxu0 0.0
    %2712 = vmatprep.subr.mxu0 0.0
    %2713 = vmatpush1.msra.mxu0 0.0
    %2714 = vmatprep.subr.mxu0 0.0
    %2715 = vmatpush1.msra.mxu0 0.0
    %2716 = vmatprep.subr.mxu0 0.0
    %2717 = vmatpush1.msra.mxu0 0.0
    %2718 = vmatprep.subr.mxu0 0.0
    %2719 = vmatpush1.msra.mxu0 0.0
    %2720 = vmatprep.subr.mxu0 0.0
    %2721 = vmatpush1.msra.mxu0 0.0
    %2722 = vmatprep.subr.mxu0 0.0
    %2723 = vmatpush1.msra.mxu0 0.0
    %2724 = vmatprep.subr.mxu0 0.0
    %2725 = vmatpush1.msra.mxu0 0.0
    %2726 = vmatprep.subr.mxu0 0.0
    %2727 = vmatpush1.msra.mxu0 0.0
    %2728 = vmatprep.subr.mxu0 0.0
    %2729 = vmatpush1.msra.mxu0 0.0
    %2730 = vmatprep.subr.mxu0 %v2696
    %2731 = vmatpush1.msra.mxu0 %v2695
    %2732 = vmatprep.subr.mxu0 0.0
    %2733 = vmatpush2.msra.mxu0 0.0
    %2734 = vmatprep.subr.mxu0 0.0
    %2735 = vmatpush2.msra.mxu0 0.0
    %2736 = vmatprep.subr.mxu0 0.0
    %2737 = vmatpush2.msra.mxu0 0.0
    %2738 = vmatprep.subr.mxu0 0.0
    %2739 = vmatpush2.msra.mxu0 0.0
    %2740 = vmatprep.subr.mxu0 0.0
    %2741 = vmatpush2.msra.mxu0 0.0
    %2742 = vmatprep.subr.mxu0 0.0
    %2743 = vmatpush2.msra.mxu0 0.0
    %2744 = vmatprep.subr.mxu0 0.0
    %2745 = vmatpush2.msra.mxu0 0.0
    %2746 = vmatprep.subr.mxu0 0.0
    %2747 = vmatpush2.msra.mxu0 0.0
    %2748 = vmatprep.subr.mxu0 0.0
    %2749 = vmatpush2.msra.mxu0 0.0
    %2750 = vmatprep.subr.mxu0 0.0
    %2751 = vmatpush2.msra.mxu0 0.0
    %2752 = vmatprep.subr.mxu0 0.0
    %2753 = vmatpush2.msra.mxu0 0.0
    %2754 = vmatprep.subr.mxu0 0.0
    %2755 = vmatpush2.msra.mxu0 0.0
    %2756 = vmatprep.subr.mxu0 0.0
    %2757 = vmatpush2.msra.mxu0 0.0
    %2758 = vmatprep.subr.mxu0 0.0
    %2759 = vmatpush2.msra.mxu0 0.0
    %2760 = vmatprep.subr.mxu0 0.0
    %2761 = vmatpush2.msra.mxu0 0.0
    %2762 = vmatprep.subr.mxu0 0.0
    %2763 = vmatpush2.msra.mxu0 0.0
    %2764 = vmatprep.mubr.f32.mxu0 0.0
    %2765 = vmatmul.mubr.f32.gmra.mxu0 %v2698
    %v2766 = vpop.f32.mrf.mxu0
    %v2767 = vadd.f32 0.0, %v2766
    %v2768 = vpop.f32.mrf.mxu0
    %v2769 = vadd.f32 0.0, %v2768
    %2770 = vdwg.mxu0
    %v2771 = vadd.f32 %v2395, %v2767
    %v2772 = vadd.f32 %v2396, %v2769
    %s2773 = scalar_lea.vmem %s0, 14
    %v2774 = vld [vmem:[%s2773] sm:$0x3]
    %v2776 = vsel %vm122, %v2774, 0
    %2778 = vmatprep.subr.mxu0 0.0
    %2779 = vmatpush1.msra.mxu0 0.0
    %2780 = vmatprep.subr.mxu0 0.0
    %2781 = vmatpush1.msra.mxu0 0.0
    %2782 = vmatprep.subr.mxu0 0.0
    %2783 = vmatpush1.msra.mxu0 0.0
    %2784 = vmatprep.subr.mxu0 0.0
    %2785 = vmatpush1.msra.mxu0 0.0
    %2786 = vmatprep.subr.mxu0 0.0
    %2787 = vmatpush1.msra.mxu0 0.0
    %2788 = vmatprep.subr.mxu0 0.0
    %2789 = vmatpush1.msra.mxu0 0.0
    %2790 = vmatprep.subr.mxu0 0.0
    %2791 = vmatpush1.msra.mxu0 0.0
    %2792 = vmatprep.subr.mxu0 0.0
    %2793 = vmatpush1.msra.mxu0 0.0
    %2794 = vmatprep.subr.mxu0 0.0
    %2795 = vmatpush1.msra.mxu0 0.0
    %2796 = vmatprep.subr.mxu0 0.0
    %2797 = vmatpush1.msra.mxu0 0.0
    %2798 = vmatprep.subr.mxu0 0.0
    %2799 = vmatpush1.msra.mxu0 0.0
    %2800 = vmatprep.subr.mxu0 0.0
    %2801 = vmatpush1.msra.mxu0 0.0
    %2802 = vmatprep.subr.mxu0 0.0
    %2803 = vmatpush1.msra.mxu0 0.0
    %2804 = vmatprep.subr.mxu0 0.0
    %2805 = vmatpush1.msra.mxu0 %v128
    %2806 = vmatprep.subr.mxu0 0.0
    %2807 = vmatpush1.msra.mxu0 %v99
    %2808 = vmatprep.subr.mxu0 0.0
    %2809 = vmatpush1.msra.mxu0 %v98
    %2810 = vmatprep.subr.mxu0 0.0
    %2811 = vmatpush2.msra.mxu0 0.0
    %2812 = vmatprep.subr.mxu0 0.0
    %2813 = vmatpush2.msra.mxu0 0.0
    %2814 = vmatprep.subr.mxu0 0.0
    %2815 = vmatpush2.msra.mxu0 0.0
    %2816 = vmatprep.subr.mxu0 0.0
    %2817 = vmatpush2.msra.mxu0 0.0
    %2818 = vmatprep.subr.mxu0 0.0
    %2819 = vmatpush2.msra.mxu0 0.0
    %2820 = vmatprep.subr.mxu0 0.0
    %2821 = vmatpush2.msra.mxu0 0.0
    %2822 = vmatprep.subr.mxu0 0.0
    %2823 = vmatpush2.msra.mxu0 0.0
    %2824 = vmatprep.subr.mxu0 0.0
    %2825 = vmatpush2.msra.mxu0 0.0
    %2826 = vmatprep.subr.mxu0 0.0
    %2827 = vmatpush2.msra.mxu0 0.0
    %2828 = vmatprep.subr.mxu0 0.0
    %2829 = vmatpush2.msra.mxu0 0.0
    %2830 = vmatprep.subr.mxu0 0.0
    %2831 = vmatpush2.msra.mxu0 0.0
    %2832 = vmatprep.subr.mxu0 0.0
    %2833 = vmatpush2.msra.mxu0 0.0
    %2834 = vmatprep.subr.mxu0 0.0
    %2835 = vmatpush2.msra.mxu0 0.0
    %2836 = vmatprep.subr.mxu0 0.0
    %2837 = vmatpush2.msra.mxu0 0.0
    %2838 = vmatprep.subr.mxu0 0.0
    %2839 = vmatpush2.msra.mxu0 0.0
    %2840 = vmatprep.subr.mxu0 0.0
    %2841 = vmatpush2.msra.mxu0 0.0
    %2842 = vmatprep.mubr.f32.mxu0 0.0
    %2843 = vmatmul.mubr.f32.gmra.mxu0 %v2776
    %v2844 = vpop.f32.mrf.mxu0
    %v2845 = vadd.f32 %v120, %v2844
    %v2846 = vpop.f32.mrf.mxu0
    %2847 = vdwg.mxu0
    %v2848 = vmax.f32 %v2845, 0.0
    %v2850 = vsel %vm207, %v2848, 0
    %2852 = vmatprep.subr.mxu0 0.0
    %2853 = vmatpush1.msra.mxu0 0.0
    %2854 = vmatprep.subr.mxu0 0.0
    %2855 = vmatpush1.msra.mxu0 0.0
    %2856 = vmatprep.subr.mxu0 0.0
    %2857 = vmatpush1.msra.mxu0 0.0
    %2858 = vmatprep.subr.mxu0 0.0
    %2859 = vmatpush1.msra.mxu0 0.0
    %2860 = vmatprep.subr.mxu0 0.0
    %2861 = vmatpush1.msra.mxu0 0.0
    %2862 = vmatprep.subr.mxu0 0.0
    %2863 = vmatpush1.msra.mxu0 0.0
    %2864 = vmatprep.subr.mxu0 0.0
    %2865 = vmatpush1.msra.mxu0 0.0
    %2866 = vmatprep.subr.mxu0 0.0
    %2867 = vmatpush1.msra.mxu0 0.0
    %2868 = vmatprep.subr.mxu0 0.0
    %2869 = vmatpush1.msra.mxu0 0.0
    %2870 = vmatprep.subr.mxu0 0.0
    %2871 = vmatpush1.msra.mxu0 0.0
    %2872 = vmatprep.subr.mxu0 0.0
    %2873 = vmatpush1.msra.mxu0 0.0
    %2874 = vmatprep.subr.mxu0 0.0
    %2875 = vmatpush1.msra.mxu0 0.0
    %2876 = vmatprep.subr.mxu0 0.0
    %2877 = vmatpush1.msra.mxu0 %v105
    %2878 = vmatprep.subr.mxu0 0.0
    %2879 = vmatpush1.msra.mxu0 %v104
    %2880 = vmatprep.subr.mxu0 0.0
    %2881 = vmatpush1.msra.mxu0 %v103
    %2882 = vmatprep.subr.mxu0 0.0
    %2883 = vmatpush1.msra.mxu0 %v102
    %2884 = vmatprep.subr.mxu0 0.0
    %2885 = vmatpush2.msra.mxu0 0.0
    %2886 = vmatprep.subr.mxu0 0.0
    %2887 = vmatpush2.msra.mxu0 0.0
    %2888 = vmatprep.subr.mxu0 0.0
    %2889 = vmatpush2.msra.mxu0 0.0
    %2890 = vmatprep.subr.mxu0 0.0
    %2891 = vmatpush2.msra.mxu0 0.0
    %2892 = vmatprep.subr.mxu0 0.0
    %2893 = vmatpush2.msra.mxu0 0.0
    %2894 = vmatprep.subr.mxu0 0.0
    %2895 = vmatpush2.msra.mxu0 0.0
    %2896 = vmatprep.subr.mxu0 0.0
    %2897 = vmatpush2.msra.mxu0 0.0
    %2898 = vmatprep.subr.mxu0 0.0
    %2899 = vmatpush2.msra.mxu0 0.0
    %2900 = vmatprep.subr.mxu0 0.0
    %2901 = vmatpush2.msra.mxu0 0.0
    %2902 = vmatprep.subr.mxu0 0.0
    %2903 = vmatpush2.msra.mxu0 0.0
    %2904 = vmatprep.subr.mxu0 0.0
    %2905 = vmatpush2.msra.mxu0 0.0
    %2906 = vmatprep.subr.mxu0 0.0
    %2907 = vmatpush2.msra.mxu0 0.0
    %2908 = vmatprep.subr.mxu0 0.0
    %2909 = vmatpush2.msra.mxu0 0.0
    %2910 = vmatprep.subr.mxu0 0.0
    %2911 = vmatpush2.msra.mxu0 0.0
    %2912 = vmatprep.subr.mxu0 0.0
    %2913 = vmatpush2.msra.mxu0 0.0
    %2914 = vmatprep.subr.mxu0 0.0
    %2915 = vmatpush2.msra.mxu0 0.0
    %2916 = vmatprep.mubr.f32.mxu0 0.0
    %2917 = vmatmul.mubr.f32.gmra.mxu0 %v2850
    %v2918 = vpop.f32.mrf.mxu0
    %v2919 = vadd.f32 %v205, %v2918
    %v2920 = vpop.f32.mrf.mxu0
    %2921 = vdwg.mxu0
    %v2922 = vmax.f32 %v2919, 0.0
    %v2924 = vsel %vm207, %v2922, 0
    %2926 = vmatprep.subr.mxu0 0.0
    %2927 = vmatpush1.msra.mxu0 0.0
    %2928 = vmatprep.subr.mxu0 0.0
    %2929 = vmatpush1.msra.mxu0 0.0
    %2930 = vmatprep.subr.mxu0 0.0
    %2931 = vmatpush1.msra.mxu0 0.0
    %2932 = vmatprep.subr.mxu0 0.0
    %2933 = vmatpush1.msra.mxu0 0.0
    %2934 = vmatprep.subr.mxu0 0.0
    %2935 = vmatpush1.msra.mxu0 0.0
    %2936 = vmatprep.subr.mxu0 0.0
    %2937 = vmatpush1.msra.mxu0 0.0
    %2938 = vmatprep.subr.mxu0 0.0
    %2939 = vmatpush1.msra.mxu0 0.0
    %2940 = vmatprep.subr.mxu0 0.0
    %2941 = vmatpush1.msra.mxu0 0.0
    %2942 = vmatprep.subr.mxu0 0.0
    %2943 = vmatpush1.msra.mxu0 0.0
    %2944 = vmatprep.subr.mxu0 0.0
    %2945 = vmatpush1.msra.mxu0 0.0
    %2946 = vmatprep.subr.mxu0 0.0
    %2947 = vmatpush1.msra.mxu0 0.0
    %2948 = vmatprep.subr.mxu0 0.0
    %2949 = vmatpush1.msra.mxu0 0.0
    %2950 = vmatprep.subr.mxu0 0.0
    %2951 = vmatpush1.msra.mxu0 %v110
    %2952 = vmatprep.subr.mxu0 0.0
    %2953 = vmatpush1.msra.mxu0 %v109
    %2954 = vmatprep.subr.mxu0 0.0
    %2955 = vmatpush1.msra.mxu0 %v108
    %2956 = vmatprep.subr.mxu0 0.0
    %2957 = vmatpush1.msra.mxu0 %v107
    %2958 = vmatprep.subr.mxu0 0.0
    %2959 = vmatpush2.msra.mxu0 0.0
    %2960 = vmatprep.subr.mxu0 0.0
    %2961 = vmatpush2.msra.mxu0 0.0
    %2962 = vmatprep.subr.mxu0 0.0
    %2963 = vmatpush2.msra.mxu0 0.0
    %2964 = vmatprep.subr.mxu0 0.0
    %2965 = vmatpush2.msra.mxu0 0.0
    %2966 = vmatprep.subr.mxu0 0.0
    %2967 = vmatpush2.msra.mxu0 0.0
    %2968 = vmatprep.subr.mxu0 0.0
    %2969 = vmatpush2.msra.mxu0 0.0
    %2970 = vmatprep.subr.mxu0 0.0
    %2971 = vmatpush2.msra.mxu0 0.0
    %2972 = vmatprep.subr.mxu0 0.0
    %2973 = vmatpush2.msra.mxu0 0.0
    %2974 = vmatprep.subr.mxu0 0.0
    %2975 = vmatpush2.msra.mxu0 0.0
    %2976 = vmatprep.subr.mxu0 0.0
    %2977 = vmatpush2.msra.mxu0 0.0
    %2978 = vmatprep.subr.mxu0 0.0
    %2979 = vmatpush2.msra.mxu0 0.0
    %2980 = vmatprep.subr.mxu0 0.0
    %2981 = vmatpush2.msra.mxu0 0.0
    %2982 = vmatprep.subr.mxu0 0.0
    %2983 = vmatpush2.msra.mxu0 0.0
    %2984 = vmatprep.subr.mxu0 0.0
    %2985 = vmatpush2.msra.mxu0 0.0
    %2986 = vmatprep.subr.mxu0 0.0
    %2987 = vmatpush2.msra.mxu0 0.0
    %2988 = vmatprep.subr.mxu0 0.0
    %2989 = vmatpush2.msra.mxu0 0.0
    %2990 = vmatprep.mubr.f32.mxu0 0.0
    %2991 = vmatmul.mubr.f32.gmra.mxu0 %v2924
    %v2992 = vpop.f32.mrf.mxu0
    %v2993 = vadd.f32 %v286, %v2992
    %v2994 = vpop.f32.mrf.mxu0
    %2995 = vdwg.mxu0
    %v2996 = vmax.f32 %v2993, 0.0
    %v2998 = vsel %vm368, %v2996, 0
    %3000 = vmatprep.subr.mxu0 0.0
    %3001 = vmatpush1.msra.mxu0 0.0
    %3002 = vmatprep.subr.mxu0 0.0
    %3003 = vmatpush1.msra.mxu0 0.0
    %3004 = vmatprep.subr.mxu0 0.0
    %3005 = vmatpush1.msra.mxu0 0.0
    %3006 = vmatprep.subr.mxu0 0.0
    %3007 = vmatpush1.msra.mxu0 0.0
    %3008 = vmatprep.subr.mxu0 0.0
    %3009 = vmatpush1.msra.mxu0 0.0
    %3010 = vmatprep.subr.mxu0 0.0
    %3011 = vmatpush1.msra.mxu0 0.0
    %3012 = vmatprep.subr.mxu0 0.0
    %3013 = vmatpush1.msra.mxu0 0.0
    %3014 = vmatprep.subr.mxu0 0.0
    %3015 = vmatpush1.msra.mxu0 0.0
    %3016 = vmatprep.subr.mxu0 0.0
    %3017 = vmatpush1.msra.mxu0 0.0
    %3018 = vmatprep.subr.mxu0 0.0
    %3019 = vmatpush1.msra.mxu0 0.0
    %3020 = vmatprep.subr.mxu0 0.0
    %3021 = vmatpush1.msra.mxu0 0.0
    %3022 = vmatprep.subr.mxu0 0.0
    %3023 = vmatpush1.msra.mxu0 0.0
    %3024 = vmatprep.subr.mxu0 0.0
    %3025 = vmatpush1.msra.mxu0 0.0
    %3026 = vmatprep.subr.mxu0 0.0
    %3027 = vmatpush1.msra.mxu0 0.0
    %3028 = vmatprep.subr.mxu0 0.0
    %3029 = vmatpush1.msra.mxu0 %v113
    %3030 = vmatprep.subr.mxu0 0.0
    %3031 = vmatpush1.msra.mxu0 %v112
    %3032 = vmatprep.subr.mxu0 0.0
    %3033 = vmatpush2.msra.mxu0 0.0
    %3034 = vmatprep.subr.mxu0 0.0
    %3035 = vmatpush2.msra.mxu0 0.0
    %3036 = vmatprep.subr.mxu0 0.0
    %3037 = vmatpush2.msra.mxu0 0.0
    %3038 = vmatprep.subr.mxu0 0.0
    %3039 = vmatpush2.msra.mxu0 0.0
    %3040 = vmatprep.subr.mxu0 0.0
    %3041 = vmatpush2.msra.mxu0 0.0
    %3042 = vmatprep.subr.mxu0 0.0
    %3043 = vmatpush2.msra.mxu0 0.0
    %3044 = vmatprep.subr.mxu0 0.0
    %3045 = vmatpush2.msra.mxu0 0.0
    %3046 = vmatprep.subr.mxu0 0.0
    %3047 = vmatpush2.msra.mxu0 0.0
    %3048 = vmatprep.subr.mxu0 0.0
    %3049 = vmatpush2.msra.mxu0 0.0
    %3050 = vmatprep.subr.mxu0 0.0
    %3051 = vmatpush2.msra.mxu0 0.0
    %3052 = vmatprep.subr.mxu0 0.0
    %3053 = vmatpush2.msra.mxu0 0.0
    %3054 = vmatprep.subr.mxu0 0.0
    %3055 = vmatpush2.msra.mxu0 0.0
    %3056 = vmatprep.subr.mxu0 0.0
    %3057 = vmatpush2.msra.mxu0 0.0
    %3058 = vmatprep.subr.mxu0 0.0
    %3059 = vmatpush2.msra.mxu0 0.0
    %3060 = vmatprep.subr.mxu0 0.0
    %3061 = vmatpush2.msra.mxu0 0.0
    %3062 = vmatprep.subr.mxu0 0.0
    %3063 = vmatpush2.msra.mxu0 0.0
    %3064 = vmatprep.mubr.f32.mxu0 0.0
    %3065 = vmatmul.mubr.f32.gmra.mxu0 %v2998
    %v3066 = vpop.f32.mrf.mxu0
    %v3067 = vadd.f32 %v366, %v3066
    %v3068 = vpop.f32.mrf.mxu0
    %3069 = vdwg.mxu0
    %s3070 = scalar_lea.vmem [#allocation7], 112
    %v3071 = vld [vmem:[%s3070] sm:$0xff]
    %v3072 = vld [vmem:[%s3070 + $0x8] sm:$0xff]
    %v3074 = vsel %vm744, %v3067, 0
    %3076 = vmatprep.subr.mxu0 0.0
    %3077 = vmatpush1.msra.mxu0 0.0
    %3078 = vmatprep.subr.mxu0 0.0
    %3079 = vmatpush1.msra.mxu0 0.0
    %3080 = vmatprep.subr.mxu0 0.0
    %3081 = vmatpush1.msra.mxu0 0.0
    %3082 = vmatprep.subr.mxu0 0.0
    %3083 = vmatpush1.msra.mxu0 0.0
    %3084 = vmatprep.subr.mxu0 0.0
    %3085 = vmatpush1.msra.mxu0 0.0
    %3086 = vmatprep.subr.mxu0 0.0
    %3087 = vmatpush1.msra.mxu0 0.0
    %3088 = vmatprep.subr.mxu0 0.0
    %3089 = vmatpush1.msra.mxu0 0.0
    %3090 = vmatprep.subr.mxu0 0.0
    %3091 = vmatpush1.msra.mxu0 0.0
    %3092 = vmatprep.subr.mxu0 0.0
    %3093 = vmatpush1.msra.mxu0 0.0
    %3094 = vmatprep.subr.mxu0 0.0
    %3095 = vmatpush1.msra.mxu0 0.0
    %3096 = vmatprep.subr.mxu0 0.0
    %3097 = vmatpush1.msra.mxu0 0.0
    %3098 = vmatprep.subr.mxu0 0.0
    %3099 = vmatpush1.msra.mxu0 0.0
    %3100 = vmatprep.subr.mxu0 0.0
    %3101 = vmatpush1.msra.mxu0 0.0
    %3102 = vmatprep.subr.mxu0 0.0
    %3103 = vmatpush1.msra.mxu0 0.0
    %3104 = vmatprep.subr.mxu0 0.0
    %3105 = vmatpush1.msra.mxu0 0.0
    %3106 = vmatprep.subr.mxu0 %v3072
    %3107 = vmatpush1.msra.mxu0 %v3071
    %3108 = vmatprep.subr.mxu0 0.0
    %3109 = vmatpush2.msra.mxu0 0.0
    %3110 = vmatprep.subr.mxu0 0.0
    %3111 = vmatpush2.msra.mxu0 0.0
    %3112 = vmatprep.subr.mxu0 0.0
    %3113 = vmatpush2.msra.mxu0 0.0
    %3114 = vmatprep.subr.mxu0 0.0
    %3115 = vmatpush2.msra.mxu0 0.0
    %3116 = vmatprep.subr.mxu0 0.0
    %3117 = vmatpush2.msra.mxu0 0.0
    %3118 = vmatprep.subr.mxu0 0.0
    %3119 = vmatpush2.msra.mxu0 0.0
    %3120 = vmatprep.subr.mxu0 0.0
    %3121 = vmatpush2.msra.mxu0 0.0
    %3122 = vmatprep.subr.mxu0 0.0
    %3123 = vmatpush2.msra.mxu0 0.0
    %3124 = vmatprep.subr.mxu0 0.0
    %3125 = vmatpush2.msra.mxu0 0.0
    %3126 = vmatprep.subr.mxu0 0.0
    %3127 = vmatpush2.msra.mxu0 0.0
    %3128 = vmatprep.subr.mxu0 0.0
    %3129 = vmatpush2.msra.mxu0 0.0
    %3130 = vmatprep.subr.mxu0 0.0
    %3131 = vmatpush2.msra.mxu0 0.0
    %3132 = vmatprep.subr.mxu0 0.0
    %3133 = vmatpush2.msra.mxu0 0.0
    %3134 = vmatprep.subr.mxu0 0.0
    %3135 = vmatpush2.msra.mxu0 0.0
    %3136 = vmatprep.subr.mxu0 0.0
    %3137 = vmatpush2.msra.mxu0 0.0
    %3138 = vmatprep.subr.mxu0 0.0
    %3139 = vmatpush2.msra.mxu0 0.0
    %3140 = vmatprep.mubr.f32.mxu0 0.0
    %3141 = vmatmul.mubr.f32.gmra.mxu0 %v3074
    %v3142 = vpop.f32.mrf.mxu0
    %v3143 = vadd.f32 0.0, %v3142
    %v3144 = vpop.f32.mrf.mxu0
    %v3145 = vadd.f32 0.0, %v3144
    %3146 = vdwg.mxu0
    %v3147 = vadd.f32 %v2771, %v3143
    %v3148 = vadd.f32 %v2772, %v3145
    %s3149 = scalar_lea.vmem %s0, 16
    %v3150 = vld [vmem:[%s3149] sm:$0x3]
    %v3152 = vsel %vm122, %v3150, 0
    %3154 = vmatprep.subr.mxu0 0.0
    %3155 = vmatpush1.msra.mxu0 0.0
    %3156 = vmatprep.subr.mxu0 0.0
    %3157 = vmatpush1.msra.mxu0 0.0
    %3158 = vmatprep.subr.mxu0 0.0
    %3159 = vmatpush1.msra.mxu0 0.0
    %3160 = vmatprep.subr.mxu0 0.0
    %3161 = vmatpush1.msra.mxu0 0.0
    %3162 = vmatprep.subr.mxu0 0.0
    %3163 = vmatpush1.msra.mxu0 0.0
    %3164 = vmatprep.subr.mxu0 0.0
    %3165 = vmatpush1.msra.mxu0 0.0
    %3166 = vmatprep.subr.mxu0 0.0
    %3167 = vmatpush1.msra.mxu0 0.0
    %3168 = vmatprep.subr.mxu0 0.0
    %3169 = vmatpush1.msra.mxu0 0.0
    %3170 = vmatprep.subr.mxu0 0.0
    %3171 = vmatpush1.msra.mxu0 0.0
    %3172 = vmatprep.subr.mxu0 0.0
    %3173 = vmatpush1.msra.mxu0 0.0
    %3174 = vmatprep.subr.mxu0 0.0
    %3175 = vmatpush1.msra.mxu0 0.0
    %3176 = vmatprep.subr.mxu0 0.0
    %3177 = vmatpush1.msra.mxu0 0.0
    %3178 = vmatprep.subr.mxu0 0.0
    %3179 = vmatpush1.msra.mxu0 0.0
    %3180 = vmatprep.subr.mxu0 0.0
    %3181 = vmatpush1.msra.mxu0 %v128
    %3182 = vmatprep.subr.mxu0 0.0
    %3183 = vmatpush1.msra.mxu0 %v99
    %3184 = vmatprep.subr.mxu0 0.0
    %3185 = vmatpush1.msra.mxu0 %v98
    %3186 = vmatprep.subr.mxu0 0.0
    %3187 = vmatpush2.msra.mxu0 0.0
    %3188 = vmatprep.subr.mxu0 0.0
    %3189 = vmatpush2.msra.mxu0 0.0
    %3190 = vmatprep.subr.mxu0 0.0
    %3191 = vmatpush2.msra.mxu0 0.0
    %3192 = vmatprep.subr.mxu0 0.0
    %3193 = vmatpush2.msra.mxu0 0.0
    %3194 = vmatprep.subr.mxu0 0.0
    %3195 = vmatpush2.msra.mxu0 0.0
    %3196 = vmatprep.subr.mxu0 0.0
    %3197 = vmatpush2.msra.mxu0 0.0
    %3198 = vmatprep.subr.mxu0 0.0
    %3199 = vmatpush2.msra.mxu0 0.0
    %3200 = vmatprep.subr.mxu0 0.0
    %3201 = vmatpush2.msra.mxu0 0.0
    %3202 = vmatprep.subr.mxu0 0.0
    %3203 = vmatpush2.msra.mxu0 0.0
    %3204 = vmatprep.subr.mxu0 0.0
    %3205 = vmatpush2.msra.mxu0 0.0
    %3206 = vmatprep.subr.mxu0 0.0
    %3207 = vmatpush2.msra.mxu0 0.0
    %3208 = vmatprep.subr.mxu0 0.0
    %3209 = vmatpush2.msra.mxu0 0.0
    %3210 = vmatprep.subr.mxu0 0.0
    %3211 = vmatpush2.msra.mxu0 0.0
    %3212 = vmatprep.subr.mxu0 0.0
    %3213 = vmatpush2.msra.mxu0 0.0
    %3214 = vmatprep.subr.mxu0 0.0
    %3215 = vmatpush2.msra.mxu0 0.0
    %3216 = vmatprep.subr.mxu0 0.0
    %3217 = vmatpush2.msra.mxu0 0.0
    %3218 = vmatprep.mubr.f32.mxu0 0.0
    %3219 = vmatmul.mubr.f32.gmra.mxu0 %v3152
    %v3220 = vpop.f32.mrf.mxu0
    %v3221 = vadd.f32 %v120, %v3220
    %v3222 = vpop.f32.mrf.mxu0
    %3223 = vdwg.mxu0
    %v3224 = vmax.f32 %v3221, 0.0
    %v3226 = vsel %vm207, %v3224, 0
    %3228 = vmatprep.subr.mxu0 0.0
    %3229 = vmatpush1.msra.mxu0 0.0
    %3230 = vmatprep.subr.mxu0 0.0
    %3231 = vmatpush1.msra.mxu0 0.0
    %3232 = vmatprep.subr.mxu0 0.0
    %3233 = vmatpush1.msra.mxu0 0.0
    %3234 = vmatprep.subr.mxu0 0.0
    %3235 = vmatpush1.msra.mxu0 0.0
    %3236 = vmatprep.subr.mxu0 0.0
    %3237 = vmatpush1.msra.mxu0 0.0
    %3238 = vmatprep.subr.mxu0 0.0
    %3239 = vmatpush1.msra.mxu0 0.0
    %3240 = vmatprep.subr.mxu0 0.0
    %3241 = vmatpush1.msra.mxu0 0.0
    %3242 = vmatprep.subr.mxu0 0.0
    %3243 = vmatpush1.msra.mxu0 0.0
    %3244 = vmatprep.subr.mxu0 0.0
    %3245 = vmatpush1.msra.mxu0 0.0
    %3246 = vmatprep.subr.mxu0 0.0
    %3247 = vmatpush1.msra.mxu0 0.0
    %3248 = vmatprep.subr.mxu0 0.0
    %3249 = vmatpush1.msra.mxu0 0.0
    %3250 = vmatprep.subr.mxu0 0.0
    %3251 = vmatpush1.msra.mxu0 0.0
    %3252 = vmatprep.subr.mxu0 0.0
    %3253 = vmatpush1.msra.mxu0 %v105
    %3254 = vmatprep.subr.mxu0 0.0
    %3255 = vmatpush1.msra.mxu0 %v104
    %3256 = vmatprep.subr.mxu0 0.0
    %3257 = vmatpush1.msra.mxu0 %v103
    %3258 = vmatprep.subr.mxu0 0.0
    %3259 = vmatpush1.msra.mxu0 %v102
    %3260 = vmatprep.subr.mxu0 0.0
    %3261 = vmatpush2.msra.mxu0 0.0
    %3262 = vmatprep.subr.mxu0 0.0
    %3263 = vmatpush2.msra.mxu0 0.0
    %3264 = vmatprep.subr.mxu0 0.0
    %3265 = vmatpush2.msra.mxu0 0.0
    %3266 = vmatprep.subr.mxu0 0.0
    %3267 = vmatpush2.msra.mxu0 0.0
    %3268 = vmatprep.subr.mxu0 0.0
    %3269 = vmatpush2.msra.mxu0 0.0
    %3270 = vmatprep.subr.mxu0 0.0
    %3271 = vmatpush2.msra.mxu0 0.0
    %3272 = vmatprep.subr.mxu0 0.0
    %3273 = vmatpush2.msra.mxu0 0.0
    %3274 = vmatprep.subr.mxu0 0.0
    %3275 = vmatpush2.msra.mxu0 0.0
    %3276 = vmatprep.subr.mxu0 0.0
    %3277 = vmatpush2.msra.mxu0 0.0
    %3278 = vmatprep.subr.mxu0 0.0
    %3279 = vmatpush2.msra.mxu0 0.0
    %3280 = vmatprep.subr.mxu0 0.0
    %3281 = vmatpush2.msra.mxu0 0.0
    %3282 = vmatprep.subr.mxu0 0.0
    %3283 = vmatpush2.msra.mxu0 0.0
    %3284 = vmatprep.subr.mxu0 0.0
    %3285 = vmatpush2.msra.mxu0 0.0
    %3286 = vmatprep.subr.mxu0 0.0
    %3287 = vmatpush2.msra.mxu0 0.0
    %3288 = vmatprep.subr.mxu0 0.0
    %3289 = vmatpush2.msra.mxu0 0.0
    %3290 = vmatprep.subr.mxu0 0.0
    %3291 = vmatpush2.msra.mxu0 0.0
    %3292 = vmatprep.mubr.f32.mxu0 0.0
    %3293 = vmatmul.mubr.f32.gmra.mxu0 %v3226
    %v3294 = vpop.f32.mrf.mxu0
    %v3295 = vadd.f32 %v205, %v3294
    %v3296 = vpop.f32.mrf.mxu0
    %3297 = vdwg.mxu0
    %v3298 = vmax.f32 %v3295, 0.0
    %v3300 = vsel %vm207, %v3298, 0
    %3302 = vmatprep.subr.mxu0 0.0
    %3303 = vmatpush1.msra.mxu0 0.0
    %3304 = vmatprep.subr.mxu0 0.0
    %3305 = vmatpush1.msra.mxu0 0.0
    %3306 = vmatprep.subr.mxu0 0.0
    %3307 = vmatpush1.msra.mxu0 0.0
    %3308 = vmatprep.subr.mxu0 0.0
    %3309 = vmatpush1.msra.mxu0 0.0
    %3310 = vmatprep.subr.mxu0 0.0
    %3311 = vmatpush1.msra.mxu0 0.0
    %3312 = vmatprep.subr.mxu0 0.0
    %3313 = vmatpush1.msra.mxu0 0.0
    %3314 = vmatprep.subr.mxu0 0.0
    %3315 = vmatpush1.msra.mxu0 0.0
    %3316 = vmatprep.subr.mxu0 0.0
    %3317 = vmatpush1.msra.mxu0 0.0
    %3318 = vmatprep.subr.mxu0 0.0
    %3319 = vmatpush1.msra.mxu0 0.0
    %3320 = vmatprep.subr.mxu0 0.0
    %3321 = vmatpush1.msra.mxu0 0.0
    %3322 = vmatprep.subr.mxu0 0.0
    %3323 = vmatpush1.msra.mxu0 0.0
    %3324 = vmatprep.subr.mxu0 0.0
    %3325 = vmatpush1.msra.mxu0 0.0
    %3326 = vmatprep.subr.mxu0 0.0
    %3327 = vmatpush1.msra.mxu0 %v110
    %3328 = vmatprep.subr.mxu0 0.0
    %3329 = vmatpush1.msra.mxu0 %v109
    %3330 = vmatprep.subr.mxu0 0.0
    %3331 = vmatpush1.msra.mxu0 %v108
    %3332 = vmatprep.subr.mxu0 0.0
    %3333 = vmatpush1.msra.mxu0 %v107
    %3334 = vmatprep.subr.mxu0 0.0
    %3335 = vmatpush2.msra.mxu0 0.0
    %3336 = vmatprep.subr.mxu0 0.0
    %3337 = vmatpush2.msra.mxu0 0.0
    %3338 = vmatprep.subr.mxu0 0.0
    %3339 = vmatpush2.msra.mxu0 0.0
    %3340 = vmatprep.subr.mxu0 0.0
    %3341 = vmatpush2.msra.mxu0 0.0
    %3342 = vmatprep.subr.mxu0 0.0
    %3343 = vmatpush2.msra.mxu0 0.0
    %3344 = vmatprep.subr.mxu0 0.0
    %3345 = vmatpush2.msra.mxu0 0.0
    %3346 = vmatprep.subr.mxu0 0.0
    %3347 = vmatpush2.msra.mxu0 0.0
    %3348 = vmatprep.subr.mxu0 0.0
    %3349 = vmatpush2.msra.mxu0 0.0
    %3350 = vmatprep.subr.mxu0 0.0
    %3351 = vmatpush2.msra.mxu0 0.0
    %3352 = vmatprep.subr.mxu0 0.0
    %3353 = vmatpush2.msra.mxu0 0.0
    %3354 = vmatprep.subr.mxu0 0.0
    %3355 = vmatpush2.msra.mxu0 0.0
    %3356 = vmatprep.subr.mxu0 0.0
    %3357 = vmatpush2.msra.mxu0 0.0
    %3358 = vmatprep.subr.mxu0 0.0
    %3359 = vmatpush2.msra.mxu0 0.0
    %3360 = vmatprep.subr.mxu0 0.0
    %3361 = vmatpush2.msra.mxu0 0.0
    %3362 = vmatprep.subr.mxu0 0.0
    %3363 = vmatpush2.msra.mxu0 0.0
    %3364 = vmatprep.subr.mxu0 0.0
    %3365 = vmatpush2.msra.mxu0 0.0
    %3366 = vmatprep.mubr.f32.mxu0 0.0
    %3367 = vmatmul.mubr.f32.gmra.mxu0 %v3300
    %v3368 = vpop.f32.mrf.mxu0
    %v3369 = vadd.f32 %v286, %v3368
    %v3370 = vpop.f32.mrf.mxu0
    %3371 = vdwg.mxu0
    %v3372 = vmax.f32 %v3369, 0.0
    %v3374 = vsel %vm368, %v3372, 0
    %3376 = vmatprep.subr.mxu0 0.0
    %3377 = vmatpush1.msra.mxu0 0.0
    %3378 = vmatprep.subr.mxu0 0.0
    %3379 = vmatpush1.msra.mxu0 0.0
    %3380 = vmatprep.subr.mxu0 0.0
    %3381 = vmatpush1.msra.mxu0 0.0
    %3382 = vmatprep.subr.mxu0 0.0
    %3383 = vmatpush1.msra.mxu0 0.0
    %3384 = vmatprep.subr.mxu0 0.0
    %3385 = vmatpush1.msra.mxu0 0.0
    %3386 = vmatprep.subr.mxu0 0.0
    %3387 = vmatpush1.msra.mxu0 0.0
    %3388 = vmatprep.subr.mxu0 0.0
    %3389 = vmatpush1.msra.mxu0 0.0
    %3390 = vmatprep.subr.mxu0 0.0
    %3391 = vmatpush1.msra.mxu0 0.0
    %3392 = vmatprep.subr.mxu0 0.0
    %3393 = vmatpush1.msra.mxu0 0.0
    %3394 = vmatprep.subr.mxu0 0.0
    %3395 = vmatpush1.msra.mxu0 0.0
    %3396 = vmatprep.subr.mxu0 0.0
    %3397 = vmatpush1.msra.mxu0 0.0
    %3398 = vmatprep.subr.mxu0 0.0
    %3399 = vmatpush1.msra.mxu0 0.0
    %3400 = vmatprep.subr.mxu0 0.0
    %3401 = vmatpush1.msra.mxu0 0.0
    %3402 = vmatprep.subr.mxu0 0.0
    %3403 = vmatpush1.msra.mxu0 0.0
    %3404 = vmatprep.subr.mxu0 0.0
    %3405 = vmatpush1.msra.mxu0 %v113
    %3406 = vmatprep.subr.mxu0 0.0
    %3407 = vmatpush1.msra.mxu0 %v112
    %3408 = vmatprep.subr.mxu0 0.0
    %3409 = vmatpush2.msra.mxu0 0.0
    %3410 = vmatprep.subr.mxu0 0.0
    %3411 = vmatpush2.msra.mxu0 0.0
    %3412 = vmatprep.subr.mxu0 0.0
    %3413 = vmatpush2.msra.mxu0 0.0
    %3414 = vmatprep.subr.mxu0 0.0
    %3415 = vmatpush2.msra.mxu0 0.0
    %3416 = vmatprep.subr.mxu0 0.0
    %3417 = vmatpush2.msra.mxu0 0.0
    %3418 = vmatprep.subr.mxu0 0.0
    %3419 = vmatpush2.msra.mxu0 0.0
    %3420 = vmatprep.subr.mxu0 0.0
    %3421 = vmatpush2.msra.mxu0 0.0
    %3422 = vmatprep.subr.mxu0 0.0
    %3423 = vmatpush2.msra.mxu0 0.0
    %3424 = vmatprep.subr.mxu0 0.0
    %3425 = vmatpush2.msra.mxu0 0.0
    %3426 = vmatprep.subr.mxu0 0.0
    %3427 = vmatpush2.msra.mxu0 0.0
    %3428 = vmatprep.subr.mxu0 0.0
    %3429 = vmatpush2.msra.mxu0 0.0
    %3430 = vmatprep.subr.mxu0 0.0
    %3431 = vmatpush2.msra.mxu0 0.0
    %3432 = vmatprep.subr.mxu0 0.0
    %3433 = vmatpush2.msra.mxu0 0.0
    %3434 = vmatprep.subr.mxu0 0.0
    %3435 = vmatpush2.msra.mxu0 0.0
    %3436 = vmatprep.subr.mxu0 0.0
    %3437 = vmatpush2.msra.mxu0 0.0
    %3438 = vmatprep.subr.mxu0 0.0
    %3439 = vmatpush2.msra.mxu0 0.0
    %3440 = vmatprep.mubr.f32.mxu0 0.0
    %3441 = vmatmul.mubr.f32.gmra.mxu0 %v3374
    %v3442 = vpop.f32.mrf.mxu0
    %v3443 = vadd.f32 %v366, %v3442
    %v3444 = vpop.f32.mrf.mxu0
    %3445 = vdwg.mxu0
    %s3446 = scalar_lea.vmem [#allocation7], 128
    %v3447 = vld [vmem:[%s3446] sm:$0xff]
    %v3448 = vld [vmem:[%s3446 + $0x8] sm:$0xff]
    %v3450 = vsel %vm744, %v3443, 0
    %3452 = vmatprep.subr.mxu0 0.0
    %3453 = vmatpush1.msra.mxu0 0.0
    %3454 = vmatprep.subr.mxu0 0.0
    %3455 = vmatpush1.msra.mxu0 0.0
    %3456 = vmatprep.subr.mxu0 0.0
    %3457 = vmatpush1.msra.mxu0 0.0
    %3458 = vmatprep.subr.mxu0 0.0
    %3459 = vmatpush1.msra.mxu0 0.0
    %3460 = vmatprep.subr.mxu0 0.0
    %3461 = vmatpush1.msra.mxu0 0.0
    %3462 = vmatprep.subr.mxu0 0.0
    %3463 = vmatpush1.msra.mxu0 0.0
    %3464 = vmatprep.subr.mxu0 0.0
    %3465 = vmatpush1.msra.mxu0 0.0
    %3466 = vmatprep.subr.mxu0 0.0
    %3467 = vmatpush1.msra.mxu0 0.0
    %3468 = vmatprep.subr.mxu0 0.0
    %3469 = vmatpush1.msra.mxu0 0.0
    %3470 = vmatprep.subr.mxu0 0.0
    %3471 = vmatpush1.msra.mxu0 0.0
    %3472 = vmatprep.subr.mxu0 0.0
    %3473 = vmatpush1.msra.mxu0 0.0
    %3474 = vmatprep.subr.mxu0 0.0
    %3475 = vmatpush1.msra.mxu0 0.0
    %3476 = vmatprep.subr.mxu0 0.0
    %3477 = vmatpush1.msra.mxu0 0.0
    %3478 = vmatprep.subr.mxu0 0.0
    %3479 = vmatpush1.msra.mxu0 0.0
    %3480 = vmatprep.subr.mxu0 0.0
    %3481 = vmatpush1.msra.mxu0 0.0
    %3482 = vmatprep.subr.mxu0 %v3448
    %3483 = vmatpush1.msra.mxu0 %v3447
    %3484 = vmatprep.subr.mxu0 0.0
    %3485 = vmatpush2.msra.mxu0 0.0
    %3486 = vmatprep.subr.mxu0 0.0
    %3487 = vmatpush2.msra.mxu0 0.0
    %3488 = vmatprep.subr.mxu0 0.0
    %3489 = vmatpush2.msra.mxu0 0.0
    %3490 = vmatprep.subr.mxu0 0.0
    %3491 = vmatpush2.msra.mxu0 0.0
    %3492 = vmatprep.subr.mxu0 0.0
    %3493 = vmatpush2.msra.mxu0 0.0
    %3494 = vmatprep.subr.mxu0 0.0
    %3495 = vmatpush2.msra.mxu0 0.0
    %3496 = vmatprep.subr.mxu0 0.0
    %3497 = vmatpush2.msra.mxu0 0.0
    %3498 = vmatprep.subr.mxu0 0.0
    %3499 = vmatpush2.msra.mxu0 0.0
    %3500 = vmatprep.subr.mxu0 0.0
    %3501 = vmatpush2.msra.mxu0 0.0
    %3502 = vmatprep.subr.mxu0 0.0
    %3503 = vmatpush2.msra.mxu0 0.0
    %3504 = vmatprep.subr.mxu0 0.0
    %3505 = vmatpush2.msra.mxu0 0.0
    %3506 = vmatprep.subr.mxu0 0.0
    %3507 = vmatpush2.msra.mxu0 0.0
    %3508 = vmatprep.subr.mxu0 0.0
    %3509 = vmatpush2.msra.mxu0 0.0
    %3510 = vmatprep.subr.mxu0 0.0
    %3511 = vmatpush2.msra.mxu0 0.0
    %3512 = vmatprep.subr.mxu0 0.0
    %3513 = vmatpush2.msra.mxu0 0.0
    %3514 = vmatprep.subr.mxu0 0.0
    %3515 = vmatpush2.msra.mxu0 0.0
    %3516 = vmatprep.mubr.f32.mxu0 0.0
    %3517 = vmatmul.mubr.f32.gmra.mxu0 %v3450
    %v3518 = vpop.f32.mrf.mxu0
    %v3519 = vadd.f32 0.0, %v3518
    %v3520 = vpop.f32.mrf.mxu0
    %v3521 = vadd.f32 0.0, %v3520
    %3522 = vdwg.mxu0
    %v3523 = vadd.f32 %v3147, %v3519
    %v3524 = vadd.f32 %v3148, %v3521
    %s3525 = scalar_lea.vmem %s0, 18
    %v3526 = vld [vmem:[%s3525] sm:$0x3]
    %v3528 = vsel %vm122, %v3526, 0
    %3530 = vmatprep.subr.mxu0 0.0
    %3531 = vmatpush1.msra.mxu0 0.0
    %3532 = vmatprep.subr.mxu0 0.0
    %3533 = vmatpush1.msra.mxu0 0.0
    %3534 = vmatprep.subr.mxu0 0.0
    %3535 = vmatpush1.msra.mxu0 0.0
    %3536 = vmatprep.subr.mxu0 0.0
    %3537 = vmatpush1.msra.mxu0 0.0
    %3538 = vmatprep.subr.mxu0 0.0
    %3539 = vmatpush1.msra.mxu0 0.0
    %3540 = vmatprep.subr.mxu0 0.0
    %3541 = vmatpush1.msra.mxu0 0.0
    %3542 = vmatprep.subr.mxu0 0.0
    %3543 = vmatpush1.msra.mxu0 0.0
    %3544 = vmatprep.subr.mxu0 0.0
    %3545 = vmatpush1.msra.mxu0 0.0
    %3546 = vmatprep.subr.mxu0 0.0
    %3547 = vmatpush1.msra.mxu0 0.0
    %3548 = vmatprep.subr.mxu0 0.0
    %3549 = vmatpush1.msra.mxu0 0.0
    %3550 = vmatprep.subr.mxu0 0.0
    %3551 = vmatpush1.msra.mxu0 0.0
    %3552 = vmatprep.subr.mxu0 0.0
    %3553 = vmatpush1.msra.mxu0 0.0
    %3554 = vmatprep.subr.mxu0 0.0
    %3555 = vmatpush1.msra.mxu0 0.0
    %3556 = vmatprep.subr.mxu0 0.0
    %3557 = vmatpush1.msra.mxu0 %v128
    %3558 = vmatprep.subr.mxu0 0.0
    %3559 = vmatpush1.msra.mxu0 %v99
    %3560 = vmatprep.subr.mxu0 0.0
    %3561 = vmatpush1.msra.mxu0 %v98
    %3562 = vmatprep.subr.mxu0 0.0
    %3563 = vmatpush2.msra.mxu0 0.0
    %3564 = vmatprep.subr.mxu0 0.0
    %3565 = vmatpush2.msra.mxu0 0.0
    %3566 = vmatprep.subr.mxu0 0.0
    %3567 = vmatpush2.msra.mxu0 0.0
    %3568 = vmatprep.subr.mxu0 0.0
    %3569 = vmatpush2.msra.mxu0 0.0
    %3570 = vmatprep.subr.mxu0 0.0
    %3571 = vmatpush2.msra.mxu0 0.0
    %3572 = vmatprep.subr.mxu0 0.0
    %3573 = vmatpush2.msra.mxu0 0.0
    %3574 = vmatprep.subr.mxu0 0.0
    %3575 = vmatpush2.msra.mxu0 0.0
    %3576 = vmatprep.subr.mxu0 0.0
    %3577 = vmatpush2.msra.mxu0 0.0
    %3578 = vmatprep.subr.mxu0 0.0
    %3579 = vmatpush2.msra.mxu0 0.0
    %3580 = vmatprep.subr.mxu0 0.0
    %3581 = vmatpush2.msra.mxu0 0.0
    %3582 = vmatprep.subr.mxu0 0.0
    %3583 = vmatpush2.msra.mxu0 0.0
    %3584 = vmatprep.subr.mxu0 0.0
    %3585 = vmatpush2.msra.mxu0 0.0
    %3586 = vmatprep.subr.mxu0 0.0
    %3587 = vmatpush2.msra.mxu0 0.0
    %3588 = vmatprep.subr.mxu0 0.0
    %3589 = vmatpush2.msra.mxu0 0.0
    %3590 = vmatprep.subr.mxu0 0.0
    %3591 = vmatpush2.msra.mxu0 0.0
    %3592 = vmatprep.subr.mxu0 0.0
    %3593 = vmatpush2.msra.mxu0 0.0
    %3594 = vmatprep.mubr.f32.mxu0 0.0
    %3595 = vmatmul.mubr.f32.gmra.mxu0 %v3528
    %v3596 = vpop.f32.mrf.mxu0
    %v3597 = vadd.f32 %v120, %v3596
    %v3598 = vpop.f32.mrf.mxu0
    %3599 = vdwg.mxu0
    %v3600 = vmax.f32 %v3597, 0.0
    %v3602 = vsel %vm207, %v3600, 0
    %3604 = vmatprep.subr.mxu0 0.0
    %3605 = vmatpush1.msra.mxu0 0.0
    %3606 = vmatprep.subr.mxu0 0.0
    %3607 = vmatpush1.msra.mxu0 0.0
    %3608 = vmatprep.subr.mxu0 0.0
    %3609 = vmatpush1.msra.mxu0 0.0
    %3610 = vmatprep.subr.mxu0 0.0
    %3611 = vmatpush1.msra.mxu0 0.0
    %3612 = vmatprep.subr.mxu0 0.0
    %3613 = vmatpush1.msra.mxu0 0.0
    %3614 = vmatprep.subr.mxu0 0.0
    %3615 = vmatpush1.msra.mxu0 0.0
    %3616 = vmatprep.subr.mxu0 0.0
    %3617 = vmatpush1.msra.mxu0 0.0
    %3618 = vmatprep.subr.mxu0 0.0
    %3619 = vmatpush1.msra.mxu0 0.0
    %3620 = vmatprep.subr.mxu0 0.0
    %3621 = vmatpush1.msra.mxu0 0.0
    %3622 = vmatprep.subr.mxu0 0.0
    %3623 = vmatpush1.msra.mxu0 0.0
    %3624 = vmatprep.subr.mxu0 0.0
    %3625 = vmatpush1.msra.mxu0 0.0
    %3626 = vmatprep.subr.mxu0 0.0
    %3627 = vmatpush1.msra.mxu0 0.0
    %3628 = vmatprep.subr.mxu0 0.0
    %3629 = vmatpush1.msra.mxu0 %v105
    %3630 = vmatprep.subr.mxu0 0.0
    %3631 = vmatpush1.msra.mxu0 %v104
    %3632 = vmatprep.subr.mxu0 0.0
    %3633 = vmatpush1.msra.mxu0 %v103
    %3634 = vmatprep.subr.mxu0 0.0
    %3635 = vmatpush1.msra.mxu0 %v102
    %3636 = vmatprep.subr.mxu0 0.0
    %3637 = vmatpush2.msra.mxu0 0.0
    %3638 = vmatprep.subr.mxu0 0.0
    %3639 = vmatpush2.msra.mxu0 0.0
    %3640 = vmatprep.subr.mxu0 0.0
    %3641 = vmatpush2.msra.mxu0 0.0
    %3642 = vmatprep.subr.mxu0 0.0
    %3643 = vmatpush2.msra.mxu0 0.0
    %3644 = vmatprep.subr.mxu0 0.0
    %3645 = vmatpush2.msra.mxu0 0.0
    %3646 = vmatprep.subr.mxu0 0.0
    %3647 = vmatpush2.msra.mxu0 0.0
    %3648 = vmatprep.subr.mxu0 0.0
    %3649 = vmatpush2.msra.mxu0 0.0
    %3650 = vmatprep.subr.mxu0 0.0
    %3651 = vmatpush2.msra.mxu0 0.0
    %3652 = vmatprep.subr.mxu0 0.0
    %3653 = vmatpush2.msra.mxu0 0.0
    %3654 = vmatprep.subr.mxu0 0.0
    %3655 = vmatpush2.msra.mxu0 0.0
    %3656 = vmatprep.subr.mxu0 0.0
    %3657 = vmatpush2.msra.mxu0 0.0
    %3658 = vmatprep.subr.mxu0 0.0
    %3659 = vmatpush2.msra.mxu0 0.0
    %3660 = vmatprep.subr.mxu0 0.0
    %3661 = vmatpush2.msra.mxu0 0.0
    %3662 = vmatprep.subr.mxu0 0.0
    %3663 = vmatpush2.msra.mxu0 0.0
    %3664 = vmatprep.subr.mxu0 0.0
    %3665 = vmatpush2.msra.mxu0 0.0
    %3666 = vmatprep.subr.mxu0 0.0
    %3667 = vmatpush2.msra.mxu0 0.0
    %3668 = vmatprep.mubr.f32.mxu0 0.0
    %3669 = vmatmul.mubr.f32.gmra.mxu0 %v3602
    %v3670 = vpop.f32.mrf.mxu0
    %v3671 = vadd.f32 %v205, %v3670
    %v3672 = vpop.f32.mrf.mxu0
    %3673 = vdwg.mxu0
    %v3674 = vmax.f32 %v3671, 0.0
    %v3676 = vsel %vm207, %v3674, 0
    %3678 = vmatprep.subr.mxu0 0.0
    %3679 = vmatpush1.msra.mxu0 0.0
    %3680 = vmatprep.subr.mxu0 0.0
    %3681 = vmatpush1.msra.mxu0 0.0
    %3682 = vmatprep.subr.mxu0 0.0
    %3683 = vmatpush1.msra.mxu0 0.0
    %3684 = vmatprep.subr.mxu0 0.0
    %3685 = vmatpush1.msra.mxu0 0.0
    %3686 = vmatprep.subr.mxu0 0.0
    %3687 = vmatpush1.msra.mxu0 0.0
    %3688 = vmatprep.subr.mxu0 0.0
    %3689 = vmatpush1.msra.mxu0 0.0
    %3690 = vmatprep.subr.mxu0 0.0
    %3691 = vmatpush1.msra.mxu0 0.0
    %3692 = vmatprep.subr.mxu0 0.0
    %3693 = vmatpush1.msra.mxu0 0.0
    %3694 = vmatprep.subr.mxu0 0.0
    %3695 = vmatpush1.msra.mxu0 0.0
    %3696 = vmatprep.subr.mxu0 0.0
    %3697 = vmatpush1.msra.mxu0 0.0
    %3698 = vmatprep.subr.mxu0 0.0
    %3699 = vmatpush1.msra.mxu0 0.0
    %3700 = vmatprep.subr.mxu0 0.0
    %3701 = vmatpush1.msra.mxu0 0.0
    %3702 = vmatprep.subr.mxu0 0.0
    %3703 = vmatpush1.msra.mxu0 %v110
    %3704 = vmatprep.subr.mxu0 0.0
    %3705 = vmatpush1.msra.mxu0 %v109
    %3706 = vmatprep.subr.mxu0 0.0
    %3707 = vmatpush1.msra.mxu0 %v108
    %3708 = vmatprep.subr.mxu0 0.0
    %3709 = vmatpush1.msra.mxu0 %v107
    %3710 = vmatprep.subr.mxu0 0.0
    %3711 = vmatpush2.msra.mxu0 0.0
    %3712 = vmatprep.subr.mxu0 0.0
    %3713 = vmatpush2.msra.mxu0 0.0
    %3714 = vmatprep.subr.mxu0 0.0
    %3715 = vmatpush2.msra.mxu0 0.0
    %3716 = vmatprep.subr.mxu0 0.0
    %3717 = vmatpush2.msra.mxu0 0.0
    %3718 = vmatprep.subr.mxu0 0.0
    %3719 = vmatpush2.msra.mxu0 0.0
    %3720 = vmatprep.subr.mxu0 0.0
    %3721 = vmatpush2.msra.mxu0 0.0
    %3722 = vmatprep.subr.mxu0 0.0
    %3723 = vmatpush2.msra.mxu0 0.0
    %3724 = vmatprep.subr.mxu0 0.0
    %3725 = vmatpush2.msra.mxu0 0.0
    %3726 = vmatprep.subr.mxu0 0.0
    %3727 = vmatpush2.msra.mxu0 0.0
    %3728 = vmatprep.subr.mxu0 0.0
    %3729 = vmatpush2.msra.mxu0 0.0
    %3730 = vmatprep.subr.mxu0 0.0
    %3731 = vmatpush2.msra.mxu0 0.0
    %3732 = vmatprep.subr.mxu0 0.0
    %3733 = vmatpush2.msra.mxu0 0.0
    %3734 = vmatprep.subr.mxu0 0.0
    %3735 = vmatpush2.msra.mxu0 0.0
    %3736 = vmatprep.subr.mxu0 0.0
    %3737 = vmatpush2.msra.mxu0 0.0
    %3738 = vmatprep.subr.mxu0 0.0
    %3739 = vmatpush2.msra.mxu0 0.0
    %3740 = vmatprep.subr.mxu0 0.0
    %3741 = vmatpush2.msra.mxu0 0.0
    %3742 = vmatprep.mubr.f32.mxu0 0.0
    %3743 = vmatmul.mubr.f32.gmra.mxu0 %v3676
    %v3744 = vpop.f32.mrf.mxu0
    %v3745 = vadd.f32 %v286, %v3744
    %v3746 = vpop.f32.mrf.mxu0
    %3747 = vdwg.mxu0
    %v3748 = vmax.f32 %v3745, 0.0
    %v3750 = vsel %vm368, %v3748, 0
    %3752 = vmatprep.subr.mxu0 0.0
    %3753 = vmatpush1.msra.mxu0 0.0
    %3754 = vmatprep.subr.mxu0 0.0
    %3755 = vmatpush1.msra.mxu0 0.0
    %3756 = vmatprep.subr.mxu0 0.0
    %3757 = vmatpush1.msra.mxu0 0.0
    %3758 = vmatprep.subr.mxu0 0.0
    %3759 = vmatpush1.msra.mxu0 0.0
    %3760 = vmatprep.subr.mxu0 0.0
    %3761 = vmatpush1.msra.mxu0 0.0
    %3762 = vmatprep.subr.mxu0 0.0
    %3763 = vmatpush1.msra.mxu0 0.0
    %3764 = vmatprep.subr.mxu0 0.0
    %3765 = vmatpush1.msra.mxu0 0.0
    %3766 = vmatprep.subr.mxu0 0.0
    %3767 = vmatpush1.msra.mxu0 0.0
    %3768 = vmatprep.subr.mxu0 0.0
    %3769 = vmatpush1.msra.mxu0 0.0
    %3770 = vmatprep.subr.mxu0 0.0
    %3771 = vmatpush1.msra.mxu0 0.0
    %3772 = vmatprep.subr.mxu0 0.0
    %3773 = vmatpush1.msra.mxu0 0.0
    %3774 = vmatprep.subr.mxu0 0.0
    %3775 = vmatpush1.msra.mxu0 0.0
    %3776 = vmatprep.subr.mxu0 0.0
    %3777 = vmatpush1.msra.mxu0 0.0
    %3778 = vmatprep.subr.mxu0 0.0
    %3779 = vmatpush1.msra.mxu0 0.0
    %3780 = vmatprep.subr.mxu0 0.0
    %3781 = vmatpush1.msra.mxu0 %v113
    %3782 = vmatprep.subr.mxu0 0.0
    %3783 = vmatpush1.msra.mxu0 %v112
    %3784 = vmatprep.subr.mxu0 0.0
    %3785 = vmatpush2.msra.mxu0 0.0
    %3786 = vmatprep.subr.mxu0 0.0
    %3787 = vmatpush2.msra.mxu0 0.0
    %3788 = vmatprep.subr.mxu0 0.0
    %3789 = vmatpush2.msra.mxu0 0.0
    %3790 = vmatprep.subr.mxu0 0.0
    %3791 = vmatpush2.msra.mxu0 0.0
    %3792 = vmatprep.subr.mxu0 0.0
    %3793 = vmatpush2.msra.mxu0 0.0
    %3794 = vmatprep.subr.mxu0 0.0
    %3795 = vmatpush2.msra.mxu0 0.0
    %3796 = vmatprep.subr.mxu0 0.0
    %3797 = vmatpush2.msra.mxu0 0.0
    %3798 = vmatprep.subr.mxu0 0.0
    %3799 = vmatpush2.msra.mxu0 0.0
    %3800 = vmatprep.subr.mxu0 0.0
    %3801 = vmatpush2.msra.mxu0 0.0
    %3802 = vmatprep.subr.mxu0 0.0
    %3803 = vmatpush2.msra.mxu0 0.0
    %3804 = vmatprep.subr.mxu0 0.0
    %3805 = vmatpush2.msra.mxu0 0.0
    %3806 = vmatprep.subr.mxu0 0.0
    %3807 = vmatpush2.msra.mxu0 0.0
    %3808 = vmatprep.subr.mxu0 0.0
    %3809 = vmatpush2.msra.mxu0 0.0
    %3810 = vmatprep.subr.mxu0 0.0
    %3811 = vmatpush2.msra.mxu0 0.0
    %3812 = vmatprep.subr.mxu0 0.0
    %3813 = vmatpush2.msra.mxu0 0.0
    %3814 = vmatprep.subr.mxu0 0.0
    %3815 = vmatpush2.msra.mxu0 0.0
    %3816 = vmatprep.mubr.f32.mxu0 0.0
    %3817 = vmatmul.mubr.f32.gmra.mxu0 %v3750
    %v3818 = vpop.f32.mrf.mxu0
    %v3819 = vadd.f32 %v366, %v3818
    %v3820 = vpop.f32.mrf.mxu0
    %3821 = vdwg.mxu0
    %s3822 = scalar_lea.vmem [#allocation7], 144
    %v3823 = vld [vmem:[%s3822] sm:$0xff]
    %v3824 = vld [vmem:[%s3822 + $0x8] sm:$0xff]
    %v3826 = vsel %vm744, %v3819, 0
    %3828 = vmatprep.subr.mxu0 0.0
    %3829 = vmatpush1.msra.mxu0 0.0
    %3830 = vmatprep.subr.mxu0 0.0
    %3831 = vmatpush1.msra.mxu0 0.0
    %3832 = vmatprep.subr.mxu0 0.0
    %3833 = vmatpush1.msra.mxu0 0.0
    %3834 = vmatprep.subr.mxu0 0.0
    %3835 = vmatpush1.msra.mxu0 0.0
    %3836 = vmatprep.subr.mxu0 0.0
    %3837 = vmatpush1.msra.mxu0 0.0
    %3838 = vmatprep.subr.mxu0 0.0
    %3839 = vmatpush1.msra.mxu0 0.0
    %3840 = vmatprep.subr.mxu0 0.0
    %3841 = vmatpush1.msra.mxu0 0.0
    %3842 = vmatprep.subr.mxu0 0.0
    %3843 = vmatpush1.msra.mxu0 0.0
    %3844 = vmatprep.subr.mxu0 0.0
    %3845 = vmatpush1.msra.mxu0 0.0
    %3846 = vmatprep.subr.mxu0 0.0
    %3847 = vmatpush1.msra.mxu0 0.0
    %3848 = vmatprep.subr.mxu0 0.0
    %3849 = vmatpush1.msra.mxu0 0.0
    %3850 = vmatprep.subr.mxu0 0.0
    %3851 = vmatpush1.msra.mxu0 0.0
    %3852 = vmatprep.subr.mxu0 0.0
    %3853 = vmatpush1.msra.mxu0 0.0
    %3854 = vmatprep.subr.mxu0 0.0
    %3855 = vmatpush1.msra.mxu0 0.0
    %3856 = vmatprep.subr.mxu0 0.0
    %3857 = vmatpush1.msra.mxu0 0.0
    %3858 = vmatprep.subr.mxu0 %v3824
    %3859 = vmatpush1.msra.mxu0 %v3823
    %3860 = vmatprep.subr.mxu0 0.0
    %3861 = vmatpush2.msra.mxu0 0.0
    %3862 = vmatprep.subr.mxu0 0.0
    %3863 = vmatpush2.msra.mxu0 0.0
    %3864 = vmatprep.subr.mxu0 0.0
    %3865 = vmatpush2.msra.mxu0 0.0
    %3866 = vmatprep.subr.mxu0 0.0
    %3867 = vmatpush2.msra.mxu0 0.0
    %3868 = vmatprep.subr.mxu0 0.0
    %3869 = vmatpush2.msra.mxu0 0.0
    %3870 = vmatprep.subr.mxu0 0.0
    %3871 = vmatpush2.msra.mxu0 0.0
    %3872 = vmatprep.subr.mxu0 0.0
    %3873 = vmatpush2.msra.mxu0 0.0
    %3874 = vmatprep.subr.mxu0 0.0
    %3875 = vmatpush2.msra.mxu0 0.0
    %3876 = vmatprep.subr.mxu0 0.0
    %3877 = vmatpush2.msra.mxu0 0.0
    %3878 = vmatprep.subr.mxu0 0.0
    %3879 = vmatpush2.msra.mxu0 0.0
    %3880 = vmatprep.subr.mxu0 0.0
    %3881 = vmatpush2.msra.mxu0 0.0
    %3882 = vmatprep.subr.mxu0 0.0
    %3883 = vmatpush2.msra.mxu0 0.0
    %3884 = vmatprep.subr.mxu0 0.0
    %3885 = vmatpush2.msra.mxu0 0.0
    %3886 = vmatprep.subr.mxu0 0.0
    %3887 = vmatpush2.msra.mxu0 0.0
    %3888 = vmatprep.subr.mxu0 0.0
    %3889 = vmatpush2.msra.mxu0 0.0
    %3890 = vmatprep.subr.mxu0 0.0
    %3891 = vmatpush2.msra.mxu0 0.0
    %3892 = vmatprep.mubr.f32.mxu0 0.0
    %3893 = vmatmul.mubr.f32.gmra.mxu0 %v3826
    %v3894 = vpop.f32.mrf.mxu0
    %v3895 = vadd.f32 0.0, %v3894
    %v3896 = vpop.f32.mrf.mxu0
    %v3897 = vadd.f32 0.0, %v3896
    %3898 = vdwg.mxu0
    %v3899 = vadd.f32 %v3523, %v3895
    %v3900 = vadd.f32 %v3524, %v3897
    %v3901 = vld [vmem:[%s10] sm:$0x3]
    %v3903 = vlaneseq
    %v3904 = vshrl.u32 %v3903, 7
    %v3905 = vsub.s32 0, %v3904
    %v3906 = vrot.slane %v3901, %v3905
    %v3907 = vlaneseq
    %v3908 = vshrl.u32 %v3907, 7
    %v3909 = vsub.s32 1, %v3908
    %v3910 = vrot.slane %v3901, %v3909
    %v3913 = vadd.f32 %v3899, %v3906
    %v3914 = vadd.f32 %v3900, %v3910
    %v3915 = vmax.f32 %v3913, 0.0
    %v3916 = vmax.f32 %v3914, 0.0
    %v3917 = vld [vmem:[%s11] sm:$0xff]
    %v3918 = vld [vmem:[%s11 + $0x8] sm:$0xff]
    %v3919 = vld [vmem:[%s11 + $0x10] sm:$0xff]
    %v3920 = vld [vmem:[%s11 + $0x18] sm:$0xff]
    %v3921 = vld [vmem:[%s11 + $0x20] sm:$0xff]
    %v3922 = vld [vmem:[%s11 + $0x28] sm:$0xff]
    %v3923 = vld [vmem:[%s11 + $0x30] sm:$0xff]
    %v3924 = vld [vmem:[%s11 + $0x38] sm:$0xff]
    %v3925 = vld [vmem:[%s11 + $0x40] sm:$0xff]
    %v3926 = vld [vmem:[%s11 + $0x48] sm:$0xff]
    %v3927 = vld [vmem:[%s11 + $0x50] sm:$0xff]
    %v3928 = vld [vmem:[%s11 + $0x58] sm:$0xff]
    %v3929 = vld [vmem:[%s11 + $0x60] sm:$0xff]
    %v3930 = vld [vmem:[%s11 + $0x68] sm:$0xff]
    %v3931 = vld [vmem:[%s11 + $0x70] sm:$0xff]
    %v3932 = vld [vmem:[%s11 + $0x78] sm:$0xff]
    %v3933 = vld [vmem:[%s11 + $0x80] sm:$0xff]
    %v3934 = vld [vmem:[%s11 + $0x88] sm:$0xff]
    %v3935 = vld [vmem:[%s11 + $0x90] sm:$0xff]
    %v3936 = vld [vmem:[%s11 + $0x98] sm:$0xff]
    %v3937 = vld [vmem:[%s11 + $0xa0] sm:$0xff]
    %v3938 = vld [vmem:[%s11 + $0xa8] sm:$0xff]
    %v3939 = vld [vmem:[%s11 + $0xb0] sm:$0xff]
    %v3940 = vld [vmem:[%s11 + $0xb8] sm:$0xff]
    %v3941 = vld [vmem:[%s11 + $0xc0] sm:$0xff]
    %v3942 = vld [vmem:[%s11 + $0xc8] sm:$0xff]
    %v3943 = vld [vmem:[%s11 + $0xd0] sm:$0xff]
    %v3944 = vld [vmem:[%s11 + $0xd8] sm:$0xff]
    %v3945 = vld [vmem:[%s11 + $0xe0] sm:$0xff]
    %v3946 = vld [vmem:[%s11 + $0xe8] sm:$0xff]
    %v3947 = vld [vmem:[%s11 + $0xf0] sm:$0xff]
    %v3948 = vld [vmem:[%s11 + $0xf8] sm:$0xff]
    %v3949 = vld [vmem:[%s12] sm:$0x1]
    %v3951 = vlaneseq
    %v3952 = vshrl.u32 %v3951, 7
    %v3953 = vsub.s32 0, %v3952
    %v3954 = vrot.slane %v3949, %v3953
    %3956 = vmatprep.subr.mxu0 0.0
    %3957 = vmatpush1.msra.mxu0 %v3932
    %3958 = vmatprep.subr.mxu0 0.0
    %3959 = vmatpush1.msra.mxu0 %v3931
    %3960 = vmatprep.subr.mxu0 0.0
    %3961 = vmatpush1.msra.mxu0 %v3930
    %3962 = vmatprep.subr.mxu0 0.0
    %3963 = vmatpush1.msra.mxu0 %v3929
    %3964 = vmatprep.subr.mxu0 0.0
    %3965 = vmatpush1.msra.mxu0 %v3928
    %3966 = vmatprep.subr.mxu0 0.0
    %3967 = vmatpush1.msra.mxu0 %v3927
    %3968 = vmatprep.subr.mxu0 0.0
    %3969 = vmatpush1.msra.mxu0 %v3926
    %3970 = vmatprep.subr.mxu0 0.0
    %3971 = vmatpush1.msra.mxu0 %v3925
    %3972 = vmatprep.subr.mxu0 0.0
    %3973 = vmatpush1.msra.mxu0 %v3924
    %3974 = vmatprep.subr.mxu0 0.0
    %3975 = vmatpush1.msra.mxu0 %v3923
    %3976 = vmatprep.subr.mxu0 0.0
    %3977 = vmatpush1.msra.mxu0 %v3922
    %3978 = vmatprep.subr.mxu0 0.0
    %3979 = vmatpush1.msra.mxu0 %v3921
    %3980 = vmatprep.subr.mxu0 0.0
    %3981 = vmatpush1.msra.mxu0 %v3920
    %3982 = vmatprep.subr.mxu0 0.0
    %3983 = vmatpush1.msra.mxu0 %v3919
    %3984 = vmatprep.subr.mxu0 0.0
    %3985 = vmatpush1.msra.mxu0 %v3918
    %3986 = vmatprep.subr.mxu0 0.0
    %3987 = vmatpush1.msra.mxu0 %v3917
    %3988 = vmatprep.subr.mxu0 0.0
    %3989 = vmatpush2.msra.mxu0 %v3948
    %3990 = vmatprep.subr.mxu0 0.0
    %3991 = vmatpush2.msra.mxu0 %v3947
    %3992 = vmatprep.subr.mxu0 0.0
    %3993 = vmatpush2.msra.mxu0 %v3946
    %3994 = vmatprep.subr.mxu0 0.0
    %3995 = vmatpush2.msra.mxu0 %v3945
    %3996 = vmatprep.subr.mxu0 0.0
    %3997 = vmatpush2.msra.mxu0 %v3944
    %3998 = vmatprep.subr.mxu0 0.0
    %3999 = vmatpush2.msra.mxu0 %v3943
    %4000 = vmatprep.subr.mxu0 0.0
    %4001 = vmatpush2.msra.mxu0 %v3942
    %4002 = vmatprep.subr.mxu0 0.0
    %4003 = vmatpush2.msra.mxu0 %v3941
    %4004 = vmatprep.subr.mxu0 0.0
    %4005 = vmatpush2.msra.mxu0 %v3940
    %4006 = vmatprep.subr.mxu0 0.0
    %4007 = vmatpush2.msra.mxu0 %v3939
    %4008 = vmatprep.subr.mxu0 0.0
    %4009 = vmatpush2.msra.mxu0 %v3938
    %4010 = vmatprep.subr.mxu0 0.0
    %4011 = vmatpush2.msra.mxu0 %v3937
    %4012 = vmatprep.subr.mxu0 0.0
    %4013 = vmatpush2.msra.mxu0 %v3936
    %4014 = vmatprep.subr.mxu0 0.0
    %4015 = vmatpush2.msra.mxu0 %v3935
    %4016 = vmatprep.subr.mxu0 0.0
    %4017 = vmatpush2.msra.mxu0 %v3934
    %4018 = vmatprep.subr.mxu0 0.0
    %4019 = vmatpush2.msra.mxu0 %v3933
    %4020 = vmatprep.mubr.f32.mxu0 %v3916
    %4021 = vmatmul.mubr.f32.gmra.mxu0 %v3915
    %v4022 = vpop.f32.mrf.mxu0
    %v4023 = vadd.f32 %v3954, %v4022
    %v4024 = vpop.f32.mrf.mxu0
    %4025 = vdwg.mxu0
    %v4026 = vmax.f32 %v4023, 0.0
    %v4027 = vld [vmem:[%s13] sm:$0xff]
    %v4028 = vld [vmem:[%s13 + $0x8] sm:$0xff]
    %v4029 = vld [vmem:[%s13 + $0x10] sm:$0xff]
    %v4030 = vld [vmem:[%s13 + $0x18] sm:$0xff]
    %v4031 = vld [vmem:[%s13 + $0x20] sm:$0xff]
    %v4032 = vld [vmem:[%s13 + $0x28] sm:$0xff]
    %v4033 = vld [vmem:[%s13 + $0x30] sm:$0xff]
    %v4034 = vld [vmem:[%s13 + $0x38] sm:$0xff]
    %v4035 = vld [vmem:[%s13 + $0x40] sm:$0xff]
    %v4036 = vld [vmem:[%s13 + $0x48] sm:$0xff]
    %v4037 = vld [vmem:[%s13 + $0x50] sm:$0xff]
    %v4038 = vld [vmem:[%s13 + $0x58] sm:$0xff]
    %v4039 = vld [vmem:[%s13 + $0x60] sm:$0xff]
    %v4040 = vld [vmem:[%s13 + $0x68] sm:$0xff]
    %v4041 = vld [vmem:[%s13 + $0x70] sm:$0xff]
    %v4042 = vld [vmem:[%s13 + $0x78] sm:$0xff]
    %v4043 = vld [vmem:[%s14] sm:$0x1]
    %v4045 = vlaneseq
    %v4046 = vshrl.u32 %v4045, 7
    %v4047 = vsub.s32 0, %v4046
    %v4048 = vrot.slane %v4043, %v4047
    %4050 = vmatprep.subr.mxu0 0.0
    %4051 = vmatpush1.msra.mxu0 %v4042
    %4052 = vmatprep.subr.mxu0 0.0
    %4053 = vmatpush1.msra.mxu0 %v4041
    %4054 = vmatprep.subr.mxu0 0.0
    %4055 = vmatpush1.msra.mxu0 %v4040
    %4056 = vmatprep.subr.mxu0 0.0
    %4057 = vmatpush1.msra.mxu0 %v4039
    %4058 = vmatprep.subr.mxu0 0.0
    %4059 = vmatpush1.msra.mxu0 %v4038
    %4060 = vmatprep.subr.mxu0 0.0
    %4061 = vmatpush1.msra.mxu0 %v4037
    %4062 = vmatprep.subr.mxu0 0.0
    %4063 = vmatpush1.msra.mxu0 %v4036
    %4064 = vmatprep.subr.mxu0 0.0
    %4065 = vmatpush1.msra.mxu0 %v4035
    %4066 = vmatprep.subr.mxu0 0.0
    %4067 = vmatpush1.msra.mxu0 %v4034
    %4068 = vmatprep.subr.mxu0 0.0
    %4069 = vmatpush1.msra.mxu0 %v4033
    %4070 = vmatprep.subr.mxu0 0.0
    %4071 = vmatpush1.msra.mxu0 %v4032
    %4072 = vmatprep.subr.mxu0 0.0
    %4073 = vmatpush1.msra.mxu0 %v4031
    %4074 = vmatprep.subr.mxu0 0.0
    %4075 = vmatpush1.msra.mxu0 %v4030
    %4076 = vmatprep.subr.mxu0 0.0
    %4077 = vmatpush1.msra.mxu0 %v4029
    %4078 = vmatprep.subr.mxu0 0.0
    %4079 = vmatpush1.msra.mxu0 %v4028
    %4080 = vmatprep.subr.mxu0 0.0
    %4081 = vmatpush1.msra.mxu0 %v4027
    %4082 = vmatprep.subr.mxu0 0.0
    %4083 = vmatpush2.msra.mxu0 0.0
    %4084 = vmatprep.subr.mxu0 0.0
    %4085 = vmatpush2.msra.mxu0 0.0
    %4086 = vmatprep.subr.mxu0 0.0
    %4087 = vmatpush2.msra.mxu0 0.0
    %4088 = vmatprep.subr.mxu0 0.0
    %4089 = vmatpush2.msra.mxu0 0.0
    %4090 = vmatprep.subr.mxu0 0.0
    %4091 = vmatpush2.msra.mxu0 0.0
    %4092 = vmatprep.subr.mxu0 0.0
    %4093 = vmatpush2.msra.mxu0 0.0
    %4094 = vmatprep.subr.mxu0 0.0
    %4095 = vmatpush2.msra.mxu0 0.0
    %4096 = vmatprep.subr.mxu0 0.0
    %4097 = vmatpush2.msra.mxu0 0.0
    %4098 = vmatprep.subr.mxu0 0.0
    %4099 = vmatpush2.msra.mxu0 0.0
    %4100 = vmatprep.subr.mxu0 0.0
    %4101 = vmatpush2.msra.mxu0 0.0
    %4102 = vmatprep.subr.mxu0 0.0
    %4103 = vmatpush2.msra.mxu0 0.0
    %4104 = vmatprep.subr.mxu0 0.0
    %4105 = vmatpush2.msra.mxu0 0.0
    %4106 = vmatprep.subr.mxu0 0.0
    %4107 = vmatpush2.msra.mxu0 0.0
    %4108 = vmatprep.subr.mxu0 0.0
    %4109 = vmatpush2.msra.mxu0 0.0
    %4110 = vmatprep.subr.mxu0 0.0
    %4111 = vmatpush2.msra.mxu0 0.0
    %4112 = vmatprep.subr.mxu0 0.0
    %4113 = vmatpush2.msra.mxu0 0.0
    %4114 = vmatprep.mubr.f32.mxu0 0.0
    %4115 = vmatmul.mubr.f32.gmra.mxu0 %v4026
    %v4116 = vpop.f32.mrf.mxu0
    %v4117 = vadd.f32 %v4048, %v4116
    %v4118 = vpop.f32.mrf.mxu0
    %4119 = vdwg.mxu0
    %v4120 = vmax.f32 %v4117, 0.0
    %v4121 = vld [vmem:[%s15] sm:$0xff]
    %v4122 = vld [vmem:[%s15 + $0x8] sm:$0xff]
    %v4123 = vld [vmem:[%s15 + $0x10] sm:$0xff]
    %v4124 = vld [vmem:[%s15 + $0x18] sm:$0xff]
    %v4125 = vld [vmem:[%s15 + $0x20] sm:$0xff]
    %v4126 = vld [vmem:[%s15 + $0x28] sm:$0xff]
    %v4127 = vld [vmem:[%s15 + $0x30] sm:$0xff]
    %v4128 = vld [vmem:[%s15 + $0x38] sm:$0xff]
    %v4129 = vld [vmem:[%s16] sm:$0x1]
    %v4131 = vlaneseq
    %v4132 = vshrl.u32 %v4131, 7
    %v4133 = vsub.s32 0, %v4132
    %v4134 = vrot.slane %v4129, %v4133
    %vm4136 = vcmask 523264
    %v4138 = vsel %vm4136, %v4120, 0
    %4140 = vmatprep.subr.mxu0 0.0
    %4141 = vmatpush1.msra.mxu0 0.0
    %4142 = vmatprep.subr.mxu0 0.0
    %4143 = vmatpush1.msra.mxu0 0.0
    %4144 = vmatprep.subr.mxu0 0.0
    %4145 = vmatpush1.msra.mxu0 0.0
    %4146 = vmatprep.subr.mxu0 0.0
    %4147 = vmatpush1.msra.mxu0 0.0
    %4148 = vmatprep.subr.mxu0 0.0
    %4149 = vmatpush1.msra.mxu0 0.0
    %4150 = vmatprep.subr.mxu0 0.0
    %4151 = vmatpush1.msra.mxu0 0.0
    %4152 = vmatprep.subr.mxu0 0.0
    %4153 = vmatpush1.msra.mxu0 0.0
    %4154 = vmatprep.subr.mxu0 0.0
    %4155 = vmatpush1.msra.mxu0 0.0
    %4156 = vmatprep.subr.mxu0 0.0
    %4157 = vmatpush1.msra.mxu0 %v4128
    %4158 = vmatprep.subr.mxu0 0.0
    %4159 = vmatpush1.msra.mxu0 %v4127
    %4160 = vmatprep.subr.mxu0 0.0
    %4161 = vmatpush1.msra.mxu0 %v4126
    %4162 = vmatprep.subr.mxu0 0.0
    %4163 = vmatpush1.msra.mxu0 %v4125
    %4164 = vmatprep.subr.mxu0 0.0
    %4165 = vmatpush1.msra.mxu0 %v4124
    %4166 = vmatprep.subr.mxu0 0.0
    %4167 = vmatpush1.msra.mxu0 %v4123
    %4168 = vmatprep.subr.mxu0 0.0
    %4169 = vmatpush1.msra.mxu0 %v4122
    %4170 = vmatprep.subr.mxu0 0.0
    %4171 = vmatpush1.msra.mxu0 %v4121
    %4172 = vmatprep.subr.mxu0 0.0
    %4173 = vmatpush2.msra.mxu0 0.0
    %4174 = vmatprep.subr.mxu0 0.0
    %4175 = vmatpush2.msra.mxu0 0.0
    %4176 = vmatprep.subr.mxu0 0.0
    %4177 = vmatpush2.msra.mxu0 0.0
    %4178 = vmatprep.subr.mxu0 0.0
    %4179 = vmatpush2.msra.mxu0 0.0
    %4180 = vmatprep.subr.mxu0 0.0
    %4181 = vmatpush2.msra.mxu0 0.0
    %4182 = vmatprep.subr.mxu0 0.0
    %4183 = vmatpush2.msra.mxu0 0.0
    %4184 = vmatprep.subr.mxu0 0.0
    %4185 = vmatpush2.msra.mxu0 0.0
    %4186 = vmatprep.subr.mxu0 0.0
    %4187 = vmatpush2.msra.mxu0 0.0
    %4188 = vmatprep.subr.mxu0 0.0
    %4189 = vmatpush2.msra.mxu0 0.0
    %4190 = vmatprep.subr.mxu0 0.0
    %4191 = vmatpush2.msra.mxu0 0.0
    %4192 = vmatprep.subr.mxu0 0.0
    %4193 = vmatpush2.msra.mxu0 0.0
    %4194 = vmatprep.subr.mxu0 0.0
    %4195 = vmatpush2.msra.mxu0 0.0
    %4196 = vmatprep.subr.mxu0 0.0
    %4197 = vmatpush2.msra.mxu0 0.0
    %4198 = vmatprep.subr.mxu0 0.0
    %4199 = vmatpush2.msra.mxu0 0.0
    %4200 = vmatprep.subr.mxu0 0.0
    %4201 = vmatpush2.msra.mxu0 0.0
    %4202 = vmatprep.subr.mxu0 0.0
    %4203 = vmatpush2.msra.mxu0 0.0
    %4204 = vmatprep.mubr.f32.mxu0 0.0
    %4205 = vmatmul.mubr.f32.gmra.mxu0 %v4138
    %v4206 = vpop.f32.mrf.mxu0
    %v4207 = vadd.f32 %v4134, %v4206
    %v4208 = vpop.f32.mrf.mxu0
    %4209 = vdwg.mxu0
    %4210 = vst [vmem:[#allocation8] sm:$0x3] %v4207
    // Predicated region
    $region82: #{dqn_forward.1} parent=1 // pred_check
      _
    $region83: #{dqn_forward.1} parent=1 // pred_check_branch
      %4212 = sbr.rel (0) target = $region85
    $region84: #{dqn_forward.1} parent=1 // pred_region
      %s4214 = ssub.s32 32, 32
      %4215 = vsyncadd [#allocation4], %s4214
      %s4217 = sshll.u32 [#allocation8], 4
      %s4218 = int_to_ptr.vmem [resolvable:$true] %s4217
      %4220 = dma.vmem_to_hbm [thread:$0]  %s4218, 32, %s17, [#allocation4]
    $region85: #{dqn_forward.1} parent=1 // pred_fallthru
      _
    // Predicated region
    $region86: #{dqn_forward.1} parent=1 // pred_check
      _
    $region87: #{dqn_forward.1} parent=1 // pred_check_branch
      %4222 = sbr.rel (0) target = $region89
    $region88: #{dqn_forward.1} parent=1 // pred_region
      %4223 = dma.done [#allocation4], 32
    $region89: #{dqn_forward.1} parent=1 // pred_fallthru
      _
    %4224 = vsyncpa [#allocation3], 1
    %4225 = vsyncpa [#allocation6], 1
    %4226 = vsyncpa [#allocation4], 1

</llo_original>
